<compile_context>
chip_gen: v6e
topology: v6e:2x2x1
jax: 0.10.0
libtpu: 0.0.40
codegen_flags: <defaults>
</compile_context>

<pallas_src>
import math

import jax
import jax.numpy as jnp
from jax.experimental import pallas as pl
from jax.experimental.pallas import tpu as pltpu

EMB, HID, OUT = 300, 100, 1        # logical sizes (match the torch module)
HID_PAD = 128                      # lane-aligned hidden width (zero-padded cols)

# Budget for the two in-flight (double-buffered) feature tiles; keeps tiles
# comfortably inside v5e's 16 MiB default scoped VMEM and v7x's 64 MiB physical.
_FEAT_STREAM_BUDGET = 8 * 1024 * 1024
_VMEM_LIMIT_BYTES = 32 * 1024 * 1024   # explicit scoped-VMEM limit, safe on all chips


def _round_up(x, m):
    return (x + m - 1) // m * m


def _fnn_kernel(feat_ref, w1_ref, b1_ref, w2_ref, b2_ref, out_ref):
    # feat_ref: (block_b, seq, 300) in the stored dtype (bf16 recommended).
    # Upcast before the pool (v5e has no bf16 VALU); accumulate everything in f32.
    x = feat_ref[...].astype(jnp.float32)
    pooled = jnp.sum(x, axis=1)                                    # (block_b, 300)
    # Layer 1: (block_b, 300) @ (300, 128) on the MXU (ragged K=300 is masked
    # by Mosaic), f32 accumulate; tanh runs on the EUP.
    h = jnp.tanh(
        jnp.dot(pooled, w1_ref[...], preferred_element_type=jnp.float32)
        + b1_ref[...])                                             # (block_b, 128)
    # Layer 2: single real output column -> packed (block_b, 1) tile,
    # 4 B/example of HBM writeback.
    o = jnp.dot(h, w2_ref[...], preferred_element_type=jnp.float32) + b2_ref[...]
    out_ref[...] = jax.nn.sigmoid(o).astype(out_ref.dtype)


def _pad_params(w1, b1, w2, b2):
    """Zero-pad the hidden dim to 128 lanes (tiny, one-off; math unchanged)."""
    w1p = jnp.zeros((EMB, HID_PAD), jnp.float32).at[:, :HID].set(w1.astype(jnp.float32))
    b1p = jnp.zeros((1, HID_PAD), jnp.float32).at[:, :HID].set(b1.astype(jnp.float32))
    w2p = jnp.zeros((HID_PAD, OUT), jnp.float32).at[:HID, :].set(w2.astype(jnp.float32))
    b2p = b2.astype(jnp.float32).reshape(1, OUT)
    return w1p, b1p, w2p, b2p


def fnn_forward_batch(feat, w1, b1, w2, b2, *, block_b=512):
    """feat: (B, seq, 300), bf16 or f32, used as stored (no host-side pad/cast).

    Returns (B, 1) f32 — one sigmoid output per example.
    """
    B, seq, emb = feat.shape
    assert emb == EMB

    # --- choose the batch tile ------------------------------------------------
    # VMEM: the two in-flight feature tiles must fit the budget on every chip.
    bytes_per_row = seq * _round_up(emb, 128) * feat.dtype.itemsize
    max_rows = max(8, (_FEAT_STREAM_BUDGET // (2 * bytes_per_row)) // 8 * 8)
    block_b = min(block_b, max_rows)
    if B > 8:
        # Keep >= 2 grid steps so the "parallel" axis can feed both v7x TCs.
        block_b = min(block_b, _round_up(pl.cdiv(B, 2), 8))
    else:
        block_b = min(block_b, B)          # exact single block for tiny batches
    assert block_b % 8 == 0 or block_b == B
    n_tiles = pl.cdiv(B, block_b)

    w1p, b1p, w2p, b2p = _pad_params(w1, b1, w2, b2)

    return pl.pallas_call(
        _fnn_kernel,
        out_shape=jax.ShapeDtypeStruct((B, OUT), jnp.float32),
        grid=(n_tiles,),
        in_specs=[
            # Streamed feature tiles: batch axis tiled, seq/emb taken whole
            # (300 == full array dim -> no 300->384 DMA inflation, no host pad;
            # the last partial tile is a masked boundary block).
            pl.BlockSpec((block_b, seq, EMB), lambda i: (i, 0, 0)),
            # Weights/biases: constant index_map -> DMA'd once, VMEM-resident.
            pl.BlockSpec((EMB, HID_PAD), lambda i: (0, 0)),
            pl.BlockSpec((1, HID_PAD), lambda i: (0, 0)),
            pl.BlockSpec((HID_PAD, OUT), lambda i: (0, 0)),
            pl.BlockSpec((1, OUT), lambda i: (0, 0)),
        ],
        out_specs=pl.BlockSpec((block_b, OUT), lambda i: (i, 0)),
        compiler_params=pltpu.CompilerParams(
            dimension_semantics=("parallel",),
            vmem_limit_bytes=_VMEM_LIMIT_BYTES),
    )(feat, w1p, b1p, w2p, b2p)


def fnn_forward(feat, w1, b1, w2, b2):
    """Single-example forward matching the torch module: feat (seq, 300) -> (1, 1)."""
    return fnn_forward_batch(feat[None], w1, b1, w2, b2, block_b=8)


def init_params(key):
    """Deterministic init mimicking nn.Linear default (uniform(-1/sqrt(in), 1/sqrt(in)))."""
    k1, k2, k3, k4 = jax.random.split(key, 4)
    bound1 = 1.0 / math.sqrt(EMB)
    bound2 = 1.0 / math.sqrt(HID)
    # Stored as (in, out) == transposed PyTorch weight, so forward is x @ W + b.
    w1 = jax.random.uniform(k1, (EMB, HID), jnp.float32, -bound1, bound1)
    b1 = jax.random.uniform(k2, (1, HID), jnp.float32, -bound1, bound1)
    w2 = jax.random.uniform(k3, (HID, OUT), jnp.float32, -bound2, bound2)
    b2 = jax.random.uniform(k4, (1, OUT), jnp.float32, -bound2, bound2)
    return w1, b1, w2, b2


def reference_forward_batch(feat, w1, b1, w2, b2):
    pooled = jnp.sum(feat.astype(jnp.float32), axis=1)
    h = jnp.tanh(jnp.dot(pooled, w1, precision="highest") + b1)
    return jax.nn.sigmoid(jnp.dot(h, w2, precision="highest") + b2)


if __name__ == "__main__":
    key = jax.random.PRNGKey(0)
    k_feat, k_params = jax.random.split(key)

    B, seq = 200, 8   # 200 examples of 8 words each (exercises the partial last tile)
    # Features are "stored upstream" in bf16: cast once here, not per call.
    feat = jax.random.normal(k_feat, (B, seq, EMB), jnp.float32).astype(jnp.bfloat16)
    w1, b1, w2, b2 = init_params(k_params)

    out = jax.block_until_ready(fnn_forward_batch(feat, w1, b1, w2, b2))
    ref = reference_forward_batch(feat, w1, b1, w2, b2)   # same bf16 inputs, f32 math
    assert out.shape == (B, 1)
    assert jnp.allclose(out, ref, atol=1e-3, rtol=1e-3), float(jnp.max(jnp.abs(out - ref)))

    # Single-example path (original module signature: (seq, 300) -> (1, 1)).
    out1 = jax.block_until_ready(fnn_forward(feat[0], w1, b1, w2, b2))
    assert out1.shape == (1, 1)
    assert jnp.allclose(out1, ref[0:1], atol=1e-3, rtol=1e-3)

    print("KERNEL_OK")
</pallas_src>

<mosaic_0001>
module attributes {stable_mosaic.version = 11 : i64} {
  func.func @_fnn_kernel(%arg0: i32, %arg1: memref<104x8x300xbf16, #tpu.memory_space<vmem>>, %arg2: memref<300x128xf32, #tpu.memory_space<vmem>>, %arg3: memref<1x128xf32, #tpu.memory_space<vmem>>, %arg4: memref<128x1xf32, #tpu.memory_space<vmem>>, %arg5: memref<1x1xf32, #tpu.memory_space<vmem>>, %arg6: memref<104x1xf32, #tpu.memory_space<vmem>>) attributes {dimension_semantics = [#tpu.dimension_semantics<parallel>], iteration_bounds = array<i64: 2>, scalar_prefetch = 0 : i64, scratch_operands = 0 : i64, tpu.core_type = #tpu.core_type<tc>, window_params = [{transform_indices = @transform_0, window_bounds = array<i64: 104, 8, 300>}, {pipeline_mode = #tpu.pipeline_mode<synchronous>, transform_indices = @transform_1, window_bounds = array<i64: 300, 128>}, {pipeline_mode = #tpu.pipeline_mode<synchronous>, transform_indices = @transform_2, window_bounds = array<i64: 1, 128>}, {pipeline_mode = #tpu.pipeline_mode<synchronous>, transform_indices = @transform_3, window_bounds = array<i64: 128, 1>}, {pipeline_mode = #tpu.pipeline_mode<synchronous>, transform_indices = @transform_4, window_bounds = array<i64: 1, 1>}, {transform_indices = @transform_5, window_bounds = array<i64: 104, 1>}]} {
    %c0 = arith.constant 0 : index
    %c0_0 = arith.constant 0 : index
    %c0_1 = arith.constant 0 : index
    %0 = vector.load %arg1[%c0, %c0_0, %c0_1] : memref<104x8x300xbf16, #tpu.memory_space<vmem>>, vector<104x8x300xbf16>
    %1 = arith.extf %0 : vector<104x8x300xbf16> to vector<104x8x300xf32>
    %cst = arith.constant dense<0.000000e+00> : vector<104x300xf32>
    %2 = vector.multi_reduction <add>, %1, %cst [1] : vector<104x8x300xf32> to vector<104x300xf32>
    %c0_2 = arith.constant 0 : index
    %c0_3 = arith.constant 0 : index
    %3 = vector.load %arg2[%c0_2, %c0_3] : memref<300x128xf32, #tpu.memory_space<vmem>>, vector<300x128xf32>
    %cst_4 = arith.constant dense<0.000000e+00> : vector<104x128xf32>
    %4 = tpu.matmul %2, %3, %cst_4 {dimension_numbers = #tpu.dot_dimension_numbers<[1], [0], [0], [1], [0, 0, 1, 1], [], []>} : vector<104x300xf32>, vector<300x128xf32>, vector<104x128xf32> -> vector<104x128xf32>
    %c0_5 = arith.constant 0 : index
    %c0_6 = arith.constant 0 : index
    %5 = vector.load %arg3[%c0_5, %c0_6] : memref<1x128xf32, #tpu.memory_space<vmem>>, vector<1x128xf32>
    %6 = vector.broadcast %5 : vector<1x128xf32> to vector<104x128xf32>
    %7 = arith.addf %4, %6 : vector<104x128xf32>
    %8 = math.tanh %7 : vector<104x128xf32>
    %c0_7 = arith.constant 0 : index
    %c0_8 = arith.constant 0 : index
    %9 = vector.load %arg4[%c0_7, %c0_8] : memref<128x1xf32, #tpu.memory_space<vmem>>, vector<128x1xf32>
    %cst_9 = arith.constant dense<0.000000e+00> : vector<104x1xf32>
    %10 = tpu.matmul %8, %9, %cst_9 {dimension_numbers = #tpu.dot_dimension_numbers<[1], [0], [0], [1], [0, 0, 1, 1], [], []>} : vector<104x128xf32>, vector<128x1xf32>, vector<104x1xf32> -> vector<104x1xf32>
    %c0_10 = arith.constant 0 : index
    %c0_11 = arith.constant 0 : index
    %11 = vector.load %arg5[%c0_10, %c0_11] : memref<1x1xf32, #tpu.memory_space<vmem>>, vector<1x1xf32>
    %12 = vector.broadcast %11 : vector<1x1xf32> to vector<104x1xf32>
    %13 = arith.addf %10, %12 : vector<104x1xf32>
    %14 = arith.negf %13 : vector<104x1xf32>
    %15 = math.exp %14 : vector<104x1xf32>
    %cst_12 = arith.constant 1.000000e+00 : f32
    %16 = vector.broadcast %cst_12 : f32 to vector<104x1xf32>
    %17 = arith.addf %16, %15 : vector<104x1xf32>
    %18 = arith.divf %16, %17 : vector<104x1xf32>
    %c0_13 = arith.constant 0 : index
    %c0_14 = arith.constant 0 : index
    %19 = vector.load %arg6[%c0_13, %c0_14] : memref<104x1xf32, #tpu.memory_space<vmem>>, vector<104x1xf32>
    tpu.vector_store %arg6[%c0_13, %c0_14], %18 {strides = array<i32>} : memref<104x1xf32, #tpu.memory_space<vmem>>, vector<104x1xf32>,
    return
  }
  func.func @transform_0(%arg0: i32) -> (i32, i32, i32) {
    %c0_i32 = arith.constant 0 : i32
    %c0_i32_0 = arith.constant 0 : i32
    %c0_i32_1 = arith.constant 0 : i32
    return %arg0, %c0_i32, %c0_i32_0 : i32, i32, i32
  }
  func.func @transform_1(%arg0: i32) -> (i32, i32) {
    %c0_i32 = arith.constant 0 : i32
    %c0_i32_0 = arith.constant 0 : i32
    %c0_i32_1 = arith.constant 0 : i32
    return %c0_i32, %c0_i32_0 : i32, i32
  }
  func.func @transform_2(%arg0: i32) -> (i32, i32) {
    %c0_i32 = arith.constant 0 : i32
    %c0_i32_0 = arith.constant 0 : i32
    %c0_i32_1 = arith.constant 0 : i32
    return %c0_i32, %c0_i32_0 : i32, i32
  }
  func.func @transform_3(%arg0: i32) -> (i32, i32) {
    %c0_i32 = arith.constant 0 : i32
    %c0_i32_0 = arith.constant 0 : i32
    %c0_i32_1 = arith.constant 0 : i32
    return %c0_i32, %c0_i32_0 : i32, i32
  }
  func.func @transform_4(%arg0: i32) -> (i32, i32) {
    %c0_i32 = arith.constant 0 : i32
    %c0_i32_0 = arith.constant 0 : i32
    %c0_i32_1 = arith.constant 0 : i32
    return %c0_i32, %c0_i32_0 : i32, i32
  }
  func.func @transform_5(%arg0: i32) -> (i32, i32) {
    %c0_i32 = arith.constant 0 : i32
    %c0_i32_0 = arith.constant 0 : i32
    return %arg0, %c0_i32 : i32, i32
  }
}

</mosaic_0001>

<llo_original>
// kernel: tpu_custom_call.1
$region0: #{tpu_custom_call.1}
  #allocation0 [shape = 'u32[]', space=smem, size = 0x4, offset = 0x4, fixed_abs, tag = 'smem constant byte address 0x4 - core index']
  #allocation1 [shape = 'u32[144,128]{1,0:T(1,128)}', space=vmem, size = 0x12000, scoped, tag = 'internal scratch']
  #allocation2 [shape = 'f32[1,1]{1,0:T(1,128)S(1)}', space=vmem, size = 0x200, scoped, tag = 'scoped memory for tpu_custom_call.1']
  %s0 = inlined_call_operand.hbm [shape: bf16[200,8,300], index: 0, kind: input, shape index: {}]
  %s1 = inlined_call_operand.hbm [shape: f32[300,128], index: 1, kind: input, shape index: {}]
  %s2 = inlined_call_operand.hbm [shape: f32[1,128], index: 2, kind: input, shape index: {}]
  %s3 = inlined_call_operand.vmem [shape: f32[128,1], index: 3, kind: input, shape index: {}]
  %s4 = inlined_call_operand.<no memory space> [shape: f32[1,1], index: 4, kind: input, shape index: {}]
  %s5 = inlined_call_operand.vmem [shape: f32[200,1], index: 5, kind: output, shape index: {}]
  %s6 = sld [smem:[#allocation0]]
  $region113: #{tpu_custom_call.1} parent=0
    _
  %s8 = ssub.s32 1, %s6
  %s9 = scalar_select 0, %s8, %s6
  %v10 = vstv %s4
  %11 = vst [vmem:[#allocation2] sm:$0x1] %v10
  $region1: #{tpu_custom_call.1} parent=0
    #allocation3 [shape = 'u8[1277952]{0}', space=vmem, size = 0x138000, scoped, tag = 'input window, operand 0']
    #allocation4 [shape = 's32[2]{0}', space=sflag, size = 0x8, scoped, tag = 'scoped memory for tpu_custom_call.1']
    #allocation5 [shape = 'u8[155648]{0}', space=vmem, size = 0x26000, scoped, tag = 'input window, operand 1, single buffered']
    #allocation6 [shape = 's32[1]{0}', space=sflag, size = 0x4, scoped, tag = 'scoped memory for tpu_custom_call.1']
    #allocation7 [shape = 'u8[512]{0}', space=vmem, size = 0x400, scoped, tag = 'input window, operand 2, single buffered']
    #allocation8 [shape = 'u8[106496]{0}', space=vmem, size = 0x1a000, scoped, tag = 'output window, operand 0']
    %12 = vsyncpa [#allocation4], 0
    %s13 = scalar_lea.sflag [#allocation4], 1
    %14 = vsyncpa %s13, 0
    %15 = vsyncpa [#allocation6], 0
    loop: start=0, step=1, limit=4
    $region2: #{tpu_custom_call.1} parent=1 // loop_pre_header
      _
    $region3: #{tpu_custom_call.1} parent=1 // loop_header
      %s17 = sphi 0, %s21
      %p18 = scmp.ge.s32.totalorder %s17, 4
      %s27 = sphi 0, %s29
      %s30 = sphi 0, %s27
      %s31 = sphi 0, %s30
      %s47 = sphi 0, %s31
      %s51 = sphi 0, %s51
      %s53 = sphi 0, %s51
      %s54 = sphi 0, %s53
      %s68 = sphi 0, %s54
      %s72 = sphi 0, %s72
      %s74 = sphi 0, %s72
      %s75 = sphi 0, %s74
      %s89 = sphi 0, %s75
      %s93 = sphi 0, %s93
      %s95 = sphi 0, %s93
      %s96 = sphi 0, %s95
      %s110 = sphi 0, %s96
      %s114 = sphi 0, %s114
      %s116 = sphi 0, %s114
      %s117 = sphi 0, %s116
      %s131 = sphi 0, %s117
      %s137 = sphi 0, %s139
      %s140 = sphi 0, %s137
      %s141 = sphi 0, %s140
      %s157 = sphi 0, %s141
    $region4: #{tpu_custom_call.1} parent=1 // loop_header_branch
      %20 = sbr.rel (%p18) target = $region8
    $region5: #{tpu_custom_call.1} parent=1 // loop_body
      %s22 = ssub.s32 %s17, 1
      %s23 = ssub.s32 %s17, 2
      %s24 = sadd.s32 %s17, 1
      %s25 = ssub.s32 %s17, %s24
      %p26 = scmp.eq.s32.totalorder %s25, 0
      %s28 = sadd.s32 %s27, 1
      %s29 = scalar_select %p26, %s27, %s28
      %p32 = pneg %p26
      %p33 = scmp.eq.s32.totalorder %s17, 1
      %p34 = por %p32, %p33
      %p35 = scmp.ne.s32.totalorder %s27, %s30
      %p36 = scmp.eq.s32.totalorder %s17, 0
      %p37 = por %p35, %p36
      %p38 = scmp.ne.s32.totalorder %s27, %s30
      %p39 = scmp.eq.s32.totalorder %s22, 1
      %p40 = por %p38, %p39
      %p41 = scmp.ne.s32.totalorder %s30, %s31
      %p42 = scmp.eq.s32.totalorder %s22, 0
      %p43 = por %p41, %p42
      %p44 = scmp.ne.s32.totalorder %s30, %s31
      %p45 = scmp.eq.s32.totalorder %s23, 1
      %p46 = por %p44, %p45
      %p48 = scmp.ne.s32.totalorder %s31, %s47
      %p49 = scmp.eq.s32.totalorder %s23, 0
      %p50 = por %p48, %p49
      %s52 = sadd.s32 %s51, 1
      %p55 = scmp.eq.s32.totalorder %s17, 1
      %p56 = scmp.ne.s32.totalorder %s51, %s53
      %p57 = scmp.eq.s32.totalorder %s17, 0
      %p58 = por %p56, %p57
      %p59 = scmp.ne.s32.totalorder %s51, %s53
      %p60 = scmp.eq.s32.totalorder %s22, 1
      %p61 = por %p59, %p60
      %p62 = scmp.ne.s32.totalorder %s53, %s54
      %p63 = scmp.eq.s32.totalorder %s22, 0
      %p64 = por %p62, %p63
      %p65 = scmp.ne.s32.totalorder %s53, %s54
      %p66 = scmp.eq.s32.totalorder %s23, 1
      %p67 = por %p65, %p66
      %p69 = scmp.ne.s32.totalorder %s54, %s68
      %p70 = scmp.eq.s32.totalorder %s23, 0
      %p71 = por %p69, %p70
      %s73 = sadd.s32 %s72, 1
      %p76 = scmp.eq.s32.totalorder %s17, 1
      %p77 = scmp.ne.s32.totalorder %s72, %s74
      %p78 = scmp.eq.s32.totalorder %s17, 0
      %p79 = por %p77, %p78
      %p80 = scmp.ne.s32.totalorder %s72, %s74
      %p81 = scmp.eq.s32.totalorder %s22, 1
      %p82 = por %p80, %p81
      %p83 = scmp.ne.s32.totalorder %s74, %s75
      %p84 = scmp.eq.s32.totalorder %s22, 0
      %p85 = por %p83, %p84
      %p86 = scmp.ne.s32.totalorder %s74, %s75
      %p87 = scmp.eq.s32.totalorder %s23, 1
      %p88 = por %p86, %p87
      %p90 = scmp.ne.s32.totalorder %s75, %s89
      %p91 = scmp.eq.s32.totalorder %s23, 0
      %p92 = por %p90, %p91
      %s94 = sadd.s32 %s93, 1
      %p97 = scmp.eq.s32.totalorder %s17, 1
      %p98 = scmp.ne.s32.totalorder %s93, %s95
      %p99 = scmp.eq.s32.totalorder %s17, 0
      %p100 = por %p98, %p99
      %p101 = scmp.ne.s32.totalorder %s93, %s95
      %p102 = scmp.eq.s32.totalorder %s22, 1
      %p103 = por %p101, %p102
      %p104 = scmp.ne.s32.totalorder %s95, %s96
      %p105 = scmp.eq.s32.totalorder %s22, 0
      %p106 = por %p104, %p105
      %p107 = scmp.ne.s32.totalorder %s95, %s96
      %p108 = scmp.eq.s32.totalorder %s23, 1
      %p109 = por %p107, %p108
      %p111 = scmp.ne.s32.totalorder %s96, %s110
      %p112 = scmp.eq.s32.totalorder %s23, 0
      %p113 = por %p111, %p112
      %s115 = sadd.s32 %s114, 1
      %p118 = scmp.eq.s32.totalorder %s17, 1
      %p119 = scmp.ne.s32.totalorder %s114, %s116
      %p120 = scmp.eq.s32.totalorder %s17, 0
      %p121 = por %p119, %p120
      %p122 = scmp.ne.s32.totalorder %s114, %s116
      %p123 = scmp.eq.s32.totalorder %s22, 1
      %p124 = por %p122, %p123
      %p125 = scmp.ne.s32.totalorder %s116, %s117
      %p126 = scmp.eq.s32.totalorder %s22, 0
      %p127 = por %p125, %p126
      %p128 = scmp.ne.s32.totalorder %s116, %s117
      %p129 = scmp.eq.s32.totalorder %s23, 1
      %p130 = por %p128, %p129
      %p132 = scmp.ne.s32.totalorder %s117, %s131
      %p133 = scmp.eq.s32.totalorder %s23, 0
      %p134 = por %p132, %p133
      %s135 = ssub.s32 %s17, %s24
      %p136 = scmp.eq.s32.totalorder %s135, 0
      %s138 = sadd.s32 %s137, 1
      %s139 = scalar_select %p136, %s137, %s138
      %p142 = pneg %p136
      %p143 = scmp.eq.s32.totalorder %s17, 1
      %p144 = por %p142, %p143
      %p145 = scmp.ne.s32.totalorder %s137, %s140
      %p146 = scmp.eq.s32.totalorder %s17, 0
      %p147 = por %p145, %p146
      %p148 = scmp.ne.s32.totalorder %s137, %s140
      %p149 = scmp.eq.s32.totalorder %s22, 1
      %p150 = por %p148, %p149
      %p151 = scmp.ne.s32.totalorder %s140, %s141
      %p152 = scmp.eq.s32.totalorder %s22, 0
      %p153 = por %p151, %p152
      %p154 = scmp.ne.s32.totalorder %s140, %s141
      %p155 = scmp.eq.s32.totalorder %s23, 1
      %p156 = por %p154, %p155
      %p158 = scmp.ne.s32.totalorder %s141, %s157
      %p159 = scmp.eq.s32.totalorder %s23, 0
      %p160 = por %p158, %p159
      %p161 = scmp.le.s32.totalorder 1, %s17
      %p162 = scmp.lt.s32.totalorder %s17, 3
      %p163 = pnand %p161, %p162
      %p164 = pneg %p163
      // Predicated region
      $region9: #{tpu_custom_call.1} parent=5 // pred_check
        _
      $region10: #{tpu_custom_call.1} parent=5 // pred_check_branch
        %166 = sbr.rel (%p163) target = $region12
      $region11: #{tpu_custom_call.1} parent=5 // pred_region
        %s167 = ssub.s32 %s17, 1
        // Predicated region
        $region13: #{tpu_custom_call.1} parent=11 // pred_check
          %p168 = pneg %p64
        $region14: #{tpu_custom_call.1} parent=11 // pred_check_branch
          %170 = sbr.rel (%p168) target = $region16
        $region15: #{tpu_custom_call.1} parent=11 // pred_region
          %s172 = ssub.s32 4864, 4864
          %173 = vsyncadd [#allocation6], %s172
          %s174 = sshll.u32 [#allocation5], 4
          %s175 = int_to_ptr.vmem [resolvable:$true] %s174
          %180 = dma.hbm_to_vmem [thread:$0]  %s1, 4864, %s175, [#allocation6], 128, 128, 8
        $region16: #{tpu_custom_call.1} parent=11 // pred_fallthru
          _
        // Predicated region
        $region17: #{tpu_custom_call.1} parent=11 // pred_check
          %p181 = pneg %p85
        $region18: #{tpu_custom_call.1} parent=11 // pred_check_branch
          %183 = sbr.rel (%p181) target = $region20
        $region19: #{tpu_custom_call.1} parent=11 // pred_region
          %s185 = ssub.s32 16, 16
          %186 = vsyncadd [#allocation6], %s185
          %s188 = sshll.u32 [#allocation7], 4
          %s189 = int_to_ptr.vmem [resolvable:$true] %s188
          %191 = dma.hbm_to_vmem [thread:$0]  %s2, 16, %s189, [#allocation6]
        $region20: #{tpu_custom_call.1} parent=11 // pred_fallthru
          _
        // Predicated region
        $region21: #{tpu_custom_call.1} parent=11 // pred_check
          %p192 = pneg %p106
        $region22: #{tpu_custom_call.1} parent=11 // pred_check_branch
          %194 = sbr.rel (%p192) target = $region24
        $region23: #{tpu_custom_call.1} parent=11 // pred_region
          _
        $region24: #{tpu_custom_call.1} parent=11 // pred_fallthru
          _
        // Predicated region
        $region25: #{tpu_custom_call.1} parent=11 // pred_check
          %p195 = pneg %p127
        $region26: #{tpu_custom_call.1} parent=11 // pred_check_branch
          %197 = sbr.rel (%p195) target = $region28
        $region27: #{tpu_custom_call.1} parent=11 // pred_region
          _
        $region28: #{tpu_custom_call.1} parent=11 // pred_fallthru
          _
      $region12: #{tpu_custom_call.1} parent=5 // pred_fallthru
        _
      %p198 = scmp.lt.s32.totalorder %s17, 2
      // Predicated region
      $region29: #{tpu_custom_call.1} parent=5 // pred_check
        %p199 = pneg %p198
      $region30: #{tpu_custom_call.1} parent=5 // pred_check_branch
        %201 = sbr.rel (%p199) target = $region32
      $region31: #{tpu_custom_call.1} parent=5 // pred_region
        // Predicated region
        $region33: #{tpu_custom_call.1} parent=31 // pred_check
          %p202 = pneg %p37
        $region34: #{tpu_custom_call.1} parent=31 // pred_check_branch
          %204 = sbr.rel (%p202) target = $region36
        $region35: #{tpu_custom_call.1} parent=31 // pred_region
          %s205 = sand.u32 %s27, 1
          %s206 = scalar_lea.sflag [#allocation4], %s205
          %s207 = sand.u32 %s27, 1
          %s208 = smul.addr %s207, 1248
          %s209 = scalar_lea.vmem [#allocation3], %s208
          %s210 = smul.u32 104, %s17
          %s211 = ssub.s32 200, %s210
          %p212 = scmp.lt.s32.totalorder %s211, 104
          %s213 = scalar_select %p212, %s211, 104
          %s214 = smul.u32 64, %s213
          %s215 = smul.u32 %s214, 3
          %s217 = ssub.s32 19968, %s215
          %218 = vsyncadd %s206, %s217
          %p219 = scmp.ne.s32.totalorder 0, %s215
          %s220 = smul.addr %s210, 3
          %s221 = smul.addr %s220, 64
          %s222 = scalar_lea.hbm %s0, %s221
          %s223 = smul.u32 12, %s213
          %s224 = sshll.u32 %s209, 4
          %s225 = int_to_ptr.vmem [resolvable:$true] %s224
          %s226 = sshll.u32 %s223, 4
          %230 = dma.hbm_to_vmem [thread:$0]  (%p219), %s222, %s226, %s225, %s206, 192, 192, 12
        $region36: #{tpu_custom_call.1} parent=31 // pred_fallthru
          _
      $region32: #{tpu_custom_call.1} parent=5 // pred_fallthru
        _
      %p231 = scmp.le.s32.totalorder 1, %s17
      %p232 = scmp.lt.s32.totalorder %s17, 3
      %p233 = pnand %p231, %p232
      %p234 = pneg %p233
      // Predicated region
      $region37: #{tpu_custom_call.1} parent=5 // pred_check
        _
      $region38: #{tpu_custom_call.1} parent=5 // pred_check_branch
        %236 = sbr.rel (%p233) target = $region40
      $region39: #{tpu_custom_call.1} parent=5 // pred_region
        %s237 = ssub.s32 %s17, 1
        %s238 = sand.u32 %s30, 1
        %s239 = scalar_lea.sflag [#allocation4], %s238
        %s240 = sand.u32 %s30, 1
        %s241 = smul.addr %s240, 1248
        %s242 = scalar_lea.vmem [#allocation3], %s241
        // Predicated region
        $region41: #{tpu_custom_call.1} parent=39 // pred_check
          %p243 = pneg %p43
        $region42: #{tpu_custom_call.1} parent=39 // pred_check_branch
          %245 = sbr.rel (%p243) target = $region44
        $region43: #{tpu_custom_call.1} parent=39 // pred_region
          %246 = dma.done %s239, 19968
        $region44: #{tpu_custom_call.1} parent=39 // pred_fallthru
          _
        // Predicated region
        $region45: #{tpu_custom_call.1} parent=39 // pred_check
          %p247 = pneg %p64
        $region46: #{tpu_custom_call.1} parent=39 // pred_check_branch
          %249 = sbr.rel (%p247) target = $region48
        $region47: #{tpu_custom_call.1} parent=39 // pred_region
          %250 = dma.done [#allocation6], 4864
        $region48: #{tpu_custom_call.1} parent=39 // pred_fallthru
          _
        // Predicated region
        $region49: #{tpu_custom_call.1} parent=39 // pred_check
          %p251 = pneg %p85
        $region50: #{tpu_custom_call.1} parent=39 // pred_check_branch
          %253 = sbr.rel (%p251) target = $region52
        $region51: #{tpu_custom_call.1} parent=39 // pred_region
          %254 = dma.done [#allocation6], 16
        $region52: #{tpu_custom_call.1} parent=39 // pred_fallthru
          _
        %s255 = sand.u32 %s30, 1
        %s256 = scalar_lea.sflag [#allocation4], %s255
        %s257 = sand.u32 %s30, 1
        %s258 = smul.addr %s257, 1248
        %s259 = scalar_lea.vmem [#allocation3], %s258
        %p260 = pneg %p43
        %p261 = pneg %p40
        %p262 = pneg %p64
        %p263 = pneg %p61
        %p264 = pneg %p85
        %p265 = pneg %p82
        %p266 = pneg %p106
        %p267 = pneg %p103
        %p268 = pneg %p127
        %p269 = pneg %p124
        %p270 = pneg %p153
        %p271 = pneg %p150
        %s272 = sand.u32 %s140, 1
        %s273 = sand.u32 %s140, 1
        %s274 = smul.addr %s273, 104
        %s275 = scalar_lea.vmem [#allocation8], %s274
        %s276 = smul.u32 104, %s22
        %s277 = ssub.s32 200, %s276
        %p278 = scmp.lt.s32.totalorder %s277, 104
        %s279 = scalar_select %p278, %s277, 104
        %s280 = smul.u32 64, %s279
        %s281 = smul.u32 %s280, 3
        %s282 = smul.u32 13, %s22
        %s283 = ssub.s32 25, %s282
        %p284 = scmp.lt.s32.totalorder %s283, 13
        %s285 = scalar_select %p284, %s283, 13
        %s286 = smul.u32 128, %s285
        %v287 = vld [vmem:[%s242] sm:$0xff]
        %v288 = vld [vmem:[%s242 + $0x8] sm:$0xf]
        %v289 = vld [vmem:[%s242 + $0xc] sm:$0xff]
        %v290 = vld [vmem:[%s242 + $0x14] sm:$0xf]
        %v291 = vld [vmem:[%s242 + $0x18] sm:$0xff]
        %v292 = vld [vmem:[%s242 + $0x20] sm:$0xf]
        %v293 = vld [vmem:[%s242 + $0x24] sm:$0xff]
        %v294 = vld [vmem:[%s242 + $0x2c] sm:$0xf]
        %v295 = vld [vmem:[%s242 + $0x30] sm:$0xff]
        %v296 = vld [vmem:[%s242 + $0x38] sm:$0xf]
        %v297 = vld [vmem:[%s242 + $0x3c] sm:$0xff]
        %v298 = vld [vmem:[%s242 + $0x44] sm:$0xf]
        %v299 = vld [vmem:[%s242 + $0x48] sm:$0xff]
        %v300 = vld [vmem:[%s242 + $0x50] sm:$0xf]
        %v301 = vld [vmem:[%s242 + $0x54] sm:$0xff]
        %v302 = vld [vmem:[%s242 + $0x5c] sm:$0xf]
        %v303 = vld [vmem:[%s242 + $0x60] sm:$0xff]
        %v304 = vld [vmem:[%s242 + $0x68] sm:$0xf]
        %v305 = vld [vmem:[%s242 + $0x6c] sm:$0xff]
        %v306 = vld [vmem:[%s242 + $0x74] sm:$0xf]
        %v307 = vld [vmem:[%s242 + $0x78] sm:$0xff]
        %v308 = vld [vmem:[%s242 + $0x80] sm:$0xf]
        %v309 = vld [vmem:[%s242 + $0x84] sm:$0xff]
        %v310 = vld [vmem:[%s242 + $0x8c] sm:$0xf]
        %v311 = vld [vmem:[%s242 + $0x90] sm:$0xff]
        %v312 = vld [vmem:[%s242 + $0x98] sm:$0xf]
        %v313 = vld [vmem:[%s242 + $0x9c] sm:$0xff]
        %v314 = vld [vmem:[%s242 + $0xa4] sm:$0xf]
        %v315 = vld [vmem:[%s242 + $0xa8] sm:$0xff]
        %v316 = vld [vmem:[%s242 + $0xb0] sm:$0xf]
        %v317 = vld [vmem:[%s242 + $0xb4] sm:$0xff]
        %v318 = vld [vmem:[%s242 + $0xbc] sm:$0xf]
        %v319 = vld [vmem:[%s242 + $0xc0] sm:$0xff]
        %v320 = vld [vmem:[%s242 + $0xc8] sm:$0xf]
        %v321 = vld [vmem:[%s242 + $0xcc] sm:$0xff]
        %v322 = vld [vmem:[%s242 + $0xd4] sm:$0xf]
        %v323 = vld [vmem:[%s242 + $0xd8] sm:$0xff]
        %v324 = vld [vmem:[%s242 + $0xe0] sm:$0xf]
        %v325 = vld [vmem:[%s242 + $0xe4] sm:$0xff]
        %v326 = vld [vmem:[%s242 + $0xec] sm:$0xf]
        %v327 = vld [vmem:[%s242 + $0xf0] sm:$0xff]
        %v328 = vld [vmem:[%s242 + $0xf8] sm:$0xf]
        %v329 = vld [vmem:[%s242 + $0xfc] sm:$0xff]
        %v330 = vld [vmem:[%s242 + $0x104] sm:$0xf]
        %v331 = vld [vmem:[%s242 + $0x108] sm:$0xff]
        %v332 = vld [vmem:[%s242 + $0x110] sm:$0xf]
        %v333 = vld [vmem:[%s242 + $0x114] sm:$0xff]
        %v334 = vld [vmem:[%s242 + $0x11c] sm:$0xf]
        %v335 = vld [vmem:[%s242 + $0x120] sm:$0xff]
        %v336 = vld [vmem:[%s242 + $0x128] sm:$0xf]
        %v337 = vld [vmem:[%s242 + $0x12c] sm:$0xff]
        %v338 = vld [vmem:[%s242 + $0x134] sm:$0xf]
        %v339 = vld [vmem:[%s242 + $0x138] sm:$0xff]
        %v340 = vld [vmem:[%s242 + $0x140] sm:$0xf]
        %v341 = vld [vmem:[%s242 + $0x144] sm:$0xff]
        %v342 = vld [vmem:[%s242 + $0x14c] sm:$0xf]
        %v343 = vld [vmem:[%s242 + $0x150] sm:$0xff]
        %v344 = vld [vmem:[%s242 + $0x158] sm:$0xf]
        %v345 = vld [vmem:[%s242 + $0x15c] sm:$0xff]
        %v346 = vld [vmem:[%s242 + $0x164] sm:$0xf]
        %v347 = vld [vmem:[%s242 + $0x168] sm:$0xff]
        %v348 = vld [vmem:[%s242 + $0x170] sm:$0xf]
        %v349 = vld [vmem:[%s242 + $0x174] sm:$0xff]
        %v350 = vld [vmem:[%s242 + $0x17c] sm:$0xf]
        %v351 = vld [vmem:[%s242 + $0x180] sm:$0xff]
        %v352 = vld [vmem:[%s242 + $0x188] sm:$0xf]
        %v353 = vld [vmem:[%s242 + $0x18c] sm:$0xff]
        %v354 = vld [vmem:[%s242 + $0x194] sm:$0xf]
        %v355 = vld [vmem:[%s242 + $0x198] sm:$0xff]
        %v356 = vld [vmem:[%s242 + $0x1a0] sm:$0xf]
        %v357 = vld [vmem:[%s242 + $0x1a4] sm:$0xff]
        %v358 = vld [vmem:[%s242 + $0x1ac] sm:$0xf]
        %v359 = vld [vmem:[%s242 + $0x1b0] sm:$0xff]
        %v360 = vld [vmem:[%s242 + $0x1b8] sm:$0xf]
        %v361 = vld [vmem:[%s242 + $0x1bc] sm:$0xff]
        %v362 = vld [vmem:[%s242 + $0x1c4] sm:$0xf]
        %v363 = vld [vmem:[%s242 + $0x1c8] sm:$0xff]
        %v364 = vld [vmem:[%s242 + $0x1d0] sm:$0xf]
        %v365 = vld [vmem:[%s242 + $0x1d4] sm:$0xff]
        %v366 = vld [vmem:[%s242 + $0x1dc] sm:$0xf]
        %v367 = vld [vmem:[%s242 + $0x1e0] sm:$0xff]
        %v368 = vld [vmem:[%s242 + $0x1e8] sm:$0xf]
        %v369 = vld [vmem:[%s242 + $0x1ec] sm:$0xff]
        %v370 = vld [vmem:[%s242 + $0x1f4] sm:$0xf]
        %v371 = vld [vmem:[%s242 + $0x1f8] sm:$0xff]
        %v372 = vld [vmem:[%s242 + $0x200] sm:$0xf]
        %v373 = vld [vmem:[%s242 + $0x204] sm:$0xff]
        %v374 = vld [vmem:[%s242 + $0x20c] sm:$0xf]
        %v375 = vld [vmem:[%s242 + $0x210] sm:$0xff]
        %v376 = vld [vmem:[%s242 + $0x218] sm:$0xf]
        %v377 = vld [vmem:[%s242 + $0x21c] sm:$0xff]
        %v378 = vld [vmem:[%s242 + $0x224] sm:$0xf]
        %v379 = vld [vmem:[%s242 + $0x228] sm:$0xff]
        %v380 = vld [vmem:[%s242 + $0x230] sm:$0xf]
        %v381 = vld [vmem:[%s242 + $0x234] sm:$0xff]
        %v382 = vld [vmem:[%s242 + $0x23c] sm:$0xf]
        %v383 = vld [vmem:[%s242 + $0x240] sm:$0xff]
        %v384 = vld [vmem:[%s242 + $0x248] sm:$0xf]
        %v385 = vld [vmem:[%s242 + $0x24c] sm:$0xff]
        %v386 = vld [vmem:[%s242 + $0x254] sm:$0xf]
        %v387 = vld [vmem:[%s242 + $0x258] sm:$0xff]
        %v388 = vld [vmem:[%s242 + $0x260] sm:$0xf]
        %v389 = vld [vmem:[%s242 + $0x264] sm:$0xff]
        %v390 = vld [vmem:[%s242 + $0x26c] sm:$0xf]
        %v391 = vld [vmem:[%s242 + $0x270] sm:$0xff]
        %v392 = vld [vmem:[%s242 + $0x278] sm:$0xf]
        %v393 = vld [vmem:[%s242 + $0x27c] sm:$0xff]
        %v394 = vld [vmem:[%s242 + $0x284] sm:$0xf]
        %v395 = vld [vmem:[%s242 + $0x288] sm:$0xff]
        %v396 = vld [vmem:[%s242 + $0x290] sm:$0xf]
        %v397 = vld [vmem:[%s242 + $0x294] sm:$0xff]
        %v398 = vld [vmem:[%s242 + $0x29c] sm:$0xf]
        %v399 = vld [vmem:[%s242 + $0x2a0] sm:$0xff]
        %v400 = vld [vmem:[%s242 + $0x2a8] sm:$0xf]
        %v401 = vld [vmem:[%s242 + $0x2ac] sm:$0xff]
        %v402 = vld [vmem:[%s242 + $0x2b4] sm:$0xf]
        %v403 = vld [vmem:[%s242 + $0x2b8] sm:$0xff]
        %v404 = vld [vmem:[%s242 + $0x2c0] sm:$0xf]
        %v405 = vld [vmem:[%s242 + $0x2c4] sm:$0xff]
        %v406 = vld [vmem:[%s242 + $0x2cc] sm:$0xf]
        %v407 = vld [vmem:[%s242 + $0x2d0] sm:$0xff]
        %v408 = vld [vmem:[%s242 + $0x2d8] sm:$0xf]
        %v409 = vld [vmem:[%s242 + $0x2dc] sm:$0xff]
        %v410 = vld [vmem:[%s242 + $0x2e4] sm:$0xf]
        %v411 = vld [vmem:[%s242 + $0x2e8] sm:$0xff]
        %v412 = vld [vmem:[%s242 + $0x2f0] sm:$0xf]
        %v413 = vld [vmem:[%s242 + $0x2f4] sm:$0xff]
        %v414 = vld [vmem:[%s242 + $0x2fc] sm:$0xf]
        %v415 = vld [vmem:[%s242 + $0x300] sm:$0xff]
        %v416 = vld [vmem:[%s242 + $0x308] sm:$0xf]
        %v417 = vld [vmem:[%s242 + $0x30c] sm:$0xff]
        %v418 = vld [vmem:[%s242 + $0x314] sm:$0xf]
        %v419 = vld [vmem:[%s242 + $0x318] sm:$0xff]
        %v420 = vld [vmem:[%s242 + $0x320] sm:$0xf]
        %v421 = vld [vmem:[%s242 + $0x324] sm:$0xff]
        %v422 = vld [vmem:[%s242 + $0x32c] sm:$0xf]
        %v423 = vld [vmem:[%s242 + $0x330] sm:$0xff]
        %v424 = vld [vmem:[%s242 + $0x338] sm:$0xf]
        %v425 = vld [vmem:[%s242 + $0x33c] sm:$0xff]
        %v426 = vld [vmem:[%s242 + $0x344] sm:$0xf]
        %v427 = vld [vmem:[%s242 + $0x348] sm:$0xff]
        %v428 = vld [vmem:[%s242 + $0x350] sm:$0xf]
        %v429 = vld [vmem:[%s242 + $0x354] sm:$0xff]
        %v430 = vld [vmem:[%s242 + $0x35c] sm:$0xf]
        %v431 = vld [vmem:[%s242 + $0x360] sm:$0xff]
        %v432 = vld [vmem:[%s242 + $0x368] sm:$0xf]
        %v433 = vld [vmem:[%s242 + $0x36c] sm:$0xff]
        %v434 = vld [vmem:[%s242 + $0x374] sm:$0xf]
        %v435 = vld [vmem:[%s242 + $0x378] sm:$0xff]
        %v436 = vld [vmem:[%s242 + $0x380] sm:$0xf]
        %v437 = vld [vmem:[%s242 + $0x384] sm:$0xff]
        %v438 = vld [vmem:[%s242 + $0x38c] sm:$0xf]
        %v439 = vld [vmem:[%s242 + $0x390] sm:$0xff]
        %v440 = vld [vmem:[%s242 + $0x398] sm:$0xf]
        %v441 = vld [vmem:[%s242 + $0x39c] sm:$0xff]
        %v442 = vld [vmem:[%s242 + $0x3a4] sm:$0xf]
        %v443 = vld [vmem:[%s242 + $0x3a8] sm:$0xff]
        %v444 = vld [vmem:[%s242 + $0x3b0] sm:$0xf]
        %v445 = vld [vmem:[%s242 + $0x3b4] sm:$0xff]
        %v446 = vld [vmem:[%s242 + $0x3bc] sm:$0xf]
        %v447 = vld [vmem:[%s242 + $0x3c0] sm:$0xff]
        %v448 = vld [vmem:[%s242 + $0x3c8] sm:$0xf]
        %v449 = vld [vmem:[%s242 + $0x3cc] sm:$0xff]
        %v450 = vld [vmem:[%s242 + $0x3d4] sm:$0xf]
        %v451 = vld [vmem:[%s242 + $0x3d8] sm:$0xff]
        %v452 = vld [vmem:[%s242 + $0x3e0] sm:$0xf]
        %v453 = vld [vmem:[%s242 + $0x3e4] sm:$0xff]
        %v454 = vld [vmem:[%s242 + $0x3ec] sm:$0xf]
        %v455 = vld [vmem:[%s242 + $0x3f0] sm:$0xff]
        %v456 = vld [vmem:[%s242 + $0x3f8] sm:$0xf]
        %v457 = vld [vmem:[%s242 + $0x3fc] sm:$0xff]
        %v458 = vld [vmem:[%s242 + $0x404] sm:$0xf]
        %v459 = vld [vmem:[%s242 + $0x408] sm:$0xff]
        %v460 = vld [vmem:[%s242 + $0x410] sm:$0xf]
        %v461 = vld [vmem:[%s242 + $0x414] sm:$0xff]
        %v462 = vld [vmem:[%s242 + $0x41c] sm:$0xf]
        %v463 = vld [vmem:[%s242 + $0x420] sm:$0xff]
        %v464 = vld [vmem:[%s242 + $0x428] sm:$0xf]
        %v465 = vld [vmem:[%s242 + $0x42c] sm:$0xff]
        %v466 = vld [vmem:[%s242 + $0x434] sm:$0xf]
        %v467 = vld [vmem:[%s242 + $0x438] sm:$0xff]
        %v468 = vld [vmem:[%s242 + $0x440] sm:$0xf]
        %v469 = vld [vmem:[%s242 + $0x444] sm:$0xff]
        %v470 = vld [vmem:[%s242 + $0x44c] sm:$0xf]
        %v471 = vld [vmem:[%s242 + $0x450] sm:$0xff]
        %v472 = vld [vmem:[%s242 + $0x458] sm:$0xf]
        %v473 = vld [vmem:[%s242 + $0x45c] sm:$0xff]
        %v474 = vld [vmem:[%s242 + $0x464] sm:$0xf]
        %v475 = vld [vmem:[%s242 + $0x468] sm:$0xff]
        %v476 = vld [vmem:[%s242 + $0x470] sm:$0xf]
        %v477 = vld [vmem:[%s242 + $0x474] sm:$0xff]
        %v478 = vld [vmem:[%s242 + $0x47c] sm:$0xf]
        %v479 = vld [vmem:[%s242 + $0x480] sm:$0xff]
        %v480 = vld [vmem:[%s242 + $0x488] sm:$0xf]
        %v481 = vld [vmem:[%s242 + $0x48c] sm:$0xff]
        %v482 = vld [vmem:[%s242 + $0x494] sm:$0xf]
        %v483 = vld [vmem:[%s242 + $0x498] sm:$0xff]
        %v484 = vld [vmem:[%s242 + $0x4a0] sm:$0xf]
        %v485 = vld [vmem:[%s242 + $0x4a4] sm:$0xff]
        %v486 = vld [vmem:[%s242 + $0x4ac] sm:$0xf]
        %v487 = vld [vmem:[%s242 + $0x4b0] sm:$0xff]
        %v488 = vld [vmem:[%s242 + $0x4b8] sm:$0xf]
        %v489 = vld [vmem:[%s242 + $0x4bc] sm:$0xff]
        %v490 = vld [vmem:[%s242 + $0x4c4] sm:$0xf]
        %v491 = vld [vmem:[%s242 + $0x4c8] sm:$0xff]
        %v492 = vld [vmem:[%s242 + $0x4d0] sm:$0xf]
        %v493 = vld [vmem:[%s242 + $0x4d4] sm:$0xff]
        %v494 = vld [vmem:[%s242 + $0x4dc] sm:$0xf]
        %v495 = vunpack.c.l.bf16 %v287
        %v496 = vunpack.c.h.bf16 %v287
        %v497 = vunpack.c.l.bf16 %v288
        %v498 = vunpack.c.l.bf16 %v289
        %v499 = vunpack.c.h.bf16 %v289
        %v500 = vunpack.c.l.bf16 %v290
        %v501 = vunpack.c.l.bf16 %v291
        %v502 = vunpack.c.h.bf16 %v291
        %v503 = vunpack.c.l.bf16 %v292
        %v504 = vunpack.c.l.bf16 %v293
        %v505 = vunpack.c.h.bf16 %v293
        %v506 = vunpack.c.l.bf16 %v294
        %v507 = vunpack.c.l.bf16 %v295
        %v508 = vunpack.c.h.bf16 %v295
        %v509 = vunpack.c.l.bf16 %v296
        %v510 = vunpack.c.l.bf16 %v297
        %v511 = vunpack.c.h.bf16 %v297
        %v512 = vunpack.c.l.bf16 %v298
        %v513 = vunpack.c.l.bf16 %v299
        %v514 = vunpack.c.h.bf16 %v299
        %v515 = vunpack.c.l.bf16 %v300
        %v516 = vunpack.c.l.bf16 %v301
        %v517 = vunpack.c.h.bf16 %v301
        %v518 = vunpack.c.l.bf16 %v302
        %v519 = vunpack.c.l.bf16 %v303
        %v520 = vunpack.c.h.bf16 %v303
        %v521 = vunpack.c.l.bf16 %v304
        %v522 = vunpack.c.l.bf16 %v305
        %v523 = vunpack.c.h.bf16 %v305
        %v524 = vunpack.c.l.bf16 %v306
        %v525 = vunpack.c.l.bf16 %v307
        %v526 = vunpack.c.h.bf16 %v307
        %v527 = vunpack.c.l.bf16 %v308
        %v528 = vunpack.c.l.bf16 %v309
        %v529 = vunpack.c.h.bf16 %v309
        %v530 = vunpack.c.l.bf16 %v310
        %v531 = vunpack.c.l.bf16 %v311
        %v532 = vunpack.c.h.bf16 %v311
        %v533 = vunpack.c.l.bf16 %v312
        %v534 = vunpack.c.l.bf16 %v313
        %v535 = vunpack.c.h.bf16 %v313
        %v536 = vunpack.c.l.bf16 %v314
        %v537 = vunpack.c.l.bf16 %v315
        %v538 = vunpack.c.h.bf16 %v315
        %v539 = vunpack.c.l.bf16 %v316
        %v540 = vunpack.c.l.bf16 %v317
        %v541 = vunpack.c.h.bf16 %v317
        %v542 = vunpack.c.l.bf16 %v318
        %v543 = vunpack.c.l.bf16 %v319
        %v544 = vunpack.c.h.bf16 %v319
        %v545 = vunpack.c.l.bf16 %v320
        %v546 = vunpack.c.l.bf16 %v321
        %v547 = vunpack.c.h.bf16 %v321
        %v548 = vunpack.c.l.bf16 %v322
        %v549 = vunpack.c.l.bf16 %v323
        %v550 = vunpack.c.h.bf16 %v323
        %v551 = vunpack.c.l.bf16 %v324
        %v552 = vunpack.c.l.bf16 %v325
        %v553 = vunpack.c.h.bf16 %v325
        %v554 = vunpack.c.l.bf16 %v326
        %v555 = vunpack.c.l.bf16 %v327
        %v556 = vunpack.c.h.bf16 %v327
        %v557 = vunpack.c.l.bf16 %v328
        %v558 = vunpack.c.l.bf16 %v329
        %v559 = vunpack.c.h.bf16 %v329
        %v560 = vunpack.c.l.bf16 %v330
        %v561 = vunpack.c.l.bf16 %v331
        %v562 = vunpack.c.h.bf16 %v331
        %v563 = vunpack.c.l.bf16 %v332
        %v564 = vunpack.c.l.bf16 %v333
        %v565 = vunpack.c.h.bf16 %v333
        %v566 = vunpack.c.l.bf16 %v334
        %v567 = vunpack.c.l.bf16 %v335
        %v568 = vunpack.c.h.bf16 %v335
        %v569 = vunpack.c.l.bf16 %v336
        %v570 = vunpack.c.l.bf16 %v337
        %v571 = vunpack.c.h.bf16 %v337
        %v572 = vunpack.c.l.bf16 %v338
        %v573 = vunpack.c.l.bf16 %v339
        %v574 = vunpack.c.h.bf16 %v339
        %v575 = vunpack.c.l.bf16 %v340
        %v576 = vunpack.c.l.bf16 %v341
        %v577 = vunpack.c.h.bf16 %v341
        %v578 = vunpack.c.l.bf16 %v342
        %v579 = vunpack.c.l.bf16 %v343
        %v580 = vunpack.c.h.bf16 %v343
        %v581 = vunpack.c.l.bf16 %v344
        %v582 = vunpack.c.l.bf16 %v345
        %v583 = vunpack.c.h.bf16 %v345
        %v584 = vunpack.c.l.bf16 %v346
        %v585 = vunpack.c.l.bf16 %v347
        %v586 = vunpack.c.h.bf16 %v347
        %v587 = vunpack.c.l.bf16 %v348
        %v588 = vunpack.c.l.bf16 %v349
        %v589 = vunpack.c.h.bf16 %v349
        %v590 = vunpack.c.l.bf16 %v350
        %v591 = vunpack.c.l.bf16 %v351
        %v592 = vunpack.c.h.bf16 %v351
        %v593 = vunpack.c.l.bf16 %v352
        %v594 = vunpack.c.l.bf16 %v353
        %v595 = vunpack.c.h.bf16 %v353
        %v596 = vunpack.c.l.bf16 %v354
        %v597 = vunpack.c.l.bf16 %v355
        %v598 = vunpack.c.h.bf16 %v355
        %v599 = vunpack.c.l.bf16 %v356
        %v600 = vunpack.c.l.bf16 %v357
        %v601 = vunpack.c.h.bf16 %v357
        %v602 = vunpack.c.l.bf16 %v358
        %v603 = vunpack.c.l.bf16 %v359
        %v604 = vunpack.c.h.bf16 %v359
        %v605 = vunpack.c.l.bf16 %v360
        %v606 = vunpack.c.l.bf16 %v361
        %v607 = vunpack.c.h.bf16 %v361
        %v608 = vunpack.c.l.bf16 %v362
        %v609 = vunpack.c.l.bf16 %v363
        %v610 = vunpack.c.h.bf16 %v363
        %v611 = vunpack.c.l.bf16 %v364
        %v612 = vunpack.c.l.bf16 %v365
        %v613 = vunpack.c.h.bf16 %v365
        %v614 = vunpack.c.l.bf16 %v366
        %v615 = vunpack.c.l.bf16 %v367
        %v616 = vunpack.c.h.bf16 %v367
        %v617 = vunpack.c.l.bf16 %v368
        %v618 = vunpack.c.l.bf16 %v369
        %v619 = vunpack.c.h.bf16 %v369
        %v620 = vunpack.c.l.bf16 %v370
        %v621 = vunpack.c.l.bf16 %v371
        %v622 = vunpack.c.h.bf16 %v371
        %v623 = vunpack.c.l.bf16 %v372
        %v624 = vunpack.c.l.bf16 %v373
        %v625 = vunpack.c.h.bf16 %v373
        %v626 = vunpack.c.l.bf16 %v374
        %v627 = vunpack.c.l.bf16 %v375
        %v628 = vunpack.c.h.bf16 %v375
        %v629 = vunpack.c.l.bf16 %v376
        %v630 = vunpack.c.l.bf16 %v377
        %v631 = vunpack.c.h.bf16 %v377
        %v632 = vunpack.c.l.bf16 %v378
        %v633 = vunpack.c.l.bf16 %v379
        %v634 = vunpack.c.h.bf16 %v379
        %v635 = vunpack.c.l.bf16 %v380
        %v636 = vunpack.c.l.bf16 %v381
        %v637 = vunpack.c.h.bf16 %v381
        %v638 = vunpack.c.l.bf16 %v382
        %v639 = vunpack.c.l.bf16 %v383
        %v640 = vunpack.c.h.bf16 %v383
        %v641 = vunpack.c.l.bf16 %v384
        %v642 = vunpack.c.l.bf16 %v385
        %v643 = vunpack.c.h.bf16 %v385
        %v644 = vunpack.c.l.bf16 %v386
        %v645 = vunpack.c.l.bf16 %v387
        %v646 = vunpack.c.h.bf16 %v387
        %v647 = vunpack.c.l.bf16 %v388
        %v648 = vunpack.c.l.bf16 %v389
        %v649 = vunpack.c.h.bf16 %v389
        %v650 = vunpack.c.l.bf16 %v390
        %v651 = vunpack.c.l.bf16 %v391
        %v652 = vunpack.c.h.bf16 %v391
        %v653 = vunpack.c.l.bf16 %v392
        %v654 = vunpack.c.l.bf16 %v393
        %v655 = vunpack.c.h.bf16 %v393
        %v656 = vunpack.c.l.bf16 %v394
        %v657 = vunpack.c.l.bf16 %v395
        %v658 = vunpack.c.h.bf16 %v395
        %v659 = vunpack.c.l.bf16 %v396
        %v660 = vunpack.c.l.bf16 %v397
        %v661 = vunpack.c.h.bf16 %v397
        %v662 = vunpack.c.l.bf16 %v398
        %v663 = vunpack.c.l.bf16 %v399
        %v664 = vunpack.c.h.bf16 %v399
        %v665 = vunpack.c.l.bf16 %v400
        %v666 = vunpack.c.l.bf16 %v401
        %v667 = vunpack.c.h.bf16 %v401
        %v668 = vunpack.c.l.bf16 %v402
        %v669 = vunpack.c.l.bf16 %v403
        %v670 = vunpack.c.h.bf16 %v403
        %v671 = vunpack.c.l.bf16 %v404
        %v672 = vunpack.c.l.bf16 %v405
        %v673 = vunpack.c.h.bf16 %v405
        %v674 = vunpack.c.l.bf16 %v406
        %v675 = vunpack.c.l.bf16 %v407
        %v676 = vunpack.c.h.bf16 %v407
        %v677 = vunpack.c.l.bf16 %v408
        %v678 = vunpack.c.l.bf16 %v409
        %v679 = vunpack.c.h.bf16 %v409
        %v680 = vunpack.c.l.bf16 %v410
        %v681 = vunpack.c.l.bf16 %v411
        %v682 = vunpack.c.h.bf16 %v411
        %v683 = vunpack.c.l.bf16 %v412
        %v684 = vunpack.c.l.bf16 %v413
        %v685 = vunpack.c.h.bf16 %v413
        %v686 = vunpack.c.l.bf16 %v414
        %v687 = vunpack.c.l.bf16 %v415
        %v688 = vunpack.c.h.bf16 %v415
        %v689 = vunpack.c.l.bf16 %v416
        %v690 = vunpack.c.l.bf16 %v417
        %v691 = vunpack.c.h.bf16 %v417
        %v692 = vunpack.c.l.bf16 %v418
        %v693 = vunpack.c.l.bf16 %v419
        %v694 = vunpack.c.h.bf16 %v419
        %v695 = vunpack.c.l.bf16 %v420
        %v696 = vunpack.c.l.bf16 %v421
        %v697 = vunpack.c.h.bf16 %v421
        %v698 = vunpack.c.l.bf16 %v422
        %v699 = vunpack.c.l.bf16 %v423
        %v700 = vunpack.c.h.bf16 %v423
        %v701 = vunpack.c.l.bf16 %v424
        %v702 = vunpack.c.l.bf16 %v425
        %v703 = vunpack.c.h.bf16 %v425
        %v704 = vunpack.c.l.bf16 %v426
        %v705 = vunpack.c.l.bf16 %v427
        %v706 = vunpack.c.h.bf16 %v427
        %v707 = vunpack.c.l.bf16 %v428
        %v708 = vunpack.c.l.bf16 %v429
        %v709 = vunpack.c.h.bf16 %v429
        %v710 = vunpack.c.l.bf16 %v430
        %v711 = vunpack.c.l.bf16 %v431
        %v712 = vunpack.c.h.bf16 %v431
        %v713 = vunpack.c.l.bf16 %v432
        %v714 = vunpack.c.l.bf16 %v433
        %v715 = vunpack.c.h.bf16 %v433
        %v716 = vunpack.c.l.bf16 %v434
        %v717 = vunpack.c.l.bf16 %v435
        %v718 = vunpack.c.h.bf16 %v435
        %v719 = vunpack.c.l.bf16 %v436
        %v720 = vunpack.c.l.bf16 %v437
        %v721 = vunpack.c.h.bf16 %v437
        %v722 = vunpack.c.l.bf16 %v438
        %v723 = vunpack.c.l.bf16 %v439
        %v724 = vunpack.c.h.bf16 %v439
        %v725 = vunpack.c.l.bf16 %v440
        %v726 = vunpack.c.l.bf16 %v441
        %v727 = vunpack.c.h.bf16 %v441
        %v728 = vunpack.c.l.bf16 %v442
        %v729 = vunpack.c.l.bf16 %v443
        %v730 = vunpack.c.h.bf16 %v443
        %v731 = vunpack.c.l.bf16 %v444
        %v732 = vunpack.c.l.bf16 %v445
        %v733 = vunpack.c.h.bf16 %v445
        %v734 = vunpack.c.l.bf16 %v446
        %v735 = vunpack.c.l.bf16 %v447
        %v736 = vunpack.c.h.bf16 %v447
        %v737 = vunpack.c.l.bf16 %v448
        %v738 = vunpack.c.l.bf16 %v449
        %v739 = vunpack.c.h.bf16 %v449
        %v740 = vunpack.c.l.bf16 %v450
        %v741 = vunpack.c.l.bf16 %v451
        %v742 = vunpack.c.h.bf16 %v451
        %v743 = vunpack.c.l.bf16 %v452
        %v744 = vunpack.c.l.bf16 %v453
        %v745 = vunpack.c.h.bf16 %v453
        %v746 = vunpack.c.l.bf16 %v454
        %v747 = vunpack.c.l.bf16 %v455
        %v748 = vunpack.c.h.bf16 %v455
        %v749 = vunpack.c.l.bf16 %v456
        %v750 = vunpack.c.l.bf16 %v457
        %v751 = vunpack.c.h.bf16 %v457
        %v752 = vunpack.c.l.bf16 %v458
        %v753 = vunpack.c.l.bf16 %v459
        %v754 = vunpack.c.h.bf16 %v459
        %v755 = vunpack.c.l.bf16 %v460
        %v756 = vunpack.c.l.bf16 %v461
        %v757 = vunpack.c.h.bf16 %v461
        %v758 = vunpack.c.l.bf16 %v462
        %v759 = vunpack.c.l.bf16 %v463
        %v760 = vunpack.c.h.bf16 %v463
        %v761 = vunpack.c.l.bf16 %v464
        %v762 = vunpack.c.l.bf16 %v465
        %v763 = vunpack.c.h.bf16 %v465
        %v764 = vunpack.c.l.bf16 %v466
        %v765 = vunpack.c.l.bf16 %v467
        %v766 = vunpack.c.h.bf16 %v467
        %v767 = vunpack.c.l.bf16 %v468
        %v768 = vunpack.c.l.bf16 %v469
        %v769 = vunpack.c.h.bf16 %v469
        %v770 = vunpack.c.l.bf16 %v470
        %v771 = vunpack.c.l.bf16 %v471
        %v772 = vunpack.c.h.bf16 %v471
        %v773 = vunpack.c.l.bf16 %v472
        %v774 = vunpack.c.l.bf16 %v473
        %v775 = vunpack.c.h.bf16 %v473
        %v776 = vunpack.c.l.bf16 %v474
        %v777 = vunpack.c.l.bf16 %v475
        %v778 = vunpack.c.h.bf16 %v475
        %v779 = vunpack.c.l.bf16 %v476
        %v780 = vunpack.c.l.bf16 %v477
        %v781 = vunpack.c.h.bf16 %v477
        %v782 = vunpack.c.l.bf16 %v478
        %v783 = vunpack.c.l.bf16 %v479
        %v784 = vunpack.c.h.bf16 %v479
        %v785 = vunpack.c.l.bf16 %v480
        %v786 = vunpack.c.l.bf16 %v481
        %v787 = vunpack.c.h.bf16 %v481
        %v788 = vunpack.c.l.bf16 %v482
        %v789 = vunpack.c.l.bf16 %v483
        %v790 = vunpack.c.h.bf16 %v483
        %v791 = vunpack.c.l.bf16 %v484
        %v792 = vunpack.c.l.bf16 %v485
        %v793 = vunpack.c.h.bf16 %v485
        %v794 = vunpack.c.l.bf16 %v486
        %v795 = vunpack.c.l.bf16 %v487
        %v796 = vunpack.c.h.bf16 %v487
        %v797 = vunpack.c.l.bf16 %v488
        %v798 = vunpack.c.l.bf16 %v489
        %v799 = vunpack.c.h.bf16 %v489
        %v800 = vunpack.c.l.bf16 %v490
        %v801 = vunpack.c.l.bf16 %v491
        %v802 = vunpack.c.h.bf16 %v491
        %v803 = vunpack.c.l.bf16 %v492
        %v804 = vunpack.c.l.bf16 %v493
        %v805 = vunpack.c.h.bf16 %v493
        %v806 = vunpack.c.l.bf16 %v494
        %v807 = vrot.slane %v495, 4
        %v808 = vadd.f32 %v495, %v807
        %v809 = vrot.slane %v808, 2
        %v810 = vadd.f32 %v808, %v809
        %v811 = vrot.slane %v810, 1
        %v812 = vadd.f32 %v810, %v811
        %v813 = vrot.slane %v496, 4
        %v814 = vadd.f32 %v496, %v813
        %v815 = vrot.slane %v814, 2
        %v816 = vadd.f32 %v814, %v815
        %v817 = vrot.slane %v816, 1
        %v818 = vadd.f32 %v816, %v817
        %vm819 = vcmask 359424
        %v820 = vsel %vm819, %v497, 0.0
        %v821 = vrot.slane %v820, 4
        %v822 = vadd.f32 %v820, %v821
        %v823 = vrot.slane %v822, 2
        %v824 = vadd.f32 %v822, %v823
        %v825 = vrot.slane %v824, 1
        %v826 = vadd.f32 %v824, %v825
        %v827 = vrot.slane %v498, 4
        %v828 = vadd.f32 %v498, %v827
        %v829 = vrot.slane %v828, 2
        %v830 = vadd.f32 %v828, %v829
        %v831 = vrot.slane %v830, 1
        %v832 = vadd.f32 %v830, %v831
        %v833 = vrot.slane %v499, 4
        %v834 = vadd.f32 %v499, %v833
        %v835 = vrot.slane %v834, 2
        %v836 = vadd.f32 %v834, %v835
        %v837 = vrot.slane %v836, 1
        %v838 = vadd.f32 %v836, %v837
        %v839 = vsel %vm819, %v500, 0.0
        %v840 = vrot.slane %v839, 4
        %v841 = vadd.f32 %v839, %v840
        %v842 = vrot.slane %v841, 2
        %v843 = vadd.f32 %v841, %v842
        %v844 = vrot.slane %v843, 1
        %v845 = vadd.f32 %v843, %v844
        %v846 = vrot.slane %v501, 4
        %v847 = vadd.f32 %v501, %v846
        %v848 = vrot.slane %v847, 2
        %v849 = vadd.f32 %v847, %v848
        %v850 = vrot.slane %v849, 1
        %v851 = vadd.f32 %v849, %v850
        %v852 = vrot.slane %v502, 4
        %v853 = vadd.f32 %v502, %v852
        %v854 = vrot.slane %v853, 2
        %v855 = vadd.f32 %v853, %v854
        %v856 = vrot.slane %v855, 1
        %v857 = vadd.f32 %v855, %v856
        %v858 = vsel %vm819, %v503, 0.0
        %v859 = vrot.slane %v858, 4
        %v860 = vadd.f32 %v858, %v859
        %v861 = vrot.slane %v860, 2
        %v862 = vadd.f32 %v860, %v861
        %v863 = vrot.slane %v862, 1
        %v864 = vadd.f32 %v862, %v863
        %v865 = vrot.slane %v504, 4
        %v866 = vadd.f32 %v504, %v865
        %v867 = vrot.slane %v866, 2
        %v868 = vadd.f32 %v866, %v867
        %v869 = vrot.slane %v868, 1
        %v870 = vadd.f32 %v868, %v869
        %v871 = vrot.slane %v505, 4
        %v872 = vadd.f32 %v505, %v871
        %v873 = vrot.slane %v872, 2
        %v874 = vadd.f32 %v872, %v873
        %v875 = vrot.slane %v874, 1
        %v876 = vadd.f32 %v874, %v875
        %v877 = vsel %vm819, %v506, 0.0
        %v878 = vrot.slane %v877, 4
        %v879 = vadd.f32 %v877, %v878
        %v880 = vrot.slane %v879, 2
        %v881 = vadd.f32 %v879, %v880
        %v882 = vrot.slane %v881, 1
        %v883 = vadd.f32 %v881, %v882
        %v884 = vrot.slane %v507, 4
        %v885 = vadd.f32 %v507, %v884
        %v886 = vrot.slane %v885, 2
        %v887 = vadd.f32 %v885, %v886
        %v888 = vrot.slane %v887, 1
        %v889 = vadd.f32 %v887, %v888
        %v890 = vrot.slane %v508, 4
        %v891 = vadd.f32 %v508, %v890
        %v892 = vrot.slane %v891, 2
        %v893 = vadd.f32 %v891, %v892
        %v894 = vrot.slane %v893, 1
        %v895 = vadd.f32 %v893, %v894
        %v896 = vsel %vm819, %v509, 0.0
        %v897 = vrot.slane %v896, 4
        %v898 = vadd.f32 %v896, %v897
        %v899 = vrot.slane %v898, 2
        %v900 = vadd.f32 %v898, %v899
        %v901 = vrot.slane %v900, 1
        %v902 = vadd.f32 %v900, %v901
        %v903 = vrot.slane %v510, 4
        %v904 = vadd.f32 %v510, %v903
        %v905 = vrot.slane %v904, 2
        %v906 = vadd.f32 %v904, %v905
        %v907 = vrot.slane %v906, 1
        %v908 = vadd.f32 %v906, %v907
        %v909 = vrot.slane %v511, 4
        %v910 = vadd.f32 %v511, %v909
        %v911 = vrot.slane %v910, 2
        %v912 = vadd.f32 %v910, %v911
        %v913 = vrot.slane %v912, 1
        %v914 = vadd.f32 %v912, %v913
        %v915 = vsel %vm819, %v512, 0.0
        %v916 = vrot.slane %v915, 4
        %v917 = vadd.f32 %v915, %v916
        %v918 = vrot.slane %v917, 2
        %v919 = vadd.f32 %v917, %v918
        %v920 = vrot.slane %v919, 1
        %v921 = vadd.f32 %v919, %v920
        %v922 = vrot.slane %v513, 4
        %v923 = vadd.f32 %v513, %v922
        %v924 = vrot.slane %v923, 2
        %v925 = vadd.f32 %v923, %v924
        %v926 = vrot.slane %v925, 1
        %v927 = vadd.f32 %v925, %v926
        %v928 = vrot.slane %v514, 4
        %v929 = vadd.f32 %v514, %v928
        %v930 = vrot.slane %v929, 2
        %v931 = vadd.f32 %v929, %v930
        %v932 = vrot.slane %v931, 1
        %v933 = vadd.f32 %v931, %v932
        %v934 = vsel %vm819, %v515, 0.0
        %v935 = vrot.slane %v934, 4
        %v936 = vadd.f32 %v934, %v935
        %v937 = vrot.slane %v936, 2
        %v938 = vadd.f32 %v936, %v937
        %v939 = vrot.slane %v938, 1
        %v940 = vadd.f32 %v938, %v939
        %v941 = vrot.slane %v516, 4
        %v942 = vadd.f32 %v516, %v941
        %v943 = vrot.slane %v942, 2
        %v944 = vadd.f32 %v942, %v943
        %v945 = vrot.slane %v944, 1
        %v946 = vadd.f32 %v944, %v945
        %v947 = vrot.slane %v517, 4
        %v948 = vadd.f32 %v517, %v947
        %v949 = vrot.slane %v948, 2
        %v950 = vadd.f32 %v948, %v949
        %v951 = vrot.slane %v950, 1
        %v952 = vadd.f32 %v950, %v951
        %v953 = vsel %vm819, %v518, 0.0
        %v954 = vrot.slane %v953, 4
        %v955 = vadd.f32 %v953, %v954
        %v956 = vrot.slane %v955, 2
        %v957 = vadd.f32 %v955, %v956
        %v958 = vrot.slane %v957, 1
        %v959 = vadd.f32 %v957, %v958
        %v960 = vrot.slane %v519, 4
        %v961 = vadd.f32 %v519, %v960
        %v962 = vrot.slane %v961, 2
        %v963 = vadd.f32 %v961, %v962
        %v964 = vrot.slane %v963, 1
        %v965 = vadd.f32 %v963, %v964
        %v966 = vrot.slane %v520, 4
        %v967 = vadd.f32 %v520, %v966
        %v968 = vrot.slane %v967, 2
        %v969 = vadd.f32 %v967, %v968
        %v970 = vrot.slane %v969, 1
        %v971 = vadd.f32 %v969, %v970
        %v972 = vsel %vm819, %v521, 0.0
        %v973 = vrot.slane %v972, 4
        %v974 = vadd.f32 %v972, %v973
        %v975 = vrot.slane %v974, 2
        %v976 = vadd.f32 %v974, %v975
        %v977 = vrot.slane %v976, 1
        %v978 = vadd.f32 %v976, %v977
        %v979 = vrot.slane %v522, 4
        %v980 = vadd.f32 %v522, %v979
        %v981 = vrot.slane %v980, 2
        %v982 = vadd.f32 %v980, %v981
        %v983 = vrot.slane %v982, 1
        %v984 = vadd.f32 %v982, %v983
        %v985 = vrot.slane %v523, 4
        %v986 = vadd.f32 %v523, %v985
        %v987 = vrot.slane %v986, 2
        %v988 = vadd.f32 %v986, %v987
        %v989 = vrot.slane %v988, 1
        %v990 = vadd.f32 %v988, %v989
        %v991 = vsel %vm819, %v524, 0.0
        %v992 = vrot.slane %v991, 4
        %v993 = vadd.f32 %v991, %v992
        %v994 = vrot.slane %v993, 2
        %v995 = vadd.f32 %v993, %v994
        %v996 = vrot.slane %v995, 1
        %v997 = vadd.f32 %v995, %v996
        %v998 = vrot.slane %v525, 4
        %v999 = vadd.f32 %v525, %v998
        %v1000 = vrot.slane %v999, 2
        %v1001 = vadd.f32 %v999, %v1000
        %v1002 = vrot.slane %v1001, 1
        %v1003 = vadd.f32 %v1001, %v1002
        %v1004 = vrot.slane %v526, 4
        %v1005 = vadd.f32 %v526, %v1004
        %v1006 = vrot.slane %v1005, 2
        %v1007 = vadd.f32 %v1005, %v1006
        %v1008 = vrot.slane %v1007, 1
        %v1009 = vadd.f32 %v1007, %v1008
        %v1010 = vsel %vm819, %v527, 0.0
        %v1011 = vrot.slane %v1010, 4
        %v1012 = vadd.f32 %v1010, %v1011
        %v1013 = vrot.slane %v1012, 2
        %v1014 = vadd.f32 %v1012, %v1013
        %v1015 = vrot.slane %v1014, 1
        %v1016 = vadd.f32 %v1014, %v1015
        %v1017 = vrot.slane %v528, 4
        %v1018 = vadd.f32 %v528, %v1017
        %v1019 = vrot.slane %v1018, 2
        %v1020 = vadd.f32 %v1018, %v1019
        %v1021 = vrot.slane %v1020, 1
        %v1022 = vadd.f32 %v1020, %v1021
        %v1023 = vrot.slane %v529, 4
        %v1024 = vadd.f32 %v529, %v1023
        %v1025 = vrot.slane %v1024, 2
        %v1026 = vadd.f32 %v1024, %v1025
        %v1027 = vrot.slane %v1026, 1
        %v1028 = vadd.f32 %v1026, %v1027
        %v1029 = vsel %vm819, %v530, 0.0
        %v1030 = vrot.slane %v1029, 4
        %v1031 = vadd.f32 %v1029, %v1030
        %v1032 = vrot.slane %v1031, 2
        %v1033 = vadd.f32 %v1031, %v1032
        %v1034 = vrot.slane %v1033, 1
        %v1035 = vadd.f32 %v1033, %v1034
        %v1036 = vrot.slane %v531, 4
        %v1037 = vadd.f32 %v531, %v1036
        %v1038 = vrot.slane %v1037, 2
        %v1039 = vadd.f32 %v1037, %v1038
        %v1040 = vrot.slane %v1039, 1
        %v1041 = vadd.f32 %v1039, %v1040
        %v1042 = vrot.slane %v532, 4
        %v1043 = vadd.f32 %v532, %v1042
        %v1044 = vrot.slane %v1043, 2
        %v1045 = vadd.f32 %v1043, %v1044
        %v1046 = vrot.slane %v1045, 1
        %v1047 = vadd.f32 %v1045, %v1046
        %v1048 = vsel %vm819, %v533, 0.0
        %v1049 = vrot.slane %v1048, 4
        %v1050 = vadd.f32 %v1048, %v1049
        %v1051 = vrot.slane %v1050, 2
        %v1052 = vadd.f32 %v1050, %v1051
        %v1053 = vrot.slane %v1052, 1
        %v1054 = vadd.f32 %v1052, %v1053
        %v1055 = vrot.slane %v534, 4
        %v1056 = vadd.f32 %v534, %v1055
        %v1057 = vrot.slane %v1056, 2
        %v1058 = vadd.f32 %v1056, %v1057
        %v1059 = vrot.slane %v1058, 1
        %v1060 = vadd.f32 %v1058, %v1059
        %v1061 = vrot.slane %v535, 4
        %v1062 = vadd.f32 %v535, %v1061
        %v1063 = vrot.slane %v1062, 2
        %v1064 = vadd.f32 %v1062, %v1063
        %v1065 = vrot.slane %v1064, 1
        %v1066 = vadd.f32 %v1064, %v1065
        %v1067 = vsel %vm819, %v536, 0.0
        %v1068 = vrot.slane %v1067, 4
        %v1069 = vadd.f32 %v1067, %v1068
        %v1070 = vrot.slane %v1069, 2
        %v1071 = vadd.f32 %v1069, %v1070
        %v1072 = vrot.slane %v1071, 1
        %v1073 = vadd.f32 %v1071, %v1072
        %v1074 = vrot.slane %v537, 4
        %v1075 = vadd.f32 %v537, %v1074
        %v1076 = vrot.slane %v1075, 2
        %v1077 = vadd.f32 %v1075, %v1076
        %v1078 = vrot.slane %v1077, 1
        %v1079 = vadd.f32 %v1077, %v1078
        %v1080 = vrot.slane %v538, 4
        %v1081 = vadd.f32 %v538, %v1080
        %v1082 = vrot.slane %v1081, 2
        %v1083 = vadd.f32 %v1081, %v1082
        %v1084 = vrot.slane %v1083, 1
        %v1085 = vadd.f32 %v1083, %v1084
        %v1086 = vsel %vm819, %v539, 0.0
        %v1087 = vrot.slane %v1086, 4
        %v1088 = vadd.f32 %v1086, %v1087
        %v1089 = vrot.slane %v1088, 2
        %v1090 = vadd.f32 %v1088, %v1089
        %v1091 = vrot.slane %v1090, 1
        %v1092 = vadd.f32 %v1090, %v1091
        %v1093 = vrot.slane %v540, 4
        %v1094 = vadd.f32 %v540, %v1093
        %v1095 = vrot.slane %v1094, 2
        %v1096 = vadd.f32 %v1094, %v1095
        %v1097 = vrot.slane %v1096, 1
        %v1098 = vadd.f32 %v1096, %v1097
        %v1099 = vrot.slane %v541, 4
        %v1100 = vadd.f32 %v541, %v1099
        %v1101 = vrot.slane %v1100, 2
        %v1102 = vadd.f32 %v1100, %v1101
        %v1103 = vrot.slane %v1102, 1
        %v1104 = vadd.f32 %v1102, %v1103
        %v1105 = vsel %vm819, %v542, 0.0
        %v1106 = vrot.slane %v1105, 4
        %v1107 = vadd.f32 %v1105, %v1106
        %v1108 = vrot.slane %v1107, 2
        %v1109 = vadd.f32 %v1107, %v1108
        %v1110 = vrot.slane %v1109, 1
        %v1111 = vadd.f32 %v1109, %v1110
        %v1112 = vrot.slane %v543, 4
        %v1113 = vadd.f32 %v543, %v1112
        %v1114 = vrot.slane %v1113, 2
        %v1115 = vadd.f32 %v1113, %v1114
        %v1116 = vrot.slane %v1115, 1
        %v1117 = vadd.f32 %v1115, %v1116
        %v1118 = vrot.slane %v544, 4
        %v1119 = vadd.f32 %v544, %v1118
        %v1120 = vrot.slane %v1119, 2
        %v1121 = vadd.f32 %v1119, %v1120
        %v1122 = vrot.slane %v1121, 1
        %v1123 = vadd.f32 %v1121, %v1122
        %v1124 = vsel %vm819, %v545, 0.0
        %v1125 = vrot.slane %v1124, 4
        %v1126 = vadd.f32 %v1124, %v1125
        %v1127 = vrot.slane %v1126, 2
        %v1128 = vadd.f32 %v1126, %v1127
        %v1129 = vrot.slane %v1128, 1
        %v1130 = vadd.f32 %v1128, %v1129
        %v1131 = vrot.slane %v546, 4
        %v1132 = vadd.f32 %v546, %v1131
        %v1133 = vrot.slane %v1132, 2
        %v1134 = vadd.f32 %v1132, %v1133
        %v1135 = vrot.slane %v1134, 1
        %v1136 = vadd.f32 %v1134, %v1135
        %v1137 = vrot.slane %v547, 4
        %v1138 = vadd.f32 %v547, %v1137
        %v1139 = vrot.slane %v1138, 2
        %v1140 = vadd.f32 %v1138, %v1139
        %v1141 = vrot.slane %v1140, 1
        %v1142 = vadd.f32 %v1140, %v1141
        %v1143 = vsel %vm819, %v548, 0.0
        %v1144 = vrot.slane %v1143, 4
        %v1145 = vadd.f32 %v1143, %v1144
        %v1146 = vrot.slane %v1145, 2
        %v1147 = vadd.f32 %v1145, %v1146
        %v1148 = vrot.slane %v1147, 1
        %v1149 = vadd.f32 %v1147, %v1148
        %v1150 = vrot.slane %v549, 4
        %v1151 = vadd.f32 %v549, %v1150
        %v1152 = vrot.slane %v1151, 2
        %v1153 = vadd.f32 %v1151, %v1152
        %v1154 = vrot.slane %v1153, 1
        %v1155 = vadd.f32 %v1153, %v1154
        %v1156 = vrot.slane %v550, 4
        %v1157 = vadd.f32 %v550, %v1156
        %v1158 = vrot.slane %v1157, 2
        %v1159 = vadd.f32 %v1157, %v1158
        %v1160 = vrot.slane %v1159, 1
        %v1161 = vadd.f32 %v1159, %v1160
        %v1162 = vsel %vm819, %v551, 0.0
        %v1163 = vrot.slane %v1162, 4
        %v1164 = vadd.f32 %v1162, %v1163
        %v1165 = vrot.slane %v1164, 2
        %v1166 = vadd.f32 %v1164, %v1165
        %v1167 = vrot.slane %v1166, 1
        %v1168 = vadd.f32 %v1166, %v1167
        %v1169 = vrot.slane %v552, 4
        %v1170 = vadd.f32 %v552, %v1169
        %v1171 = vrot.slane %v1170, 2
        %v1172 = vadd.f32 %v1170, %v1171
        %v1173 = vrot.slane %v1172, 1
        %v1174 = vadd.f32 %v1172, %v1173
        %v1175 = vrot.slane %v553, 4
        %v1176 = vadd.f32 %v553, %v1175
        %v1177 = vrot.slane %v1176, 2
        %v1178 = vadd.f32 %v1176, %v1177
        %v1179 = vrot.slane %v1178, 1
        %v1180 = vadd.f32 %v1178, %v1179
        %v1181 = vsel %vm819, %v554, 0.0
        %v1182 = vrot.slane %v1181, 4
        %v1183 = vadd.f32 %v1181, %v1182
        %v1184 = vrot.slane %v1183, 2
        %v1185 = vadd.f32 %v1183, %v1184
        %v1186 = vrot.slane %v1185, 1
        %v1187 = vadd.f32 %v1185, %v1186
        %v1188 = vrot.slane %v555, 4
        %v1189 = vadd.f32 %v555, %v1188
        %v1190 = vrot.slane %v1189, 2
        %v1191 = vadd.f32 %v1189, %v1190
        %v1192 = vrot.slane %v1191, 1
        %v1193 = vadd.f32 %v1191, %v1192
        %v1194 = vrot.slane %v556, 4
        %v1195 = vadd.f32 %v556, %v1194
        %v1196 = vrot.slane %v1195, 2
        %v1197 = vadd.f32 %v1195, %v1196
        %v1198 = vrot.slane %v1197, 1
        %v1199 = vadd.f32 %v1197, %v1198
        %v1200 = vsel %vm819, %v557, 0.0
        %v1201 = vrot.slane %v1200, 4
        %v1202 = vadd.f32 %v1200, %v1201
        %v1203 = vrot.slane %v1202, 2
        %v1204 = vadd.f32 %v1202, %v1203
        %v1205 = vrot.slane %v1204, 1
        %v1206 = vadd.f32 %v1204, %v1205
        %v1207 = vrot.slane %v558, 4
        %v1208 = vadd.f32 %v558, %v1207
        %v1209 = vrot.slane %v1208, 2
        %v1210 = vadd.f32 %v1208, %v1209
        %v1211 = vrot.slane %v1210, 1
        %v1212 = vadd.f32 %v1210, %v1211
        %v1213 = vrot.slane %v559, 4
        %v1214 = vadd.f32 %v559, %v1213
        %v1215 = vrot.slane %v1214, 2
        %v1216 = vadd.f32 %v1214, %v1215
        %v1217 = vrot.slane %v1216, 1
        %v1218 = vadd.f32 %v1216, %v1217
        %v1219 = vsel %vm819, %v560, 0.0
        %v1220 = vrot.slane %v1219, 4
        %v1221 = vadd.f32 %v1219, %v1220
        %v1222 = vrot.slane %v1221, 2
        %v1223 = vadd.f32 %v1221, %v1222
        %v1224 = vrot.slane %v1223, 1
        %v1225 = vadd.f32 %v1223, %v1224
        %v1226 = vrot.slane %v561, 4
        %v1227 = vadd.f32 %v561, %v1226
        %v1228 = vrot.slane %v1227, 2
        %v1229 = vadd.f32 %v1227, %v1228
        %v1230 = vrot.slane %v1229, 1
        %v1231 = vadd.f32 %v1229, %v1230
        %v1232 = vrot.slane %v562, 4
        %v1233 = vadd.f32 %v562, %v1232
        %v1234 = vrot.slane %v1233, 2
        %v1235 = vadd.f32 %v1233, %v1234
        %v1236 = vrot.slane %v1235, 1
        %v1237 = vadd.f32 %v1235, %v1236
        %v1238 = vsel %vm819, %v563, 0.0
        %v1239 = vrot.slane %v1238, 4
        %v1240 = vadd.f32 %v1238, %v1239
        %v1241 = vrot.slane %v1240, 2
        %v1242 = vadd.f32 %v1240, %v1241
        %v1243 = vrot.slane %v1242, 1
        %v1244 = vadd.f32 %v1242, %v1243
        %v1245 = vrot.slane %v564, 4
        %v1246 = vadd.f32 %v564, %v1245
        %v1247 = vrot.slane %v1246, 2
        %v1248 = vadd.f32 %v1246, %v1247
        %v1249 = vrot.slane %v1248, 1
        %v1250 = vadd.f32 %v1248, %v1249
        %v1251 = vrot.slane %v565, 4
        %v1252 = vadd.f32 %v565, %v1251
        %v1253 = vrot.slane %v1252, 2
        %v1254 = vadd.f32 %v1252, %v1253
        %v1255 = vrot.slane %v1254, 1
        %v1256 = vadd.f32 %v1254, %v1255
        %v1257 = vsel %vm819, %v566, 0.0
        %v1258 = vrot.slane %v1257, 4
        %v1259 = vadd.f32 %v1257, %v1258
        %v1260 = vrot.slane %v1259, 2
        %v1261 = vadd.f32 %v1259, %v1260
        %v1262 = vrot.slane %v1261, 1
        %v1263 = vadd.f32 %v1261, %v1262
        %v1264 = vrot.slane %v567, 4
        %v1265 = vadd.f32 %v567, %v1264
        %v1266 = vrot.slane %v1265, 2
        %v1267 = vadd.f32 %v1265, %v1266
        %v1268 = vrot.slane %v1267, 1
        %v1269 = vadd.f32 %v1267, %v1268
        %v1270 = vrot.slane %v568, 4
        %v1271 = vadd.f32 %v568, %v1270
        %v1272 = vrot.slane %v1271, 2
        %v1273 = vadd.f32 %v1271, %v1272
        %v1274 = vrot.slane %v1273, 1
        %v1275 = vadd.f32 %v1273, %v1274
        %v1276 = vsel %vm819, %v569, 0.0
        %v1277 = vrot.slane %v1276, 4
        %v1278 = vadd.f32 %v1276, %v1277
        %v1279 = vrot.slane %v1278, 2
        %v1280 = vadd.f32 %v1278, %v1279
        %v1281 = vrot.slane %v1280, 1
        %v1282 = vadd.f32 %v1280, %v1281
        %v1283 = vrot.slane %v570, 4
        %v1284 = vadd.f32 %v570, %v1283
        %v1285 = vrot.slane %v1284, 2
        %v1286 = vadd.f32 %v1284, %v1285
        %v1287 = vrot.slane %v1286, 1
        %v1288 = vadd.f32 %v1286, %v1287
        %v1289 = vrot.slane %v571, 4
        %v1290 = vadd.f32 %v571, %v1289
        %v1291 = vrot.slane %v1290, 2
        %v1292 = vadd.f32 %v1290, %v1291
        %v1293 = vrot.slane %v1292, 1
        %v1294 = vadd.f32 %v1292, %v1293
        %v1295 = vsel %vm819, %v572, 0.0
        %v1296 = vrot.slane %v1295, 4
        %v1297 = vadd.f32 %v1295, %v1296
        %v1298 = vrot.slane %v1297, 2
        %v1299 = vadd.f32 %v1297, %v1298
        %v1300 = vrot.slane %v1299, 1
        %v1301 = vadd.f32 %v1299, %v1300
        %v1302 = vrot.slane %v573, 4
        %v1303 = vadd.f32 %v573, %v1302
        %v1304 = vrot.slane %v1303, 2
        %v1305 = vadd.f32 %v1303, %v1304
        %v1306 = vrot.slane %v1305, 1
        %v1307 = vadd.f32 %v1305, %v1306
        %v1308 = vrot.slane %v574, 4
        %v1309 = vadd.f32 %v574, %v1308
        %v1310 = vrot.slane %v1309, 2
        %v1311 = vadd.f32 %v1309, %v1310
        %v1312 = vrot.slane %v1311, 1
        %v1313 = vadd.f32 %v1311, %v1312
        %v1314 = vsel %vm819, %v575, 0.0
        %v1315 = vrot.slane %v1314, 4
        %v1316 = vadd.f32 %v1314, %v1315
        %v1317 = vrot.slane %v1316, 2
        %v1318 = vadd.f32 %v1316, %v1317
        %v1319 = vrot.slane %v1318, 1
        %v1320 = vadd.f32 %v1318, %v1319
        %v1321 = vrot.slane %v576, 4
        %v1322 = vadd.f32 %v576, %v1321
        %v1323 = vrot.slane %v1322, 2
        %v1324 = vadd.f32 %v1322, %v1323
        %v1325 = vrot.slane %v1324, 1
        %v1326 = vadd.f32 %v1324, %v1325
        %v1327 = vrot.slane %v577, 4
        %v1328 = vadd.f32 %v577, %v1327
        %v1329 = vrot.slane %v1328, 2
        %v1330 = vadd.f32 %v1328, %v1329
        %v1331 = vrot.slane %v1330, 1
        %v1332 = vadd.f32 %v1330, %v1331
        %v1333 = vsel %vm819, %v578, 0.0
        %v1334 = vrot.slane %v1333, 4
        %v1335 = vadd.f32 %v1333, %v1334
        %v1336 = vrot.slane %v1335, 2
        %v1337 = vadd.f32 %v1335, %v1336
        %v1338 = vrot.slane %v1337, 1
        %v1339 = vadd.f32 %v1337, %v1338
        %v1340 = vrot.slane %v579, 4
        %v1341 = vadd.f32 %v579, %v1340
        %v1342 = vrot.slane %v1341, 2
        %v1343 = vadd.f32 %v1341, %v1342
        %v1344 = vrot.slane %v1343, 1
        %v1345 = vadd.f32 %v1343, %v1344
        %v1346 = vrot.slane %v580, 4
        %v1347 = vadd.f32 %v580, %v1346
        %v1348 = vrot.slane %v1347, 2
        %v1349 = vadd.f32 %v1347, %v1348
        %v1350 = vrot.slane %v1349, 1
        %v1351 = vadd.f32 %v1349, %v1350
        %v1352 = vsel %vm819, %v581, 0.0
        %v1353 = vrot.slane %v1352, 4
        %v1354 = vadd.f32 %v1352, %v1353
        %v1355 = vrot.slane %v1354, 2
        %v1356 = vadd.f32 %v1354, %v1355
        %v1357 = vrot.slane %v1356, 1
        %v1358 = vadd.f32 %v1356, %v1357
        %v1359 = vrot.slane %v582, 4
        %v1360 = vadd.f32 %v582, %v1359
        %v1361 = vrot.slane %v1360, 2
        %v1362 = vadd.f32 %v1360, %v1361
        %v1363 = vrot.slane %v1362, 1
        %v1364 = vadd.f32 %v1362, %v1363
        %v1365 = vrot.slane %v583, 4
        %v1366 = vadd.f32 %v583, %v1365
        %v1367 = vrot.slane %v1366, 2
        %v1368 = vadd.f32 %v1366, %v1367
        %v1369 = vrot.slane %v1368, 1
        %v1370 = vadd.f32 %v1368, %v1369
        %v1371 = vsel %vm819, %v584, 0.0
        %v1372 = vrot.slane %v1371, 4
        %v1373 = vadd.f32 %v1371, %v1372
        %v1374 = vrot.slane %v1373, 2
        %v1375 = vadd.f32 %v1373, %v1374
        %v1376 = vrot.slane %v1375, 1
        %v1377 = vadd.f32 %v1375, %v1376
        %v1378 = vrot.slane %v585, 4
        %v1379 = vadd.f32 %v585, %v1378
        %v1380 = vrot.slane %v1379, 2
        %v1381 = vadd.f32 %v1379, %v1380
        %v1382 = vrot.slane %v1381, 1
        %v1383 = vadd.f32 %v1381, %v1382
        %v1384 = vrot.slane %v586, 4
        %v1385 = vadd.f32 %v586, %v1384
        %v1386 = vrot.slane %v1385, 2
        %v1387 = vadd.f32 %v1385, %v1386
        %v1388 = vrot.slane %v1387, 1
        %v1389 = vadd.f32 %v1387, %v1388
        %v1390 = vsel %vm819, %v587, 0.0
        %v1391 = vrot.slane %v1390, 4
        %v1392 = vadd.f32 %v1390, %v1391
        %v1393 = vrot.slane %v1392, 2
        %v1394 = vadd.f32 %v1392, %v1393
        %v1395 = vrot.slane %v1394, 1
        %v1396 = vadd.f32 %v1394, %v1395
        %v1397 = vrot.slane %v588, 4
        %v1398 = vadd.f32 %v588, %v1397
        %v1399 = vrot.slane %v1398, 2
        %v1400 = vadd.f32 %v1398, %v1399
        %v1401 = vrot.slane %v1400, 1
        %v1402 = vadd.f32 %v1400, %v1401
        %v1403 = vrot.slane %v589, 4
        %v1404 = vadd.f32 %v589, %v1403
        %v1405 = vrot.slane %v1404, 2
        %v1406 = vadd.f32 %v1404, %v1405
        %v1407 = vrot.slane %v1406, 1
        %v1408 = vadd.f32 %v1406, %v1407
        %v1409 = vsel %vm819, %v590, 0.0
        %v1410 = vrot.slane %v1409, 4
        %v1411 = vadd.f32 %v1409, %v1410
        %v1412 = vrot.slane %v1411, 2
        %v1413 = vadd.f32 %v1411, %v1412
        %v1414 = vrot.slane %v1413, 1
        %v1415 = vadd.f32 %v1413, %v1414
        %v1416 = vrot.slane %v591, 4
        %v1417 = vadd.f32 %v591, %v1416
        %v1418 = vrot.slane %v1417, 2
        %v1419 = vadd.f32 %v1417, %v1418
        %v1420 = vrot.slane %v1419, 1
        %v1421 = vadd.f32 %v1419, %v1420
        %v1422 = vrot.slane %v592, 4
        %v1423 = vadd.f32 %v592, %v1422
        %v1424 = vrot.slane %v1423, 2
        %v1425 = vadd.f32 %v1423, %v1424
        %v1426 = vrot.slane %v1425, 1
        %v1427 = vadd.f32 %v1425, %v1426
        %v1428 = vsel %vm819, %v593, 0.0
        %v1429 = vrot.slane %v1428, 4
        %v1430 = vadd.f32 %v1428, %v1429
        %v1431 = vrot.slane %v1430, 2
        %v1432 = vadd.f32 %v1430, %v1431
        %v1433 = vrot.slane %v1432, 1
        %v1434 = vadd.f32 %v1432, %v1433
        %v1435 = vrot.slane %v594, 4
        %v1436 = vadd.f32 %v594, %v1435
        %v1437 = vrot.slane %v1436, 2
        %v1438 = vadd.f32 %v1436, %v1437
        %v1439 = vrot.slane %v1438, 1
        %v1440 = vadd.f32 %v1438, %v1439
        %v1441 = vrot.slane %v595, 4
        %v1442 = vadd.f32 %v595, %v1441
        %v1443 = vrot.slane %v1442, 2
        %v1444 = vadd.f32 %v1442, %v1443
        %v1445 = vrot.slane %v1444, 1
        %v1446 = vadd.f32 %v1444, %v1445
        %v1447 = vsel %vm819, %v596, 0.0
        %v1448 = vrot.slane %v1447, 4
        %v1449 = vadd.f32 %v1447, %v1448
        %v1450 = vrot.slane %v1449, 2
        %v1451 = vadd.f32 %v1449, %v1450
        %v1452 = vrot.slane %v1451, 1
        %v1453 = vadd.f32 %v1451, %v1452
        %v1454 = vrot.slane %v597, 4
        %v1455 = vadd.f32 %v597, %v1454
        %v1456 = vrot.slane %v1455, 2
        %v1457 = vadd.f32 %v1455, %v1456
        %v1458 = vrot.slane %v1457, 1
        %v1459 = vadd.f32 %v1457, %v1458
        %v1460 = vrot.slane %v598, 4
        %v1461 = vadd.f32 %v598, %v1460
        %v1462 = vrot.slane %v1461, 2
        %v1463 = vadd.f32 %v1461, %v1462
        %v1464 = vrot.slane %v1463, 1
        %v1465 = vadd.f32 %v1463, %v1464
        %v1466 = vsel %vm819, %v599, 0.0
        %v1467 = vrot.slane %v1466, 4
        %v1468 = vadd.f32 %v1466, %v1467
        %v1469 = vrot.slane %v1468, 2
        %v1470 = vadd.f32 %v1468, %v1469
        %v1471 = vrot.slane %v1470, 1
        %v1472 = vadd.f32 %v1470, %v1471
        %v1473 = vrot.slane %v600, 4
        %v1474 = vadd.f32 %v600, %v1473
        %v1475 = vrot.slane %v1474, 2
        %v1476 = vadd.f32 %v1474, %v1475
        %v1477 = vrot.slane %v1476, 1
        %v1478 = vadd.f32 %v1476, %v1477
        %v1479 = vrot.slane %v601, 4
        %v1480 = vadd.f32 %v601, %v1479
        %v1481 = vrot.slane %v1480, 2
        %v1482 = vadd.f32 %v1480, %v1481
        %v1483 = vrot.slane %v1482, 1
        %v1484 = vadd.f32 %v1482, %v1483
        %v1485 = vsel %vm819, %v602, 0.0
        %v1486 = vrot.slane %v1485, 4
        %v1487 = vadd.f32 %v1485, %v1486
        %v1488 = vrot.slane %v1487, 2
        %v1489 = vadd.f32 %v1487, %v1488
        %v1490 = vrot.slane %v1489, 1
        %v1491 = vadd.f32 %v1489, %v1490
        %v1492 = vrot.slane %v603, 4
        %v1493 = vadd.f32 %v603, %v1492
        %v1494 = vrot.slane %v1493, 2
        %v1495 = vadd.f32 %v1493, %v1494
        %v1496 = vrot.slane %v1495, 1
        %v1497 = vadd.f32 %v1495, %v1496
        %v1498 = vrot.slane %v604, 4
        %v1499 = vadd.f32 %v604, %v1498
        %v1500 = vrot.slane %v1499, 2
        %v1501 = vadd.f32 %v1499, %v1500
        %v1502 = vrot.slane %v1501, 1
        %v1503 = vadd.f32 %v1501, %v1502
        %v1504 = vsel %vm819, %v605, 0.0
        %v1505 = vrot.slane %v1504, 4
        %v1506 = vadd.f32 %v1504, %v1505
        %v1507 = vrot.slane %v1506, 2
        %v1508 = vadd.f32 %v1506, %v1507
        %v1509 = vrot.slane %v1508, 1
        %v1510 = vadd.f32 %v1508, %v1509
        %v1511 = vrot.slane %v606, 4
        %v1512 = vadd.f32 %v606, %v1511
        %v1513 = vrot.slane %v1512, 2
        %v1514 = vadd.f32 %v1512, %v1513
        %v1515 = vrot.slane %v1514, 1
        %v1516 = vadd.f32 %v1514, %v1515
        %v1517 = vrot.slane %v607, 4
        %v1518 = vadd.f32 %v607, %v1517
        %v1519 = vrot.slane %v1518, 2
        %v1520 = vadd.f32 %v1518, %v1519
        %v1521 = vrot.slane %v1520, 1
        %v1522 = vadd.f32 %v1520, %v1521
        %v1523 = vsel %vm819, %v608, 0.0
        %v1524 = vrot.slane %v1523, 4
        %v1525 = vadd.f32 %v1523, %v1524
        %v1526 = vrot.slane %v1525, 2
        %v1527 = vadd.f32 %v1525, %v1526
        %v1528 = vrot.slane %v1527, 1
        %v1529 = vadd.f32 %v1527, %v1528
        %v1530 = vrot.slane %v609, 4
        %v1531 = vadd.f32 %v609, %v1530
        %v1532 = vrot.slane %v1531, 2
        %v1533 = vadd.f32 %v1531, %v1532
        %v1534 = vrot.slane %v1533, 1
        %v1535 = vadd.f32 %v1533, %v1534
        %v1536 = vrot.slane %v610, 4
        %v1537 = vadd.f32 %v610, %v1536
        %v1538 = vrot.slane %v1537, 2
        %v1539 = vadd.f32 %v1537, %v1538
        %v1540 = vrot.slane %v1539, 1
        %v1541 = vadd.f32 %v1539, %v1540
        %v1542 = vsel %vm819, %v611, 0.0
        %v1543 = vrot.slane %v1542, 4
        %v1544 = vadd.f32 %v1542, %v1543
        %v1545 = vrot.slane %v1544, 2
        %v1546 = vadd.f32 %v1544, %v1545
        %v1547 = vrot.slane %v1546, 1
        %v1548 = vadd.f32 %v1546, %v1547
        %v1549 = vrot.slane %v612, 4
        %v1550 = vadd.f32 %v612, %v1549
        %v1551 = vrot.slane %v1550, 2
        %v1552 = vadd.f32 %v1550, %v1551
        %v1553 = vrot.slane %v1552, 1
        %v1554 = vadd.f32 %v1552, %v1553
        %v1555 = vrot.slane %v613, 4
        %v1556 = vadd.f32 %v613, %v1555
        %v1557 = vrot.slane %v1556, 2
        %v1558 = vadd.f32 %v1556, %v1557
        %v1559 = vrot.slane %v1558, 1
        %v1560 = vadd.f32 %v1558, %v1559
        %v1561 = vsel %vm819, %v614, 0.0
        %v1562 = vrot.slane %v1561, 4
        %v1563 = vadd.f32 %v1561, %v1562
        %v1564 = vrot.slane %v1563, 2
        %v1565 = vadd.f32 %v1563, %v1564
        %v1566 = vrot.slane %v1565, 1
        %v1567 = vadd.f32 %v1565, %v1566
        %v1568 = vrot.slane %v615, 4
        %v1569 = vadd.f32 %v615, %v1568
        %v1570 = vrot.slane %v1569, 2
        %v1571 = vadd.f32 %v1569, %v1570
        %v1572 = vrot.slane %v1571, 1
        %v1573 = vadd.f32 %v1571, %v1572
        %v1574 = vrot.slane %v616, 4
        %v1575 = vadd.f32 %v616, %v1574
        %v1576 = vrot.slane %v1575, 2
        %v1577 = vadd.f32 %v1575, %v1576
        %v1578 = vrot.slane %v1577, 1
        %v1579 = vadd.f32 %v1577, %v1578
        %v1580 = vsel %vm819, %v617, 0.0
        %v1581 = vrot.slane %v1580, 4
        %v1582 = vadd.f32 %v1580, %v1581
        %v1583 = vrot.slane %v1582, 2
        %v1584 = vadd.f32 %v1582, %v1583
        %v1585 = vrot.slane %v1584, 1
        %v1586 = vadd.f32 %v1584, %v1585
        %v1587 = vrot.slane %v618, 4
        %v1588 = vadd.f32 %v618, %v1587
        %v1589 = vrot.slane %v1588, 2
        %v1590 = vadd.f32 %v1588, %v1589
        %v1591 = vrot.slane %v1590, 1
        %v1592 = vadd.f32 %v1590, %v1591
        %v1593 = vrot.slane %v619, 4
        %v1594 = vadd.f32 %v619, %v1593
        %v1595 = vrot.slane %v1594, 2
        %v1596 = vadd.f32 %v1594, %v1595
        %v1597 = vrot.slane %v1596, 1
        %v1598 = vadd.f32 %v1596, %v1597
        %v1599 = vsel %vm819, %v620, 0.0
        %v1600 = vrot.slane %v1599, 4
        %v1601 = vadd.f32 %v1599, %v1600
        %v1602 = vrot.slane %v1601, 2
        %v1603 = vadd.f32 %v1601, %v1602
        %v1604 = vrot.slane %v1603, 1
        %v1605 = vadd.f32 %v1603, %v1604
        %v1606 = vrot.slane %v621, 4
        %v1607 = vadd.f32 %v621, %v1606
        %v1608 = vrot.slane %v1607, 2
        %v1609 = vadd.f32 %v1607, %v1608
        %v1610 = vrot.slane %v1609, 1
        %v1611 = vadd.f32 %v1609, %v1610
        %v1612 = vrot.slane %v622, 4
        %v1613 = vadd.f32 %v622, %v1612
        %v1614 = vrot.slane %v1613, 2
        %v1615 = vadd.f32 %v1613, %v1614
        %v1616 = vrot.slane %v1615, 1
        %v1617 = vadd.f32 %v1615, %v1616
        %v1618 = vsel %vm819, %v623, 0.0
        %v1619 = vrot.slane %v1618, 4
        %v1620 = vadd.f32 %v1618, %v1619
        %v1621 = vrot.slane %v1620, 2
        %v1622 = vadd.f32 %v1620, %v1621
        %v1623 = vrot.slane %v1622, 1
        %v1624 = vadd.f32 %v1622, %v1623
        %v1625 = vrot.slane %v624, 4
        %v1626 = vadd.f32 %v624, %v1625
        %v1627 = vrot.slane %v1626, 2
        %v1628 = vadd.f32 %v1626, %v1627
        %v1629 = vrot.slane %v1628, 1
        %v1630 = vadd.f32 %v1628, %v1629
        %v1631 = vrot.slane %v625, 4
        %v1632 = vadd.f32 %v625, %v1631
        %v1633 = vrot.slane %v1632, 2
        %v1634 = vadd.f32 %v1632, %v1633
        %v1635 = vrot.slane %v1634, 1
        %v1636 = vadd.f32 %v1634, %v1635
        %v1637 = vsel %vm819, %v626, 0.0
        %v1638 = vrot.slane %v1637, 4
        %v1639 = vadd.f32 %v1637, %v1638
        %v1640 = vrot.slane %v1639, 2
        %v1641 = vadd.f32 %v1639, %v1640
        %v1642 = vrot.slane %v1641, 1
        %v1643 = vadd.f32 %v1641, %v1642
        %v1644 = vrot.slane %v627, 4
        %v1645 = vadd.f32 %v627, %v1644
        %v1646 = vrot.slane %v1645, 2
        %v1647 = vadd.f32 %v1645, %v1646
        %v1648 = vrot.slane %v1647, 1
        %v1649 = vadd.f32 %v1647, %v1648
        %v1650 = vrot.slane %v628, 4
        %v1651 = vadd.f32 %v628, %v1650
        %v1652 = vrot.slane %v1651, 2
        %v1653 = vadd.f32 %v1651, %v1652
        %v1654 = vrot.slane %v1653, 1
        %v1655 = vadd.f32 %v1653, %v1654
        %v1656 = vsel %vm819, %v629, 0.0
        %v1657 = vrot.slane %v1656, 4
        %v1658 = vadd.f32 %v1656, %v1657
        %v1659 = vrot.slane %v1658, 2
        %v1660 = vadd.f32 %v1658, %v1659
        %v1661 = vrot.slane %v1660, 1
        %v1662 = vadd.f32 %v1660, %v1661
        %v1663 = vrot.slane %v630, 4
        %v1664 = vadd.f32 %v630, %v1663
        %v1665 = vrot.slane %v1664, 2
        %v1666 = vadd.f32 %v1664, %v1665
        %v1667 = vrot.slane %v1666, 1
        %v1668 = vadd.f32 %v1666, %v1667
        %v1669 = vrot.slane %v631, 4
        %v1670 = vadd.f32 %v631, %v1669
        %v1671 = vrot.slane %v1670, 2
        %v1672 = vadd.f32 %v1670, %v1671
        %v1673 = vrot.slane %v1672, 1
        %v1674 = vadd.f32 %v1672, %v1673
        %v1675 = vsel %vm819, %v632, 0.0
        %v1676 = vrot.slane %v1675, 4
        %v1677 = vadd.f32 %v1675, %v1676
        %v1678 = vrot.slane %v1677, 2
        %v1679 = vadd.f32 %v1677, %v1678
        %v1680 = vrot.slane %v1679, 1
        %v1681 = vadd.f32 %v1679, %v1680
        %v1682 = vrot.slane %v633, 4
        %v1683 = vadd.f32 %v633, %v1682
        %v1684 = vrot.slane %v1683, 2
        %v1685 = vadd.f32 %v1683, %v1684
        %v1686 = vrot.slane %v1685, 1
        %v1687 = vadd.f32 %v1685, %v1686
        %v1688 = vrot.slane %v634, 4
        %v1689 = vadd.f32 %v634, %v1688
        %v1690 = vrot.slane %v1689, 2
        %v1691 = vadd.f32 %v1689, %v1690
        %v1692 = vrot.slane %v1691, 1
        %v1693 = vadd.f32 %v1691, %v1692
        %v1694 = vsel %vm819, %v635, 0.0
        %v1695 = vrot.slane %v1694, 4
        %v1696 = vadd.f32 %v1694, %v1695
        %v1697 = vrot.slane %v1696, 2
        %v1698 = vadd.f32 %v1696, %v1697
        %v1699 = vrot.slane %v1698, 1
        %v1700 = vadd.f32 %v1698, %v1699
        %v1701 = vrot.slane %v636, 4
        %v1702 = vadd.f32 %v636, %v1701
        %v1703 = vrot.slane %v1702, 2
        %v1704 = vadd.f32 %v1702, %v1703
        %v1705 = vrot.slane %v1704, 1
        %v1706 = vadd.f32 %v1704, %v1705
        %v1707 = vrot.slane %v637, 4
        %v1708 = vadd.f32 %v637, %v1707
        %v1709 = vrot.slane %v1708, 2
        %v1710 = vadd.f32 %v1708, %v1709
        %v1711 = vrot.slane %v1710, 1
        %v1712 = vadd.f32 %v1710, %v1711
        %v1713 = vsel %vm819, %v638, 0.0
        %v1714 = vrot.slane %v1713, 4
        %v1715 = vadd.f32 %v1713, %v1714
        %v1716 = vrot.slane %v1715, 2
        %v1717 = vadd.f32 %v1715, %v1716
        %v1718 = vrot.slane %v1717, 1
        %v1719 = vadd.f32 %v1717, %v1718
        %v1720 = vrot.slane %v639, 4
        %v1721 = vadd.f32 %v639, %v1720
        %v1722 = vrot.slane %v1721, 2
        %v1723 = vadd.f32 %v1721, %v1722
        %v1724 = vrot.slane %v1723, 1
        %v1725 = vadd.f32 %v1723, %v1724
        %v1726 = vrot.slane %v640, 4
        %v1727 = vadd.f32 %v640, %v1726
        %v1728 = vrot.slane %v1727, 2
        %v1729 = vadd.f32 %v1727, %v1728
        %v1730 = vrot.slane %v1729, 1
        %v1731 = vadd.f32 %v1729, %v1730
        %v1732 = vsel %vm819, %v641, 0.0
        %v1733 = vrot.slane %v1732, 4
        %v1734 = vadd.f32 %v1732, %v1733
        %v1735 = vrot.slane %v1734, 2
        %v1736 = vadd.f32 %v1734, %v1735
        %v1737 = vrot.slane %v1736, 1
        %v1738 = vadd.f32 %v1736, %v1737
        %v1739 = vrot.slane %v642, 4
        %v1740 = vadd.f32 %v642, %v1739
        %v1741 = vrot.slane %v1740, 2
        %v1742 = vadd.f32 %v1740, %v1741
        %v1743 = vrot.slane %v1742, 1
        %v1744 = vadd.f32 %v1742, %v1743
        %v1745 = vrot.slane %v643, 4
        %v1746 = vadd.f32 %v643, %v1745
        %v1747 = vrot.slane %v1746, 2
        %v1748 = vadd.f32 %v1746, %v1747
        %v1749 = vrot.slane %v1748, 1
        %v1750 = vadd.f32 %v1748, %v1749
        %v1751 = vsel %vm819, %v644, 0.0
        %v1752 = vrot.slane %v1751, 4
        %v1753 = vadd.f32 %v1751, %v1752
        %v1754 = vrot.slane %v1753, 2
        %v1755 = vadd.f32 %v1753, %v1754
        %v1756 = vrot.slane %v1755, 1
        %v1757 = vadd.f32 %v1755, %v1756
        %v1758 = vrot.slane %v645, 4
        %v1759 = vadd.f32 %v645, %v1758
        %v1760 = vrot.slane %v1759, 2
        %v1761 = vadd.f32 %v1759, %v1760
        %v1762 = vrot.slane %v1761, 1
        %v1763 = vadd.f32 %v1761, %v1762
        %v1764 = vrot.slane %v646, 4
        %v1765 = vadd.f32 %v646, %v1764
        %v1766 = vrot.slane %v1765, 2
        %v1767 = vadd.f32 %v1765, %v1766
        %v1768 = vrot.slane %v1767, 1
        %v1769 = vadd.f32 %v1767, %v1768
        %v1770 = vsel %vm819, %v647, 0.0
        %v1771 = vrot.slane %v1770, 4
        %v1772 = vadd.f32 %v1770, %v1771
        %v1773 = vrot.slane %v1772, 2
        %v1774 = vadd.f32 %v1772, %v1773
        %v1775 = vrot.slane %v1774, 1
        %v1776 = vadd.f32 %v1774, %v1775
        %v1777 = vrot.slane %v648, 4
        %v1778 = vadd.f32 %v648, %v1777
        %v1779 = vrot.slane %v1778, 2
        %v1780 = vadd.f32 %v1778, %v1779
        %v1781 = vrot.slane %v1780, 1
        %v1782 = vadd.f32 %v1780, %v1781
        %v1783 = vrot.slane %v649, 4
        %v1784 = vadd.f32 %v649, %v1783
        %v1785 = vrot.slane %v1784, 2
        %v1786 = vadd.f32 %v1784, %v1785
        %v1787 = vrot.slane %v1786, 1
        %v1788 = vadd.f32 %v1786, %v1787
        %v1789 = vsel %vm819, %v650, 0.0
        %v1790 = vrot.slane %v1789, 4
        %v1791 = vadd.f32 %v1789, %v1790
        %v1792 = vrot.slane %v1791, 2
        %v1793 = vadd.f32 %v1791, %v1792
        %v1794 = vrot.slane %v1793, 1
        %v1795 = vadd.f32 %v1793, %v1794
        %v1796 = vrot.slane %v651, 4
        %v1797 = vadd.f32 %v651, %v1796
        %v1798 = vrot.slane %v1797, 2
        %v1799 = vadd.f32 %v1797, %v1798
        %v1800 = vrot.slane %v1799, 1
        %v1801 = vadd.f32 %v1799, %v1800
        %v1802 = vrot.slane %v652, 4
        %v1803 = vadd.f32 %v652, %v1802
        %v1804 = vrot.slane %v1803, 2
        %v1805 = vadd.f32 %v1803, %v1804
        %v1806 = vrot.slane %v1805, 1
        %v1807 = vadd.f32 %v1805, %v1806
        %v1808 = vsel %vm819, %v653, 0.0
        %v1809 = vrot.slane %v1808, 4
        %v1810 = vadd.f32 %v1808, %v1809
        %v1811 = vrot.slane %v1810, 2
        %v1812 = vadd.f32 %v1810, %v1811
        %v1813 = vrot.slane %v1812, 1
        %v1814 = vadd.f32 %v1812, %v1813
        %v1815 = vrot.slane %v654, 4
        %v1816 = vadd.f32 %v654, %v1815
        %v1817 = vrot.slane %v1816, 2
        %v1818 = vadd.f32 %v1816, %v1817
        %v1819 = vrot.slane %v1818, 1
        %v1820 = vadd.f32 %v1818, %v1819
        %v1821 = vrot.slane %v655, 4
        %v1822 = vadd.f32 %v655, %v1821
        %v1823 = vrot.slane %v1822, 2
        %v1824 = vadd.f32 %v1822, %v1823
        %v1825 = vrot.slane %v1824, 1
        %v1826 = vadd.f32 %v1824, %v1825
        %v1827 = vsel %vm819, %v656, 0.0
        %v1828 = vrot.slane %v1827, 4
        %v1829 = vadd.f32 %v1827, %v1828
        %v1830 = vrot.slane %v1829, 2
        %v1831 = vadd.f32 %v1829, %v1830
        %v1832 = vrot.slane %v1831, 1
        %v1833 = vadd.f32 %v1831, %v1832
        %v1834 = vrot.slane %v657, 4
        %v1835 = vadd.f32 %v657, %v1834
        %v1836 = vrot.slane %v1835, 2
        %v1837 = vadd.f32 %v1835, %v1836
        %v1838 = vrot.slane %v1837, 1
        %v1839 = vadd.f32 %v1837, %v1838
        %v1840 = vrot.slane %v658, 4
        %v1841 = vadd.f32 %v658, %v1840
        %v1842 = vrot.slane %v1841, 2
        %v1843 = vadd.f32 %v1841, %v1842
        %v1844 = vrot.slane %v1843, 1
        %v1845 = vadd.f32 %v1843, %v1844
        %v1846 = vsel %vm819, %v659, 0.0
        %v1847 = vrot.slane %v1846, 4
        %v1848 = vadd.f32 %v1846, %v1847
        %v1849 = vrot.slane %v1848, 2
        %v1850 = vadd.f32 %v1848, %v1849
        %v1851 = vrot.slane %v1850, 1
        %v1852 = vadd.f32 %v1850, %v1851
        %v1853 = vrot.slane %v660, 4
        %v1854 = vadd.f32 %v660, %v1853
        %v1855 = vrot.slane %v1854, 2
        %v1856 = vadd.f32 %v1854, %v1855
        %v1857 = vrot.slane %v1856, 1
        %v1858 = vadd.f32 %v1856, %v1857
        %v1859 = vrot.slane %v661, 4
        %v1860 = vadd.f32 %v661, %v1859
        %v1861 = vrot.slane %v1860, 2
        %v1862 = vadd.f32 %v1860, %v1861
        %v1863 = vrot.slane %v1862, 1
        %v1864 = vadd.f32 %v1862, %v1863
        %v1865 = vsel %vm819, %v662, 0.0
        %v1866 = vrot.slane %v1865, 4
        %v1867 = vadd.f32 %v1865, %v1866
        %v1868 = vrot.slane %v1867, 2
        %v1869 = vadd.f32 %v1867, %v1868
        %v1870 = vrot.slane %v1869, 1
        %v1871 = vadd.f32 %v1869, %v1870
        %v1872 = vrot.slane %v663, 4
        %v1873 = vadd.f32 %v663, %v1872
        %v1874 = vrot.slane %v1873, 2
        %v1875 = vadd.f32 %v1873, %v1874
        %v1876 = vrot.slane %v1875, 1
        %v1877 = vadd.f32 %v1875, %v1876
        %v1878 = vrot.slane %v664, 4
        %v1879 = vadd.f32 %v664, %v1878
        %v1880 = vrot.slane %v1879, 2
        %v1881 = vadd.f32 %v1879, %v1880
        %v1882 = vrot.slane %v1881, 1
        %v1883 = vadd.f32 %v1881, %v1882
        %v1884 = vsel %vm819, %v665, 0.0
        %v1885 = vrot.slane %v1884, 4
        %v1886 = vadd.f32 %v1884, %v1885
        %v1887 = vrot.slane %v1886, 2
        %v1888 = vadd.f32 %v1886, %v1887
        %v1889 = vrot.slane %v1888, 1
        %v1890 = vadd.f32 %v1888, %v1889
        %v1891 = vrot.slane %v666, 4
        %v1892 = vadd.f32 %v666, %v1891
        %v1893 = vrot.slane %v1892, 2
        %v1894 = vadd.f32 %v1892, %v1893
        %v1895 = vrot.slane %v1894, 1
        %v1896 = vadd.f32 %v1894, %v1895
        %v1897 = vrot.slane %v667, 4
        %v1898 = vadd.f32 %v667, %v1897
        %v1899 = vrot.slane %v1898, 2
        %v1900 = vadd.f32 %v1898, %v1899
        %v1901 = vrot.slane %v1900, 1
        %v1902 = vadd.f32 %v1900, %v1901
        %v1903 = vsel %vm819, %v668, 0.0
        %v1904 = vrot.slane %v1903, 4
        %v1905 = vadd.f32 %v1903, %v1904
        %v1906 = vrot.slane %v1905, 2
        %v1907 = vadd.f32 %v1905, %v1906
        %v1908 = vrot.slane %v1907, 1
        %v1909 = vadd.f32 %v1907, %v1908
        %v1910 = vrot.slane %v669, 4
        %v1911 = vadd.f32 %v669, %v1910
        %v1912 = vrot.slane %v1911, 2
        %v1913 = vadd.f32 %v1911, %v1912
        %v1914 = vrot.slane %v1913, 1
        %v1915 = vadd.f32 %v1913, %v1914
        %v1916 = vrot.slane %v670, 4
        %v1917 = vadd.f32 %v670, %v1916
        %v1918 = vrot.slane %v1917, 2
        %v1919 = vadd.f32 %v1917, %v1918
        %v1920 = vrot.slane %v1919, 1
        %v1921 = vadd.f32 %v1919, %v1920
        %v1922 = vsel %vm819, %v671, 0.0
        %v1923 = vrot.slane %v1922, 4
        %v1924 = vadd.f32 %v1922, %v1923
        %v1925 = vrot.slane %v1924, 2
        %v1926 = vadd.f32 %v1924, %v1925
        %v1927 = vrot.slane %v1926, 1
        %v1928 = vadd.f32 %v1926, %v1927
        %v1929 = vrot.slane %v672, 4
        %v1930 = vadd.f32 %v672, %v1929
        %v1931 = vrot.slane %v1930, 2
        %v1932 = vadd.f32 %v1930, %v1931
        %v1933 = vrot.slane %v1932, 1
        %v1934 = vadd.f32 %v1932, %v1933
        %v1935 = vrot.slane %v673, 4
        %v1936 = vadd.f32 %v673, %v1935
        %v1937 = vrot.slane %v1936, 2
        %v1938 = vadd.f32 %v1936, %v1937
        %v1939 = vrot.slane %v1938, 1
        %v1940 = vadd.f32 %v1938, %v1939
        %v1941 = vsel %vm819, %v674, 0.0
        %v1942 = vrot.slane %v1941, 4
        %v1943 = vadd.f32 %v1941, %v1942
        %v1944 = vrot.slane %v1943, 2
        %v1945 = vadd.f32 %v1943, %v1944
        %v1946 = vrot.slane %v1945, 1
        %v1947 = vadd.f32 %v1945, %v1946
        %v1948 = vrot.slane %v675, 4
        %v1949 = vadd.f32 %v675, %v1948
        %v1950 = vrot.slane %v1949, 2
        %v1951 = vadd.f32 %v1949, %v1950
        %v1952 = vrot.slane %v1951, 1
        %v1953 = vadd.f32 %v1951, %v1952
        %v1954 = vrot.slane %v676, 4
        %v1955 = vadd.f32 %v676, %v1954
        %v1956 = vrot.slane %v1955, 2
        %v1957 = vadd.f32 %v1955, %v1956
        %v1958 = vrot.slane %v1957, 1
        %v1959 = vadd.f32 %v1957, %v1958
        %v1960 = vsel %vm819, %v677, 0.0
        %v1961 = vrot.slane %v1960, 4
        %v1962 = vadd.f32 %v1960, %v1961
        %v1963 = vrot.slane %v1962, 2
        %v1964 = vadd.f32 %v1962, %v1963
        %v1965 = vrot.slane %v1964, 1
        %v1966 = vadd.f32 %v1964, %v1965
        %v1967 = vrot.slane %v678, 4
        %v1968 = vadd.f32 %v678, %v1967
        %v1969 = vrot.slane %v1968, 2
        %v1970 = vadd.f32 %v1968, %v1969
        %v1971 = vrot.slane %v1970, 1
        %v1972 = vadd.f32 %v1970, %v1971
        %v1973 = vrot.slane %v679, 4
        %v1974 = vadd.f32 %v679, %v1973
        %v1975 = vrot.slane %v1974, 2
        %v1976 = vadd.f32 %v1974, %v1975
        %v1977 = vrot.slane %v1976, 1
        %v1978 = vadd.f32 %v1976, %v1977
        %v1979 = vsel %vm819, %v680, 0.0
        %v1980 = vrot.slane %v1979, 4
        %v1981 = vadd.f32 %v1979, %v1980
        %v1982 = vrot.slane %v1981, 2
        %v1983 = vadd.f32 %v1981, %v1982
        %v1984 = vrot.slane %v1983, 1
        %v1985 = vadd.f32 %v1983, %v1984
        %v1986 = vrot.slane %v681, 4
        %v1987 = vadd.f32 %v681, %v1986
        %v1988 = vrot.slane %v1987, 2
        %v1989 = vadd.f32 %v1987, %v1988
        %v1990 = vrot.slane %v1989, 1
        %v1991 = vadd.f32 %v1989, %v1990
        %v1992 = vrot.slane %v682, 4
        %v1993 = vadd.f32 %v682, %v1992
        %v1994 = vrot.slane %v1993, 2
        %v1995 = vadd.f32 %v1993, %v1994
        %v1996 = vrot.slane %v1995, 1
        %v1997 = vadd.f32 %v1995, %v1996
        %v1998 = vsel %vm819, %v683, 0.0
        %v1999 = vrot.slane %v1998, 4
        %v2000 = vadd.f32 %v1998, %v1999
        %v2001 = vrot.slane %v2000, 2
        %v2002 = vadd.f32 %v2000, %v2001
        %v2003 = vrot.slane %v2002, 1
        %v2004 = vadd.f32 %v2002, %v2003
        %v2005 = vrot.slane %v684, 4
        %v2006 = vadd.f32 %v684, %v2005
        %v2007 = vrot.slane %v2006, 2
        %v2008 = vadd.f32 %v2006, %v2007
        %v2009 = vrot.slane %v2008, 1
        %v2010 = vadd.f32 %v2008, %v2009
        %v2011 = vrot.slane %v685, 4
        %v2012 = vadd.f32 %v685, %v2011
        %v2013 = vrot.slane %v2012, 2
        %v2014 = vadd.f32 %v2012, %v2013
        %v2015 = vrot.slane %v2014, 1
        %v2016 = vadd.f32 %v2014, %v2015
        %v2017 = vsel %vm819, %v686, 0.0
        %v2018 = vrot.slane %v2017, 4
        %v2019 = vadd.f32 %v2017, %v2018
        %v2020 = vrot.slane %v2019, 2
        %v2021 = vadd.f32 %v2019, %v2020
        %v2022 = vrot.slane %v2021, 1
        %v2023 = vadd.f32 %v2021, %v2022
        %v2024 = vrot.slane %v687, 4
        %v2025 = vadd.f32 %v687, %v2024
        %v2026 = vrot.slane %v2025, 2
        %v2027 = vadd.f32 %v2025, %v2026
        %v2028 = vrot.slane %v2027, 1
        %v2029 = vadd.f32 %v2027, %v2028
        %v2030 = vrot.slane %v688, 4
        %v2031 = vadd.f32 %v688, %v2030
        %v2032 = vrot.slane %v2031, 2
        %v2033 = vadd.f32 %v2031, %v2032
        %v2034 = vrot.slane %v2033, 1
        %v2035 = vadd.f32 %v2033, %v2034
        %v2036 = vsel %vm819, %v689, 0.0
        %v2037 = vrot.slane %v2036, 4
        %v2038 = vadd.f32 %v2036, %v2037
        %v2039 = vrot.slane %v2038, 2
        %v2040 = vadd.f32 %v2038, %v2039
        %v2041 = vrot.slane %v2040, 1
        %v2042 = vadd.f32 %v2040, %v2041
        %v2043 = vrot.slane %v690, 4
        %v2044 = vadd.f32 %v690, %v2043
        %v2045 = vrot.slane %v2044, 2
        %v2046 = vadd.f32 %v2044, %v2045
        %v2047 = vrot.slane %v2046, 1
        %v2048 = vadd.f32 %v2046, %v2047
        %v2049 = vrot.slane %v691, 4
        %v2050 = vadd.f32 %v691, %v2049
        %v2051 = vrot.slane %v2050, 2
        %v2052 = vadd.f32 %v2050, %v2051
        %v2053 = vrot.slane %v2052, 1
        %v2054 = vadd.f32 %v2052, %v2053
        %v2055 = vsel %vm819, %v692, 0.0
        %v2056 = vrot.slane %v2055, 4
        %v2057 = vadd.f32 %v2055, %v2056
        %v2058 = vrot.slane %v2057, 2
        %v2059 = vadd.f32 %v2057, %v2058
        %v2060 = vrot.slane %v2059, 1
        %v2061 = vadd.f32 %v2059, %v2060
        %v2062 = vrot.slane %v693, 4
        %v2063 = vadd.f32 %v693, %v2062
        %v2064 = vrot.slane %v2063, 2
        %v2065 = vadd.f32 %v2063, %v2064
        %v2066 = vrot.slane %v2065, 1
        %v2067 = vadd.f32 %v2065, %v2066
        %v2068 = vrot.slane %v694, 4
        %v2069 = vadd.f32 %v694, %v2068
        %v2070 = vrot.slane %v2069, 2
        %v2071 = vadd.f32 %v2069, %v2070
        %v2072 = vrot.slane %v2071, 1
        %v2073 = vadd.f32 %v2071, %v2072
        %v2074 = vsel %vm819, %v695, 0.0
        %v2075 = vrot.slane %v2074, 4
        %v2076 = vadd.f32 %v2074, %v2075
        %v2077 = vrot.slane %v2076, 2
        %v2078 = vadd.f32 %v2076, %v2077
        %v2079 = vrot.slane %v2078, 1
        %v2080 = vadd.f32 %v2078, %v2079
        %v2081 = vrot.slane %v696, 4
        %v2082 = vadd.f32 %v696, %v2081
        %v2083 = vrot.slane %v2082, 2
        %v2084 = vadd.f32 %v2082, %v2083
        %v2085 = vrot.slane %v2084, 1
        %v2086 = vadd.f32 %v2084, %v2085
        %v2087 = vrot.slane %v697, 4
        %v2088 = vadd.f32 %v697, %v2087
        %v2089 = vrot.slane %v2088, 2
        %v2090 = vadd.f32 %v2088, %v2089
        %v2091 = vrot.slane %v2090, 1
        %v2092 = vadd.f32 %v2090, %v2091
        %v2093 = vsel %vm819, %v698, 0.0
        %v2094 = vrot.slane %v2093, 4
        %v2095 = vadd.f32 %v2093, %v2094
        %v2096 = vrot.slane %v2095, 2
        %v2097 = vadd.f32 %v2095, %v2096
        %v2098 = vrot.slane %v2097, 1
        %v2099 = vadd.f32 %v2097, %v2098
        %v2100 = vrot.slane %v699, 4
        %v2101 = vadd.f32 %v699, %v2100
        %v2102 = vrot.slane %v2101, 2
        %v2103 = vadd.f32 %v2101, %v2102
        %v2104 = vrot.slane %v2103, 1
        %v2105 = vadd.f32 %v2103, %v2104
        %v2106 = vrot.slane %v700, 4
        %v2107 = vadd.f32 %v700, %v2106
        %v2108 = vrot.slane %v2107, 2
        %v2109 = vadd.f32 %v2107, %v2108
        %v2110 = vrot.slane %v2109, 1
        %v2111 = vadd.f32 %v2109, %v2110
        %v2112 = vsel %vm819, %v701, 0.0
        %v2113 = vrot.slane %v2112, 4
        %v2114 = vadd.f32 %v2112, %v2113
        %v2115 = vrot.slane %v2114, 2
        %v2116 = vadd.f32 %v2114, %v2115
        %v2117 = vrot.slane %v2116, 1
        %v2118 = vadd.f32 %v2116, %v2117
        %v2119 = vrot.slane %v702, 4
        %v2120 = vadd.f32 %v702, %v2119
        %v2121 = vrot.slane %v2120, 2
        %v2122 = vadd.f32 %v2120, %v2121
        %v2123 = vrot.slane %v2122, 1
        %v2124 = vadd.f32 %v2122, %v2123
        %v2125 = vrot.slane %v703, 4
        %v2126 = vadd.f32 %v703, %v2125
        %v2127 = vrot.slane %v2126, 2
        %v2128 = vadd.f32 %v2126, %v2127
        %v2129 = vrot.slane %v2128, 1
        %v2130 = vadd.f32 %v2128, %v2129
        %v2131 = vsel %vm819, %v704, 0.0
        %v2132 = vrot.slane %v2131, 4
        %v2133 = vadd.f32 %v2131, %v2132
        %v2134 = vrot.slane %v2133, 2
        %v2135 = vadd.f32 %v2133, %v2134
        %v2136 = vrot.slane %v2135, 1
        %v2137 = vadd.f32 %v2135, %v2136
        %v2138 = vrot.slane %v705, 4
        %v2139 = vadd.f32 %v705, %v2138
        %v2140 = vrot.slane %v2139, 2
        %v2141 = vadd.f32 %v2139, %v2140
        %v2142 = vrot.slane %v2141, 1
        %v2143 = vadd.f32 %v2141, %v2142
        %v2144 = vrot.slane %v706, 4
        %v2145 = vadd.f32 %v706, %v2144
        %v2146 = vrot.slane %v2145, 2
        %v2147 = vadd.f32 %v2145, %v2146
        %v2148 = vrot.slane %v2147, 1
        %v2149 = vadd.f32 %v2147, %v2148
        %v2150 = vsel %vm819, %v707, 0.0
        %v2151 = vrot.slane %v2150, 4
        %v2152 = vadd.f32 %v2150, %v2151
        %v2153 = vrot.slane %v2152, 2
        %v2154 = vadd.f32 %v2152, %v2153
        %v2155 = vrot.slane %v2154, 1
        %v2156 = vadd.f32 %v2154, %v2155
        %v2157 = vrot.slane %v708, 4
        %v2158 = vadd.f32 %v708, %v2157
        %v2159 = vrot.slane %v2158, 2
        %v2160 = vadd.f32 %v2158, %v2159
        %v2161 = vrot.slane %v2160, 1
        %v2162 = vadd.f32 %v2160, %v2161
        %v2163 = vrot.slane %v709, 4
        %v2164 = vadd.f32 %v709, %v2163
        %v2165 = vrot.slane %v2164, 2
        %v2166 = vadd.f32 %v2164, %v2165
        %v2167 = vrot.slane %v2166, 1
        %v2168 = vadd.f32 %v2166, %v2167
        %v2169 = vsel %vm819, %v710, 0.0
        %v2170 = vrot.slane %v2169, 4
        %v2171 = vadd.f32 %v2169, %v2170
        %v2172 = vrot.slane %v2171, 2
        %v2173 = vadd.f32 %v2171, %v2172
        %v2174 = vrot.slane %v2173, 1
        %v2175 = vadd.f32 %v2173, %v2174
        %v2176 = vrot.slane %v711, 4
        %v2177 = vadd.f32 %v711, %v2176
        %v2178 = vrot.slane %v2177, 2
        %v2179 = vadd.f32 %v2177, %v2178
        %v2180 = vrot.slane %v2179, 1
        %v2181 = vadd.f32 %v2179, %v2180
        %v2182 = vrot.slane %v712, 4
        %v2183 = vadd.f32 %v712, %v2182
        %v2184 = vrot.slane %v2183, 2
        %v2185 = vadd.f32 %v2183, %v2184
        %v2186 = vrot.slane %v2185, 1
        %v2187 = vadd.f32 %v2185, %v2186
        %v2188 = vsel %vm819, %v713, 0.0
        %v2189 = vrot.slane %v2188, 4
        %v2190 = vadd.f32 %v2188, %v2189
        %v2191 = vrot.slane %v2190, 2
        %v2192 = vadd.f32 %v2190, %v2191
        %v2193 = vrot.slane %v2192, 1
        %v2194 = vadd.f32 %v2192, %v2193
        %v2195 = vrot.slane %v714, 4
        %v2196 = vadd.f32 %v714, %v2195
        %v2197 = vrot.slane %v2196, 2
        %v2198 = vadd.f32 %v2196, %v2197
        %v2199 = vrot.slane %v2198, 1
        %v2200 = vadd.f32 %v2198, %v2199
        %v2201 = vrot.slane %v715, 4
        %v2202 = vadd.f32 %v715, %v2201
        %v2203 = vrot.slane %v2202, 2
        %v2204 = vadd.f32 %v2202, %v2203
        %v2205 = vrot.slane %v2204, 1
        %v2206 = vadd.f32 %v2204, %v2205
        %v2207 = vsel %vm819, %v716, 0.0
        %v2208 = vrot.slane %v2207, 4
        %v2209 = vadd.f32 %v2207, %v2208
        %v2210 = vrot.slane %v2209, 2
        %v2211 = vadd.f32 %v2209, %v2210
        %v2212 = vrot.slane %v2211, 1
        %v2213 = vadd.f32 %v2211, %v2212
        %v2214 = vrot.slane %v717, 4
        %v2215 = vadd.f32 %v717, %v2214
        %v2216 = vrot.slane %v2215, 2
        %v2217 = vadd.f32 %v2215, %v2216
        %v2218 = vrot.slane %v2217, 1
        %v2219 = vadd.f32 %v2217, %v2218
        %v2220 = vrot.slane %v718, 4
        %v2221 = vadd.f32 %v718, %v2220
        %v2222 = vrot.slane %v2221, 2
        %v2223 = vadd.f32 %v2221, %v2222
        %v2224 = vrot.slane %v2223, 1
        %v2225 = vadd.f32 %v2223, %v2224
        %v2226 = vsel %vm819, %v719, 0.0
        %v2227 = vrot.slane %v2226, 4
        %v2228 = vadd.f32 %v2226, %v2227
        %v2229 = vrot.slane %v2228, 2
        %v2230 = vadd.f32 %v2228, %v2229
        %v2231 = vrot.slane %v2230, 1
        %v2232 = vadd.f32 %v2230, %v2231
        %v2233 = vrot.slane %v720, 4
        %v2234 = vadd.f32 %v720, %v2233
        %v2235 = vrot.slane %v2234, 2
        %v2236 = vadd.f32 %v2234, %v2235
        %v2237 = vrot.slane %v2236, 1
        %v2238 = vadd.f32 %v2236, %v2237
        %v2239 = vrot.slane %v721, 4
        %v2240 = vadd.f32 %v721, %v2239
        %v2241 = vrot.slane %v2240, 2
        %v2242 = vadd.f32 %v2240, %v2241
        %v2243 = vrot.slane %v2242, 1
        %v2244 = vadd.f32 %v2242, %v2243
        %v2245 = vsel %vm819, %v722, 0.0
        %v2246 = vrot.slane %v2245, 4
        %v2247 = vadd.f32 %v2245, %v2246
        %v2248 = vrot.slane %v2247, 2
        %v2249 = vadd.f32 %v2247, %v2248
        %v2250 = vrot.slane %v2249, 1
        %v2251 = vadd.f32 %v2249, %v2250
        %v2252 = vrot.slane %v723, 4
        %v2253 = vadd.f32 %v723, %v2252
        %v2254 = vrot.slane %v2253, 2
        %v2255 = vadd.f32 %v2253, %v2254
        %v2256 = vrot.slane %v2255, 1
        %v2257 = vadd.f32 %v2255, %v2256
        %v2258 = vrot.slane %v724, 4
        %v2259 = vadd.f32 %v724, %v2258
        %v2260 = vrot.slane %v2259, 2
        %v2261 = vadd.f32 %v2259, %v2260
        %v2262 = vrot.slane %v2261, 1
        %v2263 = vadd.f32 %v2261, %v2262
        %v2264 = vsel %vm819, %v725, 0.0
        %v2265 = vrot.slane %v2264, 4
        %v2266 = vadd.f32 %v2264, %v2265
        %v2267 = vrot.slane %v2266, 2
        %v2268 = vadd.f32 %v2266, %v2267
        %v2269 = vrot.slane %v2268, 1
        %v2270 = vadd.f32 %v2268, %v2269
        %v2271 = vrot.slane %v726, 4
        %v2272 = vadd.f32 %v726, %v2271
        %v2273 = vrot.slane %v2272, 2
        %v2274 = vadd.f32 %v2272, %v2273
        %v2275 = vrot.slane %v2274, 1
        %v2276 = vadd.f32 %v2274, %v2275
        %v2277 = vrot.slane %v727, 4
        %v2278 = vadd.f32 %v727, %v2277
        %v2279 = vrot.slane %v2278, 2
        %v2280 = vadd.f32 %v2278, %v2279
        %v2281 = vrot.slane %v2280, 1
        %v2282 = vadd.f32 %v2280, %v2281
        %v2283 = vsel %vm819, %v728, 0.0
        %v2284 = vrot.slane %v2283, 4
        %v2285 = vadd.f32 %v2283, %v2284
        %v2286 = vrot.slane %v2285, 2
        %v2287 = vadd.f32 %v2285, %v2286
        %v2288 = vrot.slane %v2287, 1
        %v2289 = vadd.f32 %v2287, %v2288
        %v2290 = vrot.slane %v729, 4
        %v2291 = vadd.f32 %v729, %v2290
        %v2292 = vrot.slane %v2291, 2
        %v2293 = vadd.f32 %v2291, %v2292
        %v2294 = vrot.slane %v2293, 1
        %v2295 = vadd.f32 %v2293, %v2294
        %v2296 = vrot.slane %v730, 4
        %v2297 = vadd.f32 %v730, %v2296
        %v2298 = vrot.slane %v2297, 2
        %v2299 = vadd.f32 %v2297, %v2298
        %v2300 = vrot.slane %v2299, 1
        %v2301 = vadd.f32 %v2299, %v2300
        %v2302 = vsel %vm819, %v731, 0.0
        %v2303 = vrot.slane %v2302, 4
        %v2304 = vadd.f32 %v2302, %v2303
        %v2305 = vrot.slane %v2304, 2
        %v2306 = vadd.f32 %v2304, %v2305
        %v2307 = vrot.slane %v2306, 1
        %v2308 = vadd.f32 %v2306, %v2307
        %v2309 = vrot.slane %v732, 4
        %v2310 = vadd.f32 %v732, %v2309
        %v2311 = vrot.slane %v2310, 2
        %v2312 = vadd.f32 %v2310, %v2311
        %v2313 = vrot.slane %v2312, 1
        %v2314 = vadd.f32 %v2312, %v2313
        %v2315 = vrot.slane %v733, 4
        %v2316 = vadd.f32 %v733, %v2315
        %v2317 = vrot.slane %v2316, 2
        %v2318 = vadd.f32 %v2316, %v2317
        %v2319 = vrot.slane %v2318, 1
        %v2320 = vadd.f32 %v2318, %v2319
        %v2321 = vsel %vm819, %v734, 0.0
        %v2322 = vrot.slane %v2321, 4
        %v2323 = vadd.f32 %v2321, %v2322
        %v2324 = vrot.slane %v2323, 2
        %v2325 = vadd.f32 %v2323, %v2324
        %v2326 = vrot.slane %v2325, 1
        %v2327 = vadd.f32 %v2325, %v2326
        %v2328 = vrot.slane %v735, 4
        %v2329 = vadd.f32 %v735, %v2328
        %v2330 = vrot.slane %v2329, 2
        %v2331 = vadd.f32 %v2329, %v2330
        %v2332 = vrot.slane %v2331, 1
        %v2333 = vadd.f32 %v2331, %v2332
        %v2334 = vrot.slane %v736, 4
        %v2335 = vadd.f32 %v736, %v2334
        %v2336 = vrot.slane %v2335, 2
        %v2337 = vadd.f32 %v2335, %v2336
        %v2338 = vrot.slane %v2337, 1
        %v2339 = vadd.f32 %v2337, %v2338
        %v2340 = vsel %vm819, %v737, 0.0
        %v2341 = vrot.slane %v2340, 4
        %v2342 = vadd.f32 %v2340, %v2341
        %v2343 = vrot.slane %v2342, 2
        %v2344 = vadd.f32 %v2342, %v2343
        %v2345 = vrot.slane %v2344, 1
        %v2346 = vadd.f32 %v2344, %v2345
        %v2347 = vrot.slane %v738, 4
        %v2348 = vadd.f32 %v738, %v2347
        %v2349 = vrot.slane %v2348, 2
        %v2350 = vadd.f32 %v2348, %v2349
        %v2351 = vrot.slane %v2350, 1
        %v2352 = vadd.f32 %v2350, %v2351
        %v2353 = vrot.slane %v739, 4
        %v2354 = vadd.f32 %v739, %v2353
        %v2355 = vrot.slane %v2354, 2
        %v2356 = vadd.f32 %v2354, %v2355
        %v2357 = vrot.slane %v2356, 1
        %v2358 = vadd.f32 %v2356, %v2357
        %v2359 = vsel %vm819, %v740, 0.0
        %v2360 = vrot.slane %v2359, 4
        %v2361 = vadd.f32 %v2359, %v2360
        %v2362 = vrot.slane %v2361, 2
        %v2363 = vadd.f32 %v2361, %v2362
        %v2364 = vrot.slane %v2363, 1
        %v2365 = vadd.f32 %v2363, %v2364
        %v2366 = vrot.slane %v741, 4
        %v2367 = vadd.f32 %v741, %v2366
        %v2368 = vrot.slane %v2367, 2
        %v2369 = vadd.f32 %v2367, %v2368
        %v2370 = vrot.slane %v2369, 1
        %v2371 = vadd.f32 %v2369, %v2370
        %v2372 = vrot.slane %v742, 4
        %v2373 = vadd.f32 %v742, %v2372
        %v2374 = vrot.slane %v2373, 2
        %v2375 = vadd.f32 %v2373, %v2374
        %v2376 = vrot.slane %v2375, 1
        %v2377 = vadd.f32 %v2375, %v2376
        %v2378 = vsel %vm819, %v743, 0.0
        %v2379 = vrot.slane %v2378, 4
        %v2380 = vadd.f32 %v2378, %v2379
        %v2381 = vrot.slane %v2380, 2
        %v2382 = vadd.f32 %v2380, %v2381
        %v2383 = vrot.slane %v2382, 1
        %v2384 = vadd.f32 %v2382, %v2383
        %v2385 = vrot.slane %v744, 4
        %v2386 = vadd.f32 %v744, %v2385
        %v2387 = vrot.slane %v2386, 2
        %v2388 = vadd.f32 %v2386, %v2387
        %v2389 = vrot.slane %v2388, 1
        %v2390 = vadd.f32 %v2388, %v2389
        %v2391 = vrot.slane %v745, 4
        %v2392 = vadd.f32 %v745, %v2391
        %v2393 = vrot.slane %v2392, 2
        %v2394 = vadd.f32 %v2392, %v2393
        %v2395 = vrot.slane %v2394, 1
        %v2396 = vadd.f32 %v2394, %v2395
        %v2397 = vsel %vm819, %v746, 0.0
        %v2398 = vrot.slane %v2397, 4
        %v2399 = vadd.f32 %v2397, %v2398
        %v2400 = vrot.slane %v2399, 2
        %v2401 = vadd.f32 %v2399, %v2400
        %v2402 = vrot.slane %v2401, 1
        %v2403 = vadd.f32 %v2401, %v2402
        %v2404 = vrot.slane %v747, 4
        %v2405 = vadd.f32 %v747, %v2404
        %v2406 = vrot.slane %v2405, 2
        %v2407 = vadd.f32 %v2405, %v2406
        %v2408 = vrot.slane %v2407, 1
        %v2409 = vadd.f32 %v2407, %v2408
        %v2410 = vrot.slane %v748, 4
        %v2411 = vadd.f32 %v748, %v2410
        %v2412 = vrot.slane %v2411, 2
        %v2413 = vadd.f32 %v2411, %v2412
        %v2414 = vrot.slane %v2413, 1
        %v2415 = vadd.f32 %v2413, %v2414
        %v2416 = vsel %vm819, %v749, 0.0
        %v2417 = vrot.slane %v2416, 4
        %v2418 = vadd.f32 %v2416, %v2417
        %v2419 = vrot.slane %v2418, 2
        %v2420 = vadd.f32 %v2418, %v2419
        %v2421 = vrot.slane %v2420, 1
        %v2422 = vadd.f32 %v2420, %v2421
        %v2423 = vrot.slane %v750, 4
        %v2424 = vadd.f32 %v750, %v2423
        %v2425 = vrot.slane %v2424, 2
        %v2426 = vadd.f32 %v2424, %v2425
        %v2427 = vrot.slane %v2426, 1
        %v2428 = vadd.f32 %v2426, %v2427
        %v2429 = vrot.slane %v751, 4
        %v2430 = vadd.f32 %v751, %v2429
        %v2431 = vrot.slane %v2430, 2
        %v2432 = vadd.f32 %v2430, %v2431
        %v2433 = vrot.slane %v2432, 1
        %v2434 = vadd.f32 %v2432, %v2433
        %v2435 = vsel %vm819, %v752, 0.0
        %v2436 = vrot.slane %v2435, 4
        %v2437 = vadd.f32 %v2435, %v2436
        %v2438 = vrot.slane %v2437, 2
        %v2439 = vadd.f32 %v2437, %v2438
        %v2440 = vrot.slane %v2439, 1
        %v2441 = vadd.f32 %v2439, %v2440
        %v2442 = vrot.slane %v753, 4
        %v2443 = vadd.f32 %v753, %v2442
        %v2444 = vrot.slane %v2443, 2
        %v2445 = vadd.f32 %v2443, %v2444
        %v2446 = vrot.slane %v2445, 1
        %v2447 = vadd.f32 %v2445, %v2446
        %v2448 = vrot.slane %v754, 4
        %v2449 = vadd.f32 %v754, %v2448
        %v2450 = vrot.slane %v2449, 2
        %v2451 = vadd.f32 %v2449, %v2450
        %v2452 = vrot.slane %v2451, 1
        %v2453 = vadd.f32 %v2451, %v2452
        %v2454 = vsel %vm819, %v755, 0.0
        %v2455 = vrot.slane %v2454, 4
        %v2456 = vadd.f32 %v2454, %v2455
        %v2457 = vrot.slane %v2456, 2
        %v2458 = vadd.f32 %v2456, %v2457
        %v2459 = vrot.slane %v2458, 1
        %v2460 = vadd.f32 %v2458, %v2459
        %v2461 = vrot.slane %v756, 4
        %v2462 = vadd.f32 %v756, %v2461
        %v2463 = vrot.slane %v2462, 2
        %v2464 = vadd.f32 %v2462, %v2463
        %v2465 = vrot.slane %v2464, 1
        %v2466 = vadd.f32 %v2464, %v2465
        %v2467 = vrot.slane %v757, 4
        %v2468 = vadd.f32 %v757, %v2467
        %v2469 = vrot.slane %v2468, 2
        %v2470 = vadd.f32 %v2468, %v2469
        %v2471 = vrot.slane %v2470, 1
        %v2472 = vadd.f32 %v2470, %v2471
        %v2473 = vsel %vm819, %v758, 0.0
        %v2474 = vrot.slane %v2473, 4
        %v2475 = vadd.f32 %v2473, %v2474
        %v2476 = vrot.slane %v2475, 2
        %v2477 = vadd.f32 %v2475, %v2476
        %v2478 = vrot.slane %v2477, 1
        %v2479 = vadd.f32 %v2477, %v2478
        %v2480 = vrot.slane %v759, 4
        %v2481 = vadd.f32 %v759, %v2480
        %v2482 = vrot.slane %v2481, 2
        %v2483 = vadd.f32 %v2481, %v2482
        %v2484 = vrot.slane %v2483, 1
        %v2485 = vadd.f32 %v2483, %v2484
        %v2486 = vrot.slane %v760, 4
        %v2487 = vadd.f32 %v760, %v2486
        %v2488 = vrot.slane %v2487, 2
        %v2489 = vadd.f32 %v2487, %v2488
        %v2490 = vrot.slane %v2489, 1
        %v2491 = vadd.f32 %v2489, %v2490
        %v2492 = vsel %vm819, %v761, 0.0
        %v2493 = vrot.slane %v2492, 4
        %v2494 = vadd.f32 %v2492, %v2493
        %v2495 = vrot.slane %v2494, 2
        %v2496 = vadd.f32 %v2494, %v2495
        %v2497 = vrot.slane %v2496, 1
        %v2498 = vadd.f32 %v2496, %v2497
        %v2499 = vrot.slane %v762, 4
        %v2500 = vadd.f32 %v762, %v2499
        %v2501 = vrot.slane %v2500, 2
        %v2502 = vadd.f32 %v2500, %v2501
        %v2503 = vrot.slane %v2502, 1
        %v2504 = vadd.f32 %v2502, %v2503
        %v2505 = vrot.slane %v763, 4
        %v2506 = vadd.f32 %v763, %v2505
        %v2507 = vrot.slane %v2506, 2
        %v2508 = vadd.f32 %v2506, %v2507
        %v2509 = vrot.slane %v2508, 1
        %v2510 = vadd.f32 %v2508, %v2509
        %v2511 = vsel %vm819, %v764, 0.0
        %v2512 = vrot.slane %v2511, 4
        %v2513 = vadd.f32 %v2511, %v2512
        %v2514 = vrot.slane %v2513, 2
        %v2515 = vadd.f32 %v2513, %v2514
        %v2516 = vrot.slane %v2515, 1
        %v2517 = vadd.f32 %v2515, %v2516
        %v2518 = vrot.slane %v765, 4
        %v2519 = vadd.f32 %v765, %v2518
        %v2520 = vrot.slane %v2519, 2
        %v2521 = vadd.f32 %v2519, %v2520
        %v2522 = vrot.slane %v2521, 1
        %v2523 = vadd.f32 %v2521, %v2522
        %v2524 = vrot.slane %v766, 4
        %v2525 = vadd.f32 %v766, %v2524
        %v2526 = vrot.slane %v2525, 2
        %v2527 = vadd.f32 %v2525, %v2526
        %v2528 = vrot.slane %v2527, 1
        %v2529 = vadd.f32 %v2527, %v2528
        %v2530 = vsel %vm819, %v767, 0.0
        %v2531 = vrot.slane %v2530, 4
        %v2532 = vadd.f32 %v2530, %v2531
        %v2533 = vrot.slane %v2532, 2
        %v2534 = vadd.f32 %v2532, %v2533
        %v2535 = vrot.slane %v2534, 1
        %v2536 = vadd.f32 %v2534, %v2535
        %v2537 = vrot.slane %v768, 4
        %v2538 = vadd.f32 %v768, %v2537
        %v2539 = vrot.slane %v2538, 2
        %v2540 = vadd.f32 %v2538, %v2539
        %v2541 = vrot.slane %v2540, 1
        %v2542 = vadd.f32 %v2540, %v2541
        %v2543 = vrot.slane %v769, 4
        %v2544 = vadd.f32 %v769, %v2543
        %v2545 = vrot.slane %v2544, 2
        %v2546 = vadd.f32 %v2544, %v2545
        %v2547 = vrot.slane %v2546, 1
        %v2548 = vadd.f32 %v2546, %v2547
        %v2549 = vsel %vm819, %v770, 0.0
        %v2550 = vrot.slane %v2549, 4
        %v2551 = vadd.f32 %v2549, %v2550
        %v2552 = vrot.slane %v2551, 2
        %v2553 = vadd.f32 %v2551, %v2552
        %v2554 = vrot.slane %v2553, 1
        %v2555 = vadd.f32 %v2553, %v2554
        %v2556 = vrot.slane %v771, 4
        %v2557 = vadd.f32 %v771, %v2556
        %v2558 = vrot.slane %v2557, 2
        %v2559 = vadd.f32 %v2557, %v2558
        %v2560 = vrot.slane %v2559, 1
        %v2561 = vadd.f32 %v2559, %v2560
        %v2562 = vrot.slane %v772, 4
        %v2563 = vadd.f32 %v772, %v2562
        %v2564 = vrot.slane %v2563, 2
        %v2565 = vadd.f32 %v2563, %v2564
        %v2566 = vrot.slane %v2565, 1
        %v2567 = vadd.f32 %v2565, %v2566
        %v2568 = vsel %vm819, %v773, 0.0
        %v2569 = vrot.slane %v2568, 4
        %v2570 = vadd.f32 %v2568, %v2569
        %v2571 = vrot.slane %v2570, 2
        %v2572 = vadd.f32 %v2570, %v2571
        %v2573 = vrot.slane %v2572, 1
        %v2574 = vadd.f32 %v2572, %v2573
        %v2575 = vrot.slane %v774, 4
        %v2576 = vadd.f32 %v774, %v2575
        %v2577 = vrot.slane %v2576, 2
        %v2578 = vadd.f32 %v2576, %v2577
        %v2579 = vrot.slane %v2578, 1
        %v2580 = vadd.f32 %v2578, %v2579
        %v2581 = vrot.slane %v775, 4
        %v2582 = vadd.f32 %v775, %v2581
        %v2583 = vrot.slane %v2582, 2
        %v2584 = vadd.f32 %v2582, %v2583
        %v2585 = vrot.slane %v2584, 1
        %v2586 = vadd.f32 %v2584, %v2585
        %v2587 = vsel %vm819, %v776, 0.0
        %v2588 = vrot.slane %v2587, 4
        %v2589 = vadd.f32 %v2587, %v2588
        %v2590 = vrot.slane %v2589, 2
        %v2591 = vadd.f32 %v2589, %v2590
        %v2592 = vrot.slane %v2591, 1
        %v2593 = vadd.f32 %v2591, %v2592
        %v2594 = vrot.slane %v777, 4
        %v2595 = vadd.f32 %v777, %v2594
        %v2596 = vrot.slane %v2595, 2
        %v2597 = vadd.f32 %v2595, %v2596
        %v2598 = vrot.slane %v2597, 1
        %v2599 = vadd.f32 %v2597, %v2598
        %v2600 = vrot.slane %v778, 4
        %v2601 = vadd.f32 %v778, %v2600
        %v2602 = vrot.slane %v2601, 2
        %v2603 = vadd.f32 %v2601, %v2602
        %v2604 = vrot.slane %v2603, 1
        %v2605 = vadd.f32 %v2603, %v2604
        %v2606 = vsel %vm819, %v779, 0.0
        %v2607 = vrot.slane %v2606, 4
        %v2608 = vadd.f32 %v2606, %v2607
        %v2609 = vrot.slane %v2608, 2
        %v2610 = vadd.f32 %v2608, %v2609
        %v2611 = vrot.slane %v2610, 1
        %v2612 = vadd.f32 %v2610, %v2611
        %v2613 = vrot.slane %v780, 4
        %v2614 = vadd.f32 %v780, %v2613
        %v2615 = vrot.slane %v2614, 2
        %v2616 = vadd.f32 %v2614, %v2615
        %v2617 = vrot.slane %v2616, 1
        %v2618 = vadd.f32 %v2616, %v2617
        %v2619 = vrot.slane %v781, 4
        %v2620 = vadd.f32 %v781, %v2619
        %v2621 = vrot.slane %v2620, 2
        %v2622 = vadd.f32 %v2620, %v2621
        %v2623 = vrot.slane %v2622, 1
        %v2624 = vadd.f32 %v2622, %v2623
        %v2625 = vsel %vm819, %v782, 0.0
        %v2626 = vrot.slane %v2625, 4
        %v2627 = vadd.f32 %v2625, %v2626
        %v2628 = vrot.slane %v2627, 2
        %v2629 = vadd.f32 %v2627, %v2628
        %v2630 = vrot.slane %v2629, 1
        %v2631 = vadd.f32 %v2629, %v2630
        %v2632 = vrot.slane %v783, 4
        %v2633 = vadd.f32 %v783, %v2632
        %v2634 = vrot.slane %v2633, 2
        %v2635 = vadd.f32 %v2633, %v2634
        %v2636 = vrot.slane %v2635, 1
        %v2637 = vadd.f32 %v2635, %v2636
        %v2638 = vrot.slane %v784, 4
        %v2639 = vadd.f32 %v784, %v2638
        %v2640 = vrot.slane %v2639, 2
        %v2641 = vadd.f32 %v2639, %v2640
        %v2642 = vrot.slane %v2641, 1
        %v2643 = vadd.f32 %v2641, %v2642
        %v2644 = vsel %vm819, %v785, 0.0
        %v2645 = vrot.slane %v2644, 4
        %v2646 = vadd.f32 %v2644, %v2645
        %v2647 = vrot.slane %v2646, 2
        %v2648 = vadd.f32 %v2646, %v2647
        %v2649 = vrot.slane %v2648, 1
        %v2650 = vadd.f32 %v2648, %v2649
        %v2651 = vrot.slane %v786, 4
        %v2652 = vadd.f32 %v786, %v2651
        %v2653 = vrot.slane %v2652, 2
        %v2654 = vadd.f32 %v2652, %v2653
        %v2655 = vrot.slane %v2654, 1
        %v2656 = vadd.f32 %v2654, %v2655
        %v2657 = vrot.slane %v787, 4
        %v2658 = vadd.f32 %v787, %v2657
        %v2659 = vrot.slane %v2658, 2
        %v2660 = vadd.f32 %v2658, %v2659
        %v2661 = vrot.slane %v2660, 1
        %v2662 = vadd.f32 %v2660, %v2661
        %v2663 = vsel %vm819, %v788, 0.0
        %v2664 = vrot.slane %v2663, 4
        %v2665 = vadd.f32 %v2663, %v2664
        %v2666 = vrot.slane %v2665, 2
        %v2667 = vadd.f32 %v2665, %v2666
        %v2668 = vrot.slane %v2667, 1
        %v2669 = vadd.f32 %v2667, %v2668
        %v2670 = vrot.slane %v789, 4
        %v2671 = vadd.f32 %v789, %v2670
        %v2672 = vrot.slane %v2671, 2
        %v2673 = vadd.f32 %v2671, %v2672
        %v2674 = vrot.slane %v2673, 1
        %v2675 = vadd.f32 %v2673, %v2674
        %v2676 = vrot.slane %v790, 4
        %v2677 = vadd.f32 %v790, %v2676
        %v2678 = vrot.slane %v2677, 2
        %v2679 = vadd.f32 %v2677, %v2678
        %v2680 = vrot.slane %v2679, 1
        %v2681 = vadd.f32 %v2679, %v2680
        %v2682 = vsel %vm819, %v791, 0.0
        %v2683 = vrot.slane %v2682, 4
        %v2684 = vadd.f32 %v2682, %v2683
        %v2685 = vrot.slane %v2684, 2
        %v2686 = vadd.f32 %v2684, %v2685
        %v2687 = vrot.slane %v2686, 1
        %v2688 = vadd.f32 %v2686, %v2687
        %v2689 = vrot.slane %v792, 4
        %v2690 = vadd.f32 %v792, %v2689
        %v2691 = vrot.slane %v2690, 2
        %v2692 = vadd.f32 %v2690, %v2691
        %v2693 = vrot.slane %v2692, 1
        %v2694 = vadd.f32 %v2692, %v2693
        %v2695 = vrot.slane %v793, 4
        %v2696 = vadd.f32 %v793, %v2695
        %v2697 = vrot.slane %v2696, 2
        %v2698 = vadd.f32 %v2696, %v2697
        %v2699 = vrot.slane %v2698, 1
        %v2700 = vadd.f32 %v2698, %v2699
        %v2701 = vsel %vm819, %v794, 0.0
        %v2702 = vrot.slane %v2701, 4
        %v2703 = vadd.f32 %v2701, %v2702
        %v2704 = vrot.slane %v2703, 2
        %v2705 = vadd.f32 %v2703, %v2704
        %v2706 = vrot.slane %v2705, 1
        %v2707 = vadd.f32 %v2705, %v2706
        %v2708 = vrot.slane %v795, 4
        %v2709 = vadd.f32 %v795, %v2708
        %v2710 = vrot.slane %v2709, 2
        %v2711 = vadd.f32 %v2709, %v2710
        %v2712 = vrot.slane %v2711, 1
        %v2713 = vadd.f32 %v2711, %v2712
        %v2714 = vrot.slane %v796, 4
        %v2715 = vadd.f32 %v796, %v2714
        %v2716 = vrot.slane %v2715, 2
        %v2717 = vadd.f32 %v2715, %v2716
        %v2718 = vrot.slane %v2717, 1
        %v2719 = vadd.f32 %v2717, %v2718
        %v2720 = vsel %vm819, %v797, 0.0
        %v2721 = vrot.slane %v2720, 4
        %v2722 = vadd.f32 %v2720, %v2721
        %v2723 = vrot.slane %v2722, 2
        %v2724 = vadd.f32 %v2722, %v2723
        %v2725 = vrot.slane %v2724, 1
        %v2726 = vadd.f32 %v2724, %v2725
        %v2727 = vrot.slane %v798, 4
        %v2728 = vadd.f32 %v798, %v2727
        %v2729 = vrot.slane %v2728, 2
        %v2730 = vadd.f32 %v2728, %v2729
        %v2731 = vrot.slane %v2730, 1
        %v2732 = vadd.f32 %v2730, %v2731
        %v2733 = vrot.slane %v799, 4
        %v2734 = vadd.f32 %v799, %v2733
        %v2735 = vrot.slane %v2734, 2
        %v2736 = vadd.f32 %v2734, %v2735
        %v2737 = vrot.slane %v2736, 1
        %v2738 = vadd.f32 %v2736, %v2737
        %v2739 = vsel %vm819, %v800, 0.0
        %v2740 = vrot.slane %v2739, 4
        %v2741 = vadd.f32 %v2739, %v2740
        %v2742 = vrot.slane %v2741, 2
        %v2743 = vadd.f32 %v2741, %v2742
        %v2744 = vrot.slane %v2743, 1
        %v2745 = vadd.f32 %v2743, %v2744
        %v2746 = vrot.slane %v801, 4
        %v2747 = vadd.f32 %v801, %v2746
        %v2748 = vrot.slane %v2747, 2
        %v2749 = vadd.f32 %v2747, %v2748
        %v2750 = vrot.slane %v2749, 1
        %v2751 = vadd.f32 %v2749, %v2750
        %v2752 = vrot.slane %v802, 4
        %v2753 = vadd.f32 %v802, %v2752
        %v2754 = vrot.slane %v2753, 2
        %v2755 = vadd.f32 %v2753, %v2754
        %v2756 = vrot.slane %v2755, 1
        %v2757 = vadd.f32 %v2755, %v2756
        %v2758 = vsel %vm819, %v803, 0.0
        %v2759 = vrot.slane %v2758, 4
        %v2760 = vadd.f32 %v2758, %v2759
        %v2761 = vrot.slane %v2760, 2
        %v2762 = vadd.f32 %v2760, %v2761
        %v2763 = vrot.slane %v2762, 1
        %v2764 = vadd.f32 %v2762, %v2763
        %v2765 = vrot.slane %v804, 4
        %v2766 = vadd.f32 %v804, %v2765
        %v2767 = vrot.slane %v2766, 2
        %v2768 = vadd.f32 %v2766, %v2767
        %v2769 = vrot.slane %v2768, 1
        %v2770 = vadd.f32 %v2768, %v2769
        %v2771 = vrot.slane %v805, 4
        %v2772 = vadd.f32 %v805, %v2771
        %v2773 = vrot.slane %v2772, 2
        %v2774 = vadd.f32 %v2772, %v2773
        %v2775 = vrot.slane %v2774, 1
        %v2776 = vadd.f32 %v2774, %v2775
        %v2777 = vsel %vm819, %v806, 0.0
        %v2778 = vrot.slane %v2777, 4
        %v2779 = vadd.f32 %v2777, %v2778
        %v2780 = vrot.slane %v2779, 2
        %v2781 = vadd.f32 %v2779, %v2780
        %v2782 = vrot.slane %v2781, 1
        %v2783 = vadd.f32 %v2781, %v2782
        %v2784 = vld [vmem:[#allocation5] sm:$0xff]
        %v2785 = vld [vmem:[#allocation5 + $0x8] sm:$0xff]
        %v2786 = vld [vmem:[#allocation5 + $0x10] sm:$0xff]
        %v2787 = vld [vmem:[#allocation5 + $0x18] sm:$0xff]
        %v2788 = vld [vmem:[#allocation5 + $0x20] sm:$0xff]
        %v2789 = vld [vmem:[#allocation5 + $0x28] sm:$0xff]
        %v2790 = vld [vmem:[#allocation5 + $0x30] sm:$0xff]
        %v2791 = vld [vmem:[#allocation5 + $0x38] sm:$0xff]
        %v2792 = vld [vmem:[#allocation5 + $0x40] sm:$0xff]
        %v2793 = vld [vmem:[#allocation5 + $0x48] sm:$0xff]
        %v2794 = vld [vmem:[#allocation5 + $0x50] sm:$0xff]
        %v2795 = vld [vmem:[#allocation5 + $0x58] sm:$0xff]
        %v2796 = vld [vmem:[#allocation5 + $0x60] sm:$0xff]
        %v2797 = vld [vmem:[#allocation5 + $0x68] sm:$0xff]
        %v2798 = vld [vmem:[#allocation5 + $0x70] sm:$0xff]
        %v2799 = vld [vmem:[#allocation5 + $0x78] sm:$0xff]
        %v2800 = vld [vmem:[#allocation5 + $0x80] sm:$0xff]
        %v2801 = vld [vmem:[#allocation5 + $0x88] sm:$0xff]
        %v2802 = vld [vmem:[#allocation5 + $0x90] sm:$0xff]
        %v2803 = vld [vmem:[#allocation5 + $0x98] sm:$0xff]
        %v2804 = vld [vmem:[#allocation5 + $0xa0] sm:$0xff]
        %v2805 = vld [vmem:[#allocation5 + $0xa8] sm:$0xff]
        %v2806 = vld [vmem:[#allocation5 + $0xb0] sm:$0xff]
        %v2807 = vld [vmem:[#allocation5 + $0xb8] sm:$0xff]
        %v2808 = vld [vmem:[#allocation5 + $0xc0] sm:$0xff]
        %v2809 = vld [vmem:[#allocation5 + $0xc8] sm:$0xff]
        %v2810 = vld [vmem:[#allocation5 + $0xd0] sm:$0xff]
        %v2811 = vld [vmem:[#allocation5 + $0xd8] sm:$0xff]
        %v2812 = vld [vmem:[#allocation5 + $0xe0] sm:$0xff]
        %v2813 = vld [vmem:[#allocation5 + $0xe8] sm:$0xff]
        %v2814 = vld [vmem:[#allocation5 + $0xf0] sm:$0xff]
        %v2815 = vld [vmem:[#allocation5 + $0xf8] sm:$0xff]
        %v2816 = vld [vmem:[#allocation5 + $0x100] sm:$0xff]
        %v2817 = vld [vmem:[#allocation5 + $0x108] sm:$0xff]
        %v2818 = vld [vmem:[#allocation5 + $0x110] sm:$0xff]
        %v2819 = vld [vmem:[#allocation5 + $0x118] sm:$0xff]
        %v2820 = vld [vmem:[#allocation5 + $0x120] sm:$0xff]
        %v2821 = vld [vmem:[#allocation5 + $0x128] sm:$0xf]
        %v2822 = vld [vmem:[#allocation7] sm:$0x1]
        %v2824 = vlaneseq
        %v2825 = vshrl.u32 %v2824, 7
        %v2826 = vsub.s32 0, %v2825
        %v2827 = vrot.slane %v2822, %v2826
        %vm3141 = vcmask 1041409
        %v3142 = vsel %vm3141, %v832, %v812
        %vm3143 = vcmask 1042434
        %v3144 = vsel %vm3143, %v851, %v3142
        %vm3145 = vcmask 1043459
        %v3146 = vsel %vm3145, %v870, %v3144
        %vm3147 = vcmask 1044484
        %v3148 = vsel %vm3147, %v889, %v3146
        %vm3149 = vcmask 1045509
        %v3150 = vsel %vm3149, %v908, %v3148
        %vm3151 = vcmask 1046534
        %v3152 = vsel %vm3151, %v927, %v3150
        %vm3153 = vcmask 1047559
        %v3154 = vsel %vm3153, %v946, %v3152
        %v3155 = vsel %vm3141, %v838, %v818
        %v3156 = vsel %vm3143, %v857, %v3155
        %v3157 = vsel %vm3145, %v876, %v3156
        %v3158 = vsel %vm3147, %v895, %v3157
        %v3159 = vsel %vm3149, %v914, %v3158
        %v3160 = vsel %vm3151, %v933, %v3159
        %v3161 = vsel %vm3153, %v952, %v3160
        %v3162 = vsel %vm3141, %v845, %v826
        %v3163 = vsel %vm3143, %v864, %v3162
        %v3164 = vsel %vm3145, %v883, %v3163
        %v3165 = vsel %vm3147, %v902, %v3164
        %v3166 = vsel %vm3149, %v921, %v3165
        %v3167 = vsel %vm3151, %v940, %v3166
        %v3168 = vsel %vm3153, %v959, %v3167
        %v3169 = vsel %vm3141, %v984, %v965
        %v3170 = vsel %vm3143, %v1003, %v3169
        %v3171 = vsel %vm3145, %v1022, %v3170
        %v3172 = vsel %vm3147, %v1041, %v3171
        %v3173 = vsel %vm3149, %v1060, %v3172
        %v3174 = vsel %vm3151, %v1079, %v3173
        %v3175 = vsel %vm3153, %v1098, %v3174
        %v3176 = vsel %vm3141, %v990, %v971
        %v3177 = vsel %vm3143, %v1009, %v3176
        %v3178 = vsel %vm3145, %v1028, %v3177
        %v3179 = vsel %vm3147, %v1047, %v3178
        %v3180 = vsel %vm3149, %v1066, %v3179
        %v3181 = vsel %vm3151, %v1085, %v3180
        %v3182 = vsel %vm3153, %v1104, %v3181
        %v3183 = vsel %vm3141, %v997, %v978
        %v3184 = vsel %vm3143, %v1016, %v3183
        %v3185 = vsel %vm3145, %v1035, %v3184
        %v3186 = vsel %vm3147, %v1054, %v3185
        %v3187 = vsel %vm3149, %v1073, %v3186
        %v3188 = vsel %vm3151, %v1092, %v3187
        %v3189 = vsel %vm3153, %v1111, %v3188
        %v3190 = vsel %vm3141, %v1136, %v1117
        %v3191 = vsel %vm3143, %v1155, %v3190
        %v3192 = vsel %vm3145, %v1174, %v3191
        %v3193 = vsel %vm3147, %v1193, %v3192
        %v3194 = vsel %vm3149, %v1212, %v3193
        %v3195 = vsel %vm3151, %v1231, %v3194
        %v3196 = vsel %vm3153, %v1250, %v3195
        %v3197 = vsel %vm3141, %v1142, %v1123
        %v3198 = vsel %vm3143, %v1161, %v3197
        %v3199 = vsel %vm3145, %v1180, %v3198
        %v3200 = vsel %vm3147, %v1199, %v3199
        %v3201 = vsel %vm3149, %v1218, %v3200
        %v3202 = vsel %vm3151, %v1237, %v3201
        %v3203 = vsel %vm3153, %v1256, %v3202
        %v3204 = vsel %vm3141, %v1149, %v1130
        %v3205 = vsel %vm3143, %v1168, %v3204
        %v3206 = vsel %vm3145, %v1187, %v3205
        %v3207 = vsel %vm3147, %v1206, %v3206
        %v3208 = vsel %vm3149, %v1225, %v3207
        %v3209 = vsel %vm3151, %v1244, %v3208
        %v3210 = vsel %vm3153, %v1263, %v3209
        %v3211 = vsel %vm3141, %v1288, %v1269
        %v3212 = vsel %vm3143, %v1307, %v3211
        %v3213 = vsel %vm3145, %v1326, %v3212
        %v3214 = vsel %vm3147, %v1345, %v3213
        %v3215 = vsel %vm3149, %v1364, %v3214
        %v3216 = vsel %vm3151, %v1383, %v3215
        %v3217 = vsel %vm3153, %v1402, %v3216
        %v3218 = vsel %vm3141, %v1294, %v1275
        %v3219 = vsel %vm3143, %v1313, %v3218
        %v3220 = vsel %vm3145, %v1332, %v3219
        %v3221 = vsel %vm3147, %v1351, %v3220
        %v3222 = vsel %vm3149, %v1370, %v3221
        %v3223 = vsel %vm3151, %v1389, %v3222
        %v3224 = vsel %vm3153, %v1408, %v3223
        %v3225 = vsel %vm3141, %v1301, %v1282
        %v3226 = vsel %vm3143, %v1320, %v3225
        %v3227 = vsel %vm3145, %v1339, %v3226
        %v3228 = vsel %vm3147, %v1358, %v3227
        %v3229 = vsel %vm3149, %v1377, %v3228
        %v3230 = vsel %vm3151, %v1396, %v3229
        %v3231 = vsel %vm3153, %v1415, %v3230
        %v3232 = vsel %vm3141, %v1440, %v1421
        %v3233 = vsel %vm3143, %v1459, %v3232
        %v3234 = vsel %vm3145, %v1478, %v3233
        %v3235 = vsel %vm3147, %v1497, %v3234
        %v3236 = vsel %vm3149, %v1516, %v3235
        %v3237 = vsel %vm3151, %v1535, %v3236
        %v3238 = vsel %vm3153, %v1554, %v3237
        %v3239 = vsel %vm3141, %v1446, %v1427
        %v3240 = vsel %vm3143, %v1465, %v3239
        %v3241 = vsel %vm3145, %v1484, %v3240
        %v3242 = vsel %vm3147, %v1503, %v3241
        %v3243 = vsel %vm3149, %v1522, %v3242
        %v3244 = vsel %vm3151, %v1541, %v3243
        %v3245 = vsel %vm3153, %v1560, %v3244
        %v3246 = vsel %vm3141, %v1453, %v1434
        %v3247 = vsel %vm3143, %v1472, %v3246
        %v3248 = vsel %vm3145, %v1491, %v3247
        %v3249 = vsel %vm3147, %v1510, %v3248
        %v3250 = vsel %vm3149, %v1529, %v3249
        %v3251 = vsel %vm3151, %v1548, %v3250
        %v3252 = vsel %vm3153, %v1567, %v3251
        %v3253 = vsel %vm3141, %v1592, %v1573
        %v3254 = vsel %vm3143, %v1611, %v3253
        %v3255 = vsel %vm3145, %v1630, %v3254
        %v3256 = vsel %vm3147, %v1649, %v3255
        %v3257 = vsel %vm3149, %v1668, %v3256
        %v3258 = vsel %vm3151, %v1687, %v3257
        %v3259 = vsel %vm3153, %v1706, %v3258
        %v3260 = vsel %vm3141, %v1598, %v1579
        %v3261 = vsel %vm3143, %v1617, %v3260
        %v3262 = vsel %vm3145, %v1636, %v3261
        %v3263 = vsel %vm3147, %v1655, %v3262
        %v3264 = vsel %vm3149, %v1674, %v3263
        %v3265 = vsel %vm3151, %v1693, %v3264
        %v3266 = vsel %vm3153, %v1712, %v3265
        %v3267 = vsel %vm3141, %v1605, %v1586
        %v3268 = vsel %vm3143, %v1624, %v3267
        %v3269 = vsel %vm3145, %v1643, %v3268
        %v3270 = vsel %vm3147, %v1662, %v3269
        %v3271 = vsel %vm3149, %v1681, %v3270
        %v3272 = vsel %vm3151, %v1700, %v3271
        %v3273 = vsel %vm3153, %v1719, %v3272
        %v3274 = vsel %vm3141, %v1744, %v1725
        %v3275 = vsel %vm3143, %v1763, %v3274
        %v3276 = vsel %vm3145, %v1782, %v3275
        %v3277 = vsel %vm3147, %v1801, %v3276
        %v3278 = vsel %vm3149, %v1820, %v3277
        %v3279 = vsel %vm3151, %v1839, %v3278
        %v3280 = vsel %vm3153, %v1858, %v3279
        %v3281 = vsel %vm3141, %v1750, %v1731
        %v3282 = vsel %vm3143, %v1769, %v3281
        %v3283 = vsel %vm3145, %v1788, %v3282
        %v3284 = vsel %vm3147, %v1807, %v3283
        %v3285 = vsel %vm3149, %v1826, %v3284
        %v3286 = vsel %vm3151, %v1845, %v3285
        %v3287 = vsel %vm3153, %v1864, %v3286
        %v3288 = vsel %vm3141, %v1757, %v1738
        %v3289 = vsel %vm3143, %v1776, %v3288
        %v3290 = vsel %vm3145, %v1795, %v3289
        %v3291 = vsel %vm3147, %v1814, %v3290
        %v3292 = vsel %vm3149, %v1833, %v3291
        %v3293 = vsel %vm3151, %v1852, %v3292
        %v3294 = vsel %vm3153, %v1871, %v3293
        %v3295 = vsel %vm3141, %v1896, %v1877
        %v3296 = vsel %vm3143, %v1915, %v3295
        %v3297 = vsel %vm3145, %v1934, %v3296
        %v3298 = vsel %vm3147, %v1953, %v3297
        %v3299 = vsel %vm3149, %v1972, %v3298
        %v3300 = vsel %vm3151, %v1991, %v3299
        %v3301 = vsel %vm3153, %v2010, %v3300
        %v3302 = vsel %vm3141, %v1902, %v1883
        %v3303 = vsel %vm3143, %v1921, %v3302
        %v3304 = vsel %vm3145, %v1940, %v3303
        %v3305 = vsel %vm3147, %v1959, %v3304
        %v3306 = vsel %vm3149, %v1978, %v3305
        %v3307 = vsel %vm3151, %v1997, %v3306
        %v3308 = vsel %vm3153, %v2016, %v3307
        %v3309 = vsel %vm3141, %v1909, %v1890
        %v3310 = vsel %vm3143, %v1928, %v3309
        %v3311 = vsel %vm3145, %v1947, %v3310
        %v3312 = vsel %vm3147, %v1966, %v3311
        %v3313 = vsel %vm3149, %v1985, %v3312
        %v3314 = vsel %vm3151, %v2004, %v3313
        %v3315 = vsel %vm3153, %v2023, %v3314
        %v3316 = vsel %vm3141, %v2048, %v2029
        %v3317 = vsel %vm3143, %v2067, %v3316
        %v3318 = vsel %vm3145, %v2086, %v3317
        %v3319 = vsel %vm3147, %v2105, %v3318
        %v3320 = vsel %vm3149, %v2124, %v3319
        %v3321 = vsel %vm3151, %v2143, %v3320
        %v3322 = vsel %vm3153, %v2162, %v3321
        %v3323 = vsel %vm3141, %v2054, %v2035
        %v3324 = vsel %vm3143, %v2073, %v3323
        %v3325 = vsel %vm3145, %v2092, %v3324
        %v3326 = vsel %vm3147, %v2111, %v3325
        %v3327 = vsel %vm3149, %v2130, %v3326
        %v3328 = vsel %vm3151, %v2149, %v3327
        %v3329 = vsel %vm3153, %v2168, %v3328
        %v3330 = vsel %vm3141, %v2061, %v2042
        %v3331 = vsel %vm3143, %v2080, %v3330
        %v3332 = vsel %vm3145, %v2099, %v3331
        %v3333 = vsel %vm3147, %v2118, %v3332
        %v3334 = vsel %vm3149, %v2137, %v3333
        %v3335 = vsel %vm3151, %v2156, %v3334
        %v3336 = vsel %vm3153, %v2175, %v3335
        %v3337 = vsel %vm3141, %v2200, %v2181
        %v3338 = vsel %vm3143, %v2219, %v3337
        %v3339 = vsel %vm3145, %v2238, %v3338
        %v3340 = vsel %vm3147, %v2257, %v3339
        %v3341 = vsel %vm3149, %v2276, %v3340
        %v3342 = vsel %vm3151, %v2295, %v3341
        %v3343 = vsel %vm3153, %v2314, %v3342
        %v3344 = vsel %vm3141, %v2206, %v2187
        %v3345 = vsel %vm3143, %v2225, %v3344
        %v3346 = vsel %vm3145, %v2244, %v3345
        %v3347 = vsel %vm3147, %v2263, %v3346
        %v3348 = vsel %vm3149, %v2282, %v3347
        %v3349 = vsel %vm3151, %v2301, %v3348
        %v3350 = vsel %vm3153, %v2320, %v3349
        %v3351 = vsel %vm3141, %v2213, %v2194
        %v3352 = vsel %vm3143, %v2232, %v3351
        %v3353 = vsel %vm3145, %v2251, %v3352
        %v3354 = vsel %vm3147, %v2270, %v3353
        %v3355 = vsel %vm3149, %v2289, %v3354
        %v3356 = vsel %vm3151, %v2308, %v3355
        %v3357 = vsel %vm3153, %v2327, %v3356
        %v3358 = vsel %vm3141, %v2352, %v2333
        %v3359 = vsel %vm3143, %v2371, %v3358
        %v3360 = vsel %vm3145, %v2390, %v3359
        %v3361 = vsel %vm3147, %v2409, %v3360
        %v3362 = vsel %vm3149, %v2428, %v3361
        %v3363 = vsel %vm3151, %v2447, %v3362
        %v3364 = vsel %vm3153, %v2466, %v3363
        %v3365 = vsel %vm3141, %v2358, %v2339
        %v3366 = vsel %vm3143, %v2377, %v3365
        %v3367 = vsel %vm3145, %v2396, %v3366
        %v3368 = vsel %vm3147, %v2415, %v3367
        %v3369 = vsel %vm3149, %v2434, %v3368
        %v3370 = vsel %vm3151, %v2453, %v3369
        %v3371 = vsel %vm3153, %v2472, %v3370
        %v3372 = vsel %vm3141, %v2365, %v2346
        %v3373 = vsel %vm3143, %v2384, %v3372
        %v3374 = vsel %vm3145, %v2403, %v3373
        %v3375 = vsel %vm3147, %v2422, %v3374
        %v3376 = vsel %vm3149, %v2441, %v3375
        %v3377 = vsel %vm3151, %v2460, %v3376
        %v3378 = vsel %vm3153, %v2479, %v3377
        %v3379 = vsel %vm3141, %v2504, %v2485
        %v3380 = vsel %vm3143, %v2523, %v3379
        %v3381 = vsel %vm3145, %v2542, %v3380
        %v3382 = vsel %vm3147, %v2561, %v3381
        %v3383 = vsel %vm3149, %v2580, %v3382
        %v3384 = vsel %vm3151, %v2599, %v3383
        %v3385 = vsel %vm3153, %v2618, %v3384
        %v3386 = vsel %vm3141, %v2510, %v2491
        %v3387 = vsel %vm3143, %v2529, %v3386
        %v3388 = vsel %vm3145, %v2548, %v3387
        %v3389 = vsel %vm3147, %v2567, %v3388
        %v3390 = vsel %vm3149, %v2586, %v3389
        %v3391 = vsel %vm3151, %v2605, %v3390
        %v3392 = vsel %vm3153, %v2624, %v3391
        %v3393 = vsel %vm3141, %v2517, %v2498
        %v3394 = vsel %vm3143, %v2536, %v3393
        %v3395 = vsel %vm3145, %v2555, %v3394
        %v3396 = vsel %vm3147, %v2574, %v3395
        %v3397 = vsel %vm3149, %v2593, %v3396
        %v3398 = vsel %vm3151, %v2612, %v3397
        %v3399 = vsel %vm3153, %v2631, %v3398
        %v3400 = vsel %vm3141, %v2656, %v2637
        %v3401 = vsel %vm3143, %v2675, %v3400
        %v3402 = vsel %vm3145, %v2694, %v3401
        %v3403 = vsel %vm3147, %v2713, %v3402
        %v3404 = vsel %vm3149, %v2732, %v3403
        %v3405 = vsel %vm3151, %v2751, %v3404
        %v3406 = vsel %vm3153, %v2770, %v3405
        %v3407 = vsel %vm3141, %v2662, %v2643
        %v3408 = vsel %vm3143, %v2681, %v3407
        %v3409 = vsel %vm3145, %v2700, %v3408
        %v3410 = vsel %vm3147, %v2719, %v3409
        %v3411 = vsel %vm3149, %v2738, %v3410
        %v3412 = vsel %vm3151, %v2757, %v3411
        %v3413 = vsel %vm3153, %v2776, %v3412
        %v3414 = vsel %vm3141, %v2669, %v2650
        %v3415 = vsel %vm3143, %v2688, %v3414
        %v3416 = vsel %vm3145, %v2707, %v3415
        %v3417 = vsel %vm3147, %v2726, %v3416
        %v3418 = vsel %vm3149, %v2745, %v3417
        %v3419 = vsel %vm3151, %v2764, %v3418
        %v3420 = vsel %vm3153, %v2783, %v3419
        %v3447 = vsel %vm819, %v3168, 0
        %v3449 = vsel %vm819, %v3189, 0
        %v3451 = vsel %vm819, %v3210, 0
        %v3453 = vsel %vm819, %v3231, 0
        %v3455 = vsel %vm819, %v3252, 0
        %v3457 = vsel %vm819, %v3273, 0
        %v3459 = vsel %vm819, %v3294, 0
        %v3461 = vsel %vm819, %v3315, 0
        %v3463 = vsel %vm819, %v3336, 0
        %v3465 = vsel %vm819, %v3357, 0
        %v3467 = vsel %vm819, %v3378, 0
        %v3469 = vsel %vm819, %v3399, 0
        %v3471 = vsel %vm819, %v3420, 0
        %vm3473 = vcmask 1043456
        %v3475 = vsel %vm3473, %v2821, 0
        %3477 = vmatprep.subr.mxu0 0.0
        %3478 = vmatpush1.msra.mxu0 %v2799
        %3479 = vmatprep.subr.mxu0 0.0
        %3480 = vmatpush1.msra.mxu0 %v2798
        %3481 = vmatprep.subr.mxu0 0.0
        %3482 = vmatpush1.msra.mxu0 %v2797
        %3483 = vmatprep.subr.mxu0 0.0
        %3484 = vmatpush1.msra.mxu0 %v2796
        %3485 = vmatprep.subr.mxu0 0.0
        %3486 = vmatpush1.msra.mxu0 %v2795
        %3487 = vmatprep.subr.mxu0 0.0
        %3488 = vmatpush1.msra.mxu0 %v2794
        %3489 = vmatprep.subr.mxu0 0.0
        %3490 = vmatpush1.msra.mxu0 %v2793
        %3491 = vmatprep.subr.mxu0 0.0
        %3492 = vmatpush1.msra.mxu0 %v2792
        %3493 = vmatprep.subr.mxu0 0.0
        %3494 = vmatpush1.msra.mxu0 %v2791
        %3495 = vmatprep.subr.mxu0 0.0
        %3496 = vmatpush1.msra.mxu0 %v2790
        %3497 = vmatprep.subr.mxu0 0.0
        %3498 = vmatpush1.msra.mxu0 %v2789
        %3499 = vmatprep.subr.mxu0 0.0
        %3500 = vmatpush1.msra.mxu0 %v2788
        %3501 = vmatprep.subr.mxu0 0.0
        %3502 = vmatpush1.msra.mxu0 %v2787
        %3503 = vmatprep.subr.mxu0 0.0
        %3504 = vmatpush1.msra.mxu0 %v2786
        %3505 = vmatprep.subr.mxu0 0.0
        %3506 = vmatpush1.msra.mxu0 %v2785
        %3507 = vmatprep.subr.mxu0 0.0
        %3508 = vmatpush1.msra.mxu0 %v2784
        %3509 = vmatprep.subr.mxu0 0.0
        %3510 = vmatpush2.msra.mxu0 %v2815
        %3511 = vmatprep.subr.mxu0 0.0
        %3512 = vmatpush2.msra.mxu0 %v2814
        %3513 = vmatprep.subr.mxu0 0.0
        %3514 = vmatpush2.msra.mxu0 %v2813
        %3515 = vmatprep.subr.mxu0 0.0
        %3516 = vmatpush2.msra.mxu0 %v2812
        %3517 = vmatprep.subr.mxu0 0.0
        %3518 = vmatpush2.msra.mxu0 %v2811
        %3519 = vmatprep.subr.mxu0 0.0
        %3520 = vmatpush2.msra.mxu0 %v2810
        %3521 = vmatprep.subr.mxu0 0.0
        %3522 = vmatpush2.msra.mxu0 %v2809
        %3523 = vmatprep.subr.mxu0 0.0
        %3524 = vmatpush2.msra.mxu0 %v2808
        %3525 = vmatprep.subr.mxu0 0.0
        %3526 = vmatpush2.msra.mxu0 %v2807
        %3527 = vmatprep.subr.mxu0 0.0
        %3528 = vmatpush2.msra.mxu0 %v2806
        %3529 = vmatprep.subr.mxu0 0.0
        %3530 = vmatpush2.msra.mxu0 %v2805
        %3531 = vmatprep.subr.mxu0 0.0
        %3532 = vmatpush2.msra.mxu0 %v2804
        %3533 = vmatprep.subr.mxu0 0.0
        %3534 = vmatpush2.msra.mxu0 %v2803
        %3535 = vmatprep.subr.mxu0 0.0
        %3536 = vmatpush2.msra.mxu0 %v2802
        %3537 = vmatprep.subr.mxu0 0.0
        %3538 = vmatpush2.msra.mxu0 %v2801
        %3539 = vmatprep.subr.mxu0 0.0
        %3540 = vmatpush2.msra.mxu0 %v2800
        %3541 = vmatprep.mubr.f32.mxu0 %v3161
        %3542 = vmatmul.mubr.f32.gmra.mxu0 %v3154
        %v3543 = vpop.f32.mrf.mxu0
        %v3544 = vadd.f32 %v2827, %v3543
        %v3545 = vpop.f32.mrf.mxu0
        %3546 = vmatprep.mubr.f32.mxu0 %v3182
        %3547 = vmatmul.mubr.f32.gmra.mxu0 %v3175
        %v3548 = vpop.f32.mrf.mxu0
        %v3549 = vadd.f32 %v2827, %v3548
        %v3550 = vpop.f32.mrf.mxu0
        %3551 = vmatprep.mubr.f32.mxu0 %v3203
        %3552 = vmatmul.mubr.f32.gmra.mxu0 %v3196
        %v3553 = vpop.f32.mrf.mxu0
        %v3554 = vadd.f32 %v2827, %v3553
        %v3555 = vpop.f32.mrf.mxu0
        %3556 = vmatprep.mubr.f32.mxu0 %v3224
        %3557 = vmatmul.mubr.f32.gmra.mxu0 %v3217
        %v3558 = vpop.f32.mrf.mxu0
        %v3559 = vadd.f32 %v2827, %v3558
        %v3560 = vpop.f32.mrf.mxu0
        %3561 = vmatprep.mubr.f32.mxu0 %v3245
        %3562 = vmatmul.mubr.f32.gmra.mxu0 %v3238
        %v3563 = vpop.f32.mrf.mxu0
        %v3564 = vadd.f32 %v2827, %v3563
        %v3565 = vpop.f32.mrf.mxu0
        %3566 = vmatprep.mubr.f32.mxu0 %v3266
        %3567 = vmatmul.mubr.f32.gmra.mxu0 %v3259
        %v3568 = vpop.f32.mrf.mxu0
        %v3569 = vadd.f32 %v2827, %v3568
        %v3570 = vpop.f32.mrf.mxu0
        %3571 = vmatprep.mubr.f32.mxu0 %v3287
        %3572 = vmatmul.mubr.f32.gmra.mxu0 %v3280
        %v3573 = vpop.f32.mrf.mxu0
        %v3574 = vadd.f32 %v2827, %v3573
        %v3575 = vpop.f32.mrf.mxu0
        %3576 = vmatprep.mubr.f32.mxu0 %v3308
        %3577 = vmatmul.mubr.f32.gmra.mxu0 %v3301
        %v3578 = vpop.f32.mrf.mxu0
        %v3579 = vadd.f32 %v2827, %v3578
        %v3580 = vpop.f32.mrf.mxu0
        %3581 = vmatprep.mubr.f32.mxu0 %v3329
        %3582 = vmatmul.mubr.f32.gmra.mxu0 %v3322
        %v3583 = vpop.f32.mrf.mxu0
        %v3584 = vadd.f32 %v2827, %v3583
        %v3585 = vpop.f32.mrf.mxu0
        %3586 = vmatprep.mubr.f32.mxu0 %v3350
        %3587 = vmatmul.mubr.f32.gmra.mxu0 %v3343
        %v3588 = vpop.f32.mrf.mxu0
        %v3589 = vadd.f32 %v2827, %v3588
        %v3590 = vpop.f32.mrf.mxu0
        %3591 = vmatprep.mubr.f32.mxu0 %v3371
        %3592 = vmatmul.mubr.f32.gmra.mxu0 %v3364
        %v3593 = vpop.f32.mrf.mxu0
        %v3594 = vadd.f32 %v2827, %v3593
        %v3595 = vpop.f32.mrf.mxu0
        %3596 = vmatprep.mubr.f32.mxu0 %v3392
        %3597 = vmatmul.mubr.f32.gmra.mxu0 %v3385
        %v3598 = vpop.f32.mrf.mxu0
        %v3599 = vadd.f32 %v2827, %v3598
        %v3600 = vpop.f32.mrf.mxu0
        %3601 = vmatprep.mubr.f32.mxu0 %v3413
        %3602 = vmatmul.mubr.f32.gmra.mxu0 %v3406
        %v3603 = vpop.f32.mrf.mxu0
        %v3604 = vadd.f32 %v2827, %v3603
        %v3605 = vpop.f32.mrf.mxu0
        %3606 = vdwg.mxu0
        %3607 = vmatprep.subr.mxu0 0.0
        %3608 = vmatpush1.msra.mxu0 0.0
        %3609 = vmatprep.subr.mxu0 0.0
        %3610 = vmatpush1.msra.mxu0 0.0
        %3611 = vmatprep.subr.mxu0 0.0
        %3612 = vmatpush1.msra.mxu0 0.0
        %3613 = vmatprep.subr.mxu0 0.0
        %3614 = vmatpush1.msra.mxu0 0.0
        %3615 = vmatprep.subr.mxu0 0.0
        %3616 = vmatpush1.msra.mxu0 0.0
        %3617 = vmatprep.subr.mxu0 0.0
        %3618 = vmatpush1.msra.mxu0 0.0
        %3619 = vmatprep.subr.mxu0 0.0
        %3620 = vmatpush1.msra.mxu0 0.0
        %3621 = vmatprep.subr.mxu0 0.0
        %3622 = vmatpush1.msra.mxu0 0.0
        %3623 = vmatprep.subr.mxu0 0.0
        %3624 = vmatpush1.msra.mxu0 0.0
        %3625 = vmatprep.subr.mxu0 0.0
        %3626 = vmatpush1.msra.mxu0 0.0
        %3627 = vmatprep.subr.mxu0 0.0
        %3628 = vmatpush1.msra.mxu0 %v3475
        %3629 = vmatprep.subr.mxu0 0.0
        %3630 = vmatpush1.msra.mxu0 %v2820
        %3631 = vmatprep.subr.mxu0 0.0
        %3632 = vmatpush1.msra.mxu0 %v2819
        %3633 = vmatprep.subr.mxu0 0.0
        %3634 = vmatpush1.msra.mxu0 %v2818
        %3635 = vmatprep.subr.mxu0 0.0
        %3636 = vmatpush1.msra.mxu0 %v2817
        %3637 = vmatprep.subr.mxu0 0.0
        %3638 = vmatpush1.msra.mxu0 %v2816
        %3639 = vmatprep.subr.mxu0 0.0
        %3640 = vmatpush2.msra.mxu0 0.0
        %3641 = vmatprep.subr.mxu0 0.0
        %3642 = vmatpush2.msra.mxu0 0.0
        %3643 = vmatprep.subr.mxu0 0.0
        %3644 = vmatpush2.msra.mxu0 0.0
        %3645 = vmatprep.subr.mxu0 0.0
        %3646 = vmatpush2.msra.mxu0 0.0
        %3647 = vmatprep.subr.mxu0 0.0
        %3648 = vmatpush2.msra.mxu0 0.0
        %3649 = vmatprep.subr.mxu0 0.0
        %3650 = vmatpush2.msra.mxu0 0.0
        %3651 = vmatprep.subr.mxu0 0.0
        %3652 = vmatpush2.msra.mxu0 0.0
        %3653 = vmatprep.subr.mxu0 0.0
        %3654 = vmatpush2.msra.mxu0 0.0
        %3655 = vmatprep.subr.mxu0 0.0
        %3656 = vmatpush2.msra.mxu0 0.0
        %3657 = vmatprep.subr.mxu0 0.0
        %3658 = vmatpush2.msra.mxu0 0.0
        %3659 = vmatprep.subr.mxu0 0.0
        %3660 = vmatpush2.msra.mxu0 0.0
        %3661 = vmatprep.subr.mxu0 0.0
        %3662 = vmatpush2.msra.mxu0 0.0
        %3663 = vmatprep.subr.mxu0 0.0
        %3664 = vmatpush2.msra.mxu0 0.0
        %3665 = vmatprep.subr.mxu0 0.0
        %3666 = vmatpush2.msra.mxu0 0.0
        %3667 = vmatprep.subr.mxu0 0.0
        %3668 = vmatpush2.msra.mxu0 0.0
        %3669 = vmatprep.subr.mxu0 0.0
        %3670 = vmatpush2.msra.mxu0 0.0
        %3671 = vmatprep.mubr.f32.mxu0 0.0
        %3672 = vmatmul.mubr.f32.gmra.mxu0 %v3447
        %v3673 = vpop.f32.mrf.mxu0
        %v3674 = vadd.f32 %v3544, %v3673
        %v3675 = vpop.f32.mrf.mxu0
        %3676 = vmatprep.mubr.f32.mxu0 0.0
        %3677 = vmatmul.mubr.f32.gmra.mxu0 %v3449
        %v3678 = vpop.f32.mrf.mxu0
        %v3679 = vadd.f32 %v3549, %v3678
        %v3680 = vpop.f32.mrf.mxu0
        %3681 = vmatprep.mubr.f32.mxu0 0.0
        %3682 = vmatmul.mubr.f32.gmra.mxu0 %v3451
        %v3683 = vpop.f32.mrf.mxu0
        %v3684 = vadd.f32 %v3554, %v3683
        %v3685 = vpop.f32.mrf.mxu0
        %3686 = vmatprep.mubr.f32.mxu0 0.0
        %3687 = vmatmul.mubr.f32.gmra.mxu0 %v3453
        %v3688 = vpop.f32.mrf.mxu0
        %v3689 = vadd.f32 %v3559, %v3688
        %v3690 = vpop.f32.mrf.mxu0
        %3691 = vmatprep.mubr.f32.mxu0 0.0
        %3692 = vmatmul.mubr.f32.gmra.mxu0 %v3455
        %v3693 = vpop.f32.mrf.mxu0
        %v3694 = vadd.f32 %v3564, %v3693
        %v3695 = vpop.f32.mrf.mxu0
        %3696 = vmatprep.mubr.f32.mxu0 0.0
        %3697 = vmatmul.mubr.f32.gmra.mxu0 %v3457
        %v3698 = vpop.f32.mrf.mxu0
        %v3699 = vadd.f32 %v3569, %v3698
        %v3700 = vpop.f32.mrf.mxu0
        %3701 = vmatprep.mubr.f32.mxu0 0.0
        %3702 = vmatmul.mubr.f32.gmra.mxu0 %v3459
        %v3703 = vpop.f32.mrf.mxu0
        %v3704 = vadd.f32 %v3574, %v3703
        %v3705 = vpop.f32.mrf.mxu0
        %3706 = vmatprep.mubr.f32.mxu0 0.0
        %3707 = vmatmul.mubr.f32.gmra.mxu0 %v3461
        %v3708 = vpop.f32.mrf.mxu0
        %v3709 = vadd.f32 %v3579, %v3708
        %v3710 = vpop.f32.mrf.mxu0
        %3711 = vmatprep.mubr.f32.mxu0 0.0
        %3712 = vmatmul.mubr.f32.gmra.mxu0 %v3463
        %v3713 = vpop.f32.mrf.mxu0
        %v3714 = vadd.f32 %v3584, %v3713
        %v3715 = vpop.f32.mrf.mxu0
        %3716 = vmatprep.mubr.f32.mxu0 0.0
        %3717 = vmatmul.mubr.f32.gmra.mxu0 %v3465
        %v3718 = vpop.f32.mrf.mxu0
        %v3719 = vadd.f32 %v3589, %v3718
        %v3720 = vpop.f32.mrf.mxu0
        %3721 = vmatprep.mubr.f32.mxu0 0.0
        %3722 = vmatmul.mubr.f32.gmra.mxu0 %v3467
        %v3723 = vpop.f32.mrf.mxu0
        %v3724 = vadd.f32 %v3594, %v3723
        %v3725 = vpop.f32.mrf.mxu0
        %3726 = vmatprep.mubr.f32.mxu0 0.0
        %3727 = vmatmul.mubr.f32.gmra.mxu0 %v3469
        %v3728 = vpop.f32.mrf.mxu0
        %v3729 = vadd.f32 %v3599, %v3728
        %v3730 = vpop.f32.mrf.mxu0
        %3731 = vmatprep.mubr.f32.mxu0 0.0
        %3732 = vmatmul.mubr.f32.gmra.mxu0 %v3471
        %v3733 = vpop.f32.mrf.mxu0
        %v3734 = vadd.f32 %v3604, %v3733
        %v3735 = vpop.f32.mrf.mxu0
        %3736 = vdwg.mxu0
        %v3737 = vtanh.pop %v3674
        %v3738 = vtanh.pop %v3679
        %v3739 = vtanh.pop %v3684
        %v3740 = vtanh.pop %v3689
        %v3741 = vtanh.pop %v3694
        %v3742 = vtanh.pop %v3699
        %v3743 = vtanh.pop %v3704
        %v3744 = vtanh.pop %v3709
        %v3745 = vtanh.pop %v3714
        %v3746 = vtanh.pop %v3719
        %v3747 = vtanh.pop %v3724
        %v3748 = vtanh.pop %v3729
        %v3749 = vtanh.pop %v3734
        %v3750 = vld [vmem:[%s3] sm:$0xff]
        %v3751 = vld [vmem:[%s3 + $0x8] sm:$0xff]
        %v3752 = vld [vmem:[%s3 + $0x10] sm:$0xff]
        %v3753 = vld [vmem:[%s3 + $0x18] sm:$0xff]
        %v3754 = vld [vmem:[%s3 + $0x20] sm:$0xff]
        %v3755 = vld [vmem:[%s3 + $0x28] sm:$0xff]
        %v3756 = vld [vmem:[%s3 + $0x30] sm:$0xff]
        %v3757 = vld [vmem:[%s3 + $0x38] sm:$0xff]
        %v3758 = vld [vmem:[%s3 + $0x40] sm:$0xff]
        %v3759 = vld [vmem:[%s3 + $0x48] sm:$0xff]
        %v3760 = vld [vmem:[%s3 + $0x50] sm:$0xff]
        %v3761 = vld [vmem:[%s3 + $0x58] sm:$0xff]
        %v3762 = vld [vmem:[%s3 + $0x60] sm:$0xff]
        %v3763 = vld [vmem:[%s3 + $0x68] sm:$0xff]
        %v3764 = vld [vmem:[%s3 + $0x70] sm:$0xff]
        %v3765 = vld [vmem:[%s3 + $0x78] sm:$0xff]
        %v3766 = vld [vmem:[#allocation2] sm:$0x1]
        %v3768 = vlaneseq
        %v3769 = vshrl.u32 %v3768, 7
        %v3770 = vsub.s32 0, %v3769
        %v3771 = vrot.slane %v3766, %v3770
        %3773 = vmatprep.subr.mxu0 0.0
        %3774 = vmatpush1.msra.mxu0 %v3765
        %3775 = vmatprep.subr.mxu0 0.0
        %3776 = vmatpush1.msra.mxu0 %v3764
        %3777 = vmatprep.subr.mxu0 0.0
        %3778 = vmatpush1.msra.mxu0 %v3763
        %3779 = vmatprep.subr.mxu0 0.0
        %3780 = vmatpush1.msra.mxu0 %v3762
        %3781 = vmatprep.subr.mxu0 0.0
        %3782 = vmatpush1.msra.mxu0 %v3761
        %3783 = vmatprep.subr.mxu0 0.0
        %3784 = vmatpush1.msra.mxu0 %v3760
        %3785 = vmatprep.subr.mxu0 0.0
        %3786 = vmatpush1.msra.mxu0 %v3759
        %3787 = vmatprep.subr.mxu0 0.0
        %3788 = vmatpush1.msra.mxu0 %v3758
        %3789 = vmatprep.subr.mxu0 0.0
        %3790 = vmatpush1.msra.mxu0 %v3757
        %3791 = vmatprep.subr.mxu0 0.0
        %3792 = vmatpush1.msra.mxu0 %v3756
        %3793 = vmatprep.subr.mxu0 0.0
        %3794 = vmatpush1.msra.mxu0 %v3755
        %3795 = vmatprep.subr.mxu0 0.0
        %3796 = vmatpush1.msra.mxu0 %v3754
        %3797 = vmatprep.subr.mxu0 0.0
        %3798 = vmatpush1.msra.mxu0 %v3753
        %3799 = vmatprep.subr.mxu0 0.0
        %3800 = vmatpush1.msra.mxu0 %v3752
        %3801 = vmatprep.subr.mxu0 0.0
        %3802 = vmatpush1.msra.mxu0 %v3751
        %3803 = vmatprep.subr.mxu0 0.0
        %3804 = vmatpush1.msra.mxu0 %v3750
        %3805 = vmatprep.subr.mxu0 0.0
        %3806 = vmatpush2.msra.mxu0 0.0
        %3807 = vmatprep.subr.mxu0 0.0
        %3808 = vmatpush2.msra.mxu0 0.0
        %3809 = vmatprep.subr.mxu0 0.0
        %3810 = vmatpush2.msra.mxu0 0.0
        %3811 = vmatprep.subr.mxu0 0.0
        %3812 = vmatpush2.msra.mxu0 0.0
        %3813 = vmatprep.subr.mxu0 0.0
        %3814 = vmatpush2.msra.mxu0 0.0
        %3815 = vmatprep.subr.mxu0 0.0
        %3816 = vmatpush2.msra.mxu0 0.0
        %3817 = vmatprep.subr.mxu0 0.0
        %3818 = vmatpush2.msra.mxu0 0.0
        %3819 = vmatprep.subr.mxu0 0.0
        %3820 = vmatpush2.msra.mxu0 0.0
        %3821 = vmatprep.subr.mxu0 0.0
        %3822 = vmatpush2.msra.mxu0 0.0
        %3823 = vmatprep.subr.mxu0 0.0
        %3824 = vmatpush2.msra.mxu0 0.0
        %3825 = vmatprep.subr.mxu0 0.0
        %3826 = vmatpush2.msra.mxu0 0.0
        %3827 = vmatprep.subr.mxu0 0.0
        %3828 = vmatpush2.msra.mxu0 0.0
        %3829 = vmatprep.subr.mxu0 0.0
        %3830 = vmatpush2.msra.mxu0 0.0
        %3831 = vmatprep.subr.mxu0 0.0
        %3832 = vmatpush2.msra.mxu0 0.0
        %3833 = vmatprep.subr.mxu0 0.0
        %3834 = vmatpush2.msra.mxu0 0.0
        %3835 = vmatprep.subr.mxu0 0.0
        %3836 = vmatpush2.msra.mxu0 0.0
        %3837 = vmatprep.mubr.f32.mxu0 0.0
        %3838 = vmatmul.mubr.f32.gmra.mxu0 %v3737
        %v3839 = vpop.f32.mrf.mxu0
        %v3840 = vadd.f32 %v3771, %v3839
        %v3841 = vpop.f32.mrf.mxu0
        %3842 = vmatprep.mubr.f32.mxu0 0.0
        %3843 = vmatmul.mubr.f32.gmra.mxu0 %v3738
        %v3844 = vpop.f32.mrf.mxu0
        %v3845 = vadd.f32 %v3771, %v3844
        %v3846 = vpop.f32.mrf.mxu0
        %3847 = vmatprep.mubr.f32.mxu0 0.0
        %3848 = vmatmul.mubr.f32.gmra.mxu0 %v3739
        %v3849 = vpop.f32.mrf.mxu0
        %v3850 = vadd.f32 %v3771, %v3849
        %v3851 = vpop.f32.mrf.mxu0
        %3852 = vmatprep.mubr.f32.mxu0 0.0
        %3853 = vmatmul.mubr.f32.gmra.mxu0 %v3740
        %v3854 = vpop.f32.mrf.mxu0
        %v3855 = vadd.f32 %v3771, %v3854
        %v3856 = vpop.f32.mrf.mxu0
        %3857 = vmatprep.mubr.f32.mxu0 0.0
        %3858 = vmatmul.mubr.f32.gmra.mxu0 %v3741
        %v3859 = vpop.f32.mrf.mxu0
        %v3860 = vadd.f32 %v3771, %v3859
        %v3861 = vpop.f32.mrf.mxu0
        %3862 = vmatprep.mubr.f32.mxu0 0.0
        %3863 = vmatmul.mubr.f32.gmra.mxu0 %v3742
        %v3864 = vpop.f32.mrf.mxu0
        %v3865 = vadd.f32 %v3771, %v3864
        %v3866 = vpop.f32.mrf.mxu0
        %3867 = vmatprep.mubr.f32.mxu0 0.0
        %3868 = vmatmul.mubr.f32.gmra.mxu0 %v3743
        %v3869 = vpop.f32.mrf.mxu0
        %v3870 = vadd.f32 %v3771, %v3869
        %v3871 = vpop.f32.mrf.mxu0
        %3872 = vmatprep.mubr.f32.mxu0 0.0
        %3873 = vmatmul.mubr.f32.gmra.mxu0 %v3744
        %v3874 = vpop.f32.mrf.mxu0
        %v3875 = vadd.f32 %v3771, %v3874
        %v3876 = vpop.f32.mrf.mxu0
        %3877 = vmatprep.mubr.f32.mxu0 0.0
        %3878 = vmatmul.mubr.f32.gmra.mxu0 %v3745
        %v3879 = vpop.f32.mrf.mxu0
        %v3880 = vadd.f32 %v3771, %v3879
        %v3881 = vpop.f32.mrf.mxu0
        %3882 = vmatprep.mubr.f32.mxu0 0.0
        %3883 = vmatmul.mubr.f32.gmra.mxu0 %v3746
        %v3884 = vpop.f32.mrf.mxu0
        %v3885 = vadd.f32 %v3771, %v3884
        %v3886 = vpop.f32.mrf.mxu0
        %3887 = vmatprep.mubr.f32.mxu0 0.0
        %3888 = vmatmul.mubr.f32.gmra.mxu0 %v3747
        %v3889 = vpop.f32.mrf.mxu0
        %v3890 = vadd.f32 %v3771, %v3889
        %v3891 = vpop.f32.mrf.mxu0
        %3892 = vmatprep.mubr.f32.mxu0 0.0
        %3893 = vmatmul.mubr.f32.gmra.mxu0 %v3748
        %v3894 = vpop.f32.mrf.mxu0
        %v3895 = vadd.f32 %v3771, %v3894
        %v3896 = vpop.f32.mrf.mxu0
        %3897 = vmatprep.mubr.f32.mxu0 0.0
        %3898 = vmatmul.mubr.f32.gmra.mxu0 %v3749
        %v3899 = vpop.f32.mrf.mxu0
        %v3900 = vadd.f32 %v3771, %v3899
        %v3901 = vpop.f32.mrf.mxu0
        %3902 = vdwg.mxu0
        %v3903 = vxor.u32 %v3840, 2147483648
        %v3904 = vxor.u32 %v3845, 2147483648
        %v3905 = vxor.u32 %v3850, 2147483648
        %v3906 = vxor.u32 %v3855, 2147483648
        %v3907 = vxor.u32 %v3860, 2147483648
        %v3908 = vxor.u32 %v3865, 2147483648
        %v3909 = vxor.u32 %v3870, 2147483648
        %v3910 = vxor.u32 %v3875, 2147483648
        %v3911 = vxor.u32 %v3880, 2147483648
        %v3912 = vxor.u32 %v3885, 2147483648
        %v3913 = vxor.u32 %v3890, 2147483648
        %v3914 = vxor.u32 %v3895, 2147483648
        %v3915 = vxor.u32 %v3900, 2147483648
        %v3916 = vmul.f32 %v3903, 1.442695
        %v3917 = vpow.pop %v3916
        %v3918 = vmul.f32 %v3904, 1.442695
        %v3919 = vpow.pop %v3918
        %v3920 = vmul.f32 %v3905, 1.442695
        %v3921 = vpow.pop %v3920
        %v3922 = vmul.f32 %v3906, 1.442695
        %v3923 = vpow.pop %v3922
        %v3924 = vmul.f32 %v3907, 1.442695
        %v3925 = vpow.pop %v3924
        %v3926 = vmul.f32 %v3908, 1.442695
        %v3927 = vpow.pop %v3926
        %v3928 = vmul.f32 %v3909, 1.442695
        %v3929 = vpow.pop %v3928
        %v3930 = vmul.f32 %v3910, 1.442695
        %v3931 = vpow.pop %v3930
        %v3932 = vmul.f32 %v3911, 1.442695
        %v3933 = vpow.pop %v3932
        %v3934 = vmul.f32 %v3912, 1.442695
        %v3935 = vpow.pop %v3934
        %v3936 = vmul.f32 %v3913, 1.442695
        %v3937 = vpow.pop %v3936
        %v3938 = vmul.f32 %v3914, 1.442695
        %v3939 = vpow.pop %v3938
        %v3940 = vmul.f32 %v3915, 1.442695
        %v3941 = vpow.pop %v3940
        %v3942 = vadd.f32 %v3917, 1.0
        %v3943 = vadd.f32 %v3919, 1.0
        %v3944 = vadd.f32 %v3921, 1.0
        %v3945 = vadd.f32 %v3923, 1.0
        %v3946 = vadd.f32 %v3925, 1.0
        %v3947 = vadd.f32 %v3927, 1.0
        %v3948 = vadd.f32 %v3929, 1.0
        %v3949 = vadd.f32 %v3931, 1.0
        %v3950 = vadd.f32 %v3933, 1.0
        %v3951 = vadd.f32 %v3935, 1.0
        %v3952 = vadd.f32 %v3937, 1.0
        %v3953 = vadd.f32 %v3939, 1.0
        %v3954 = vadd.f32 %v3941, 1.0
        %v3955 = vrcp.pop %v3942
        %v3956 = vmul.f32 1.0, %v3955
        %v3957 = vrcp.pop %v3943
        %v3958 = vmul.f32 1.0, %v3957
        %v3959 = vrcp.pop %v3944
        %v3960 = vmul.f32 1.0, %v3959
        %v3961 = vrcp.pop %v3945
        %v3962 = vmul.f32 1.0, %v3961
        %v3963 = vrcp.pop %v3946
        %v3964 = vmul.f32 1.0, %v3963
        %v3965 = vrcp.pop %v3947
        %v3966 = vmul.f32 1.0, %v3965
        %v3967 = vrcp.pop %v3948
        %v3968 = vmul.f32 1.0, %v3967
        %v3969 = vrcp.pop %v3949
        %v3970 = vmul.f32 1.0, %v3969
        %v3971 = vrcp.pop %v3950
        %v3972 = vmul.f32 1.0, %v3971
        %v3973 = vrcp.pop %v3951
        %v3974 = vmul.f32 1.0, %v3973
        %v3975 = vrcp.pop %v3952
        %v3976 = vmul.f32 1.0, %v3975
        %v3977 = vrcp.pop %v3953
        %v3978 = vmul.f32 1.0, %v3977
        %v3979 = vrcp.pop %v3954
        %v3980 = vmul.f32 1.0, %v3979
        %vm3981 = vcmask 7168
        %3982 = vst.msk [vmem:[%s275] sm:$0xff] %vm3981, %v3956
        %3983 = vst.msk [vmem:[%s275 + $0x8] sm:$0xff] %vm3981, %v3958
        %3984 = vst.msk [vmem:[%s275 + $0x10] sm:$0xff] %vm3981, %v3960
        %3985 = vst.msk [vmem:[%s275 + $0x18] sm:$0xff] %vm3981, %v3962
        %3986 = vst.msk [vmem:[%s275 + $0x20] sm:$0xff] %vm3981, %v3964
        %3987 = vst.msk [vmem:[%s275 + $0x28] sm:$0xff] %vm3981, %v3966
        %3988 = vst.msk [vmem:[%s275 + $0x30] sm:$0xff] %vm3981, %v3968
        %3989 = vst.msk [vmem:[%s275 + $0x38] sm:$0xff] %vm3981, %v3970
        %3990 = vst.msk [vmem:[%s275 + $0x40] sm:$0xff] %vm3981, %v3972
        %3991 = vst.msk [vmem:[%s275 + $0x48] sm:$0xff] %vm3981, %v3974
        %3992 = vst.msk [vmem:[%s275 + $0x50] sm:$0xff] %vm3981, %v3976
        %3993 = vst.msk [vmem:[%s275 + $0x58] sm:$0xff] %vm3981, %v3978
        %3994 = vst.msk [vmem:[%s275 + $0x60] sm:$0xff] %vm3981, %v3980
        %s3995 = sand.u32 %s140, 1
        %s3996 = sand.u32 %s140, 1
        %s3997 = smul.addr %s3996, 104
        %s3998 = scalar_lea.vmem [#allocation8], %s3997
        // Predicated region
        $region53: #{tpu_custom_call.1} parent=39 // pred_check
          %p3999 = pneg %p150
        $region54: #{tpu_custom_call.1} parent=39 // pred_check_branch
          %4001 = sbr.rel (%p3999) target = $region56
        $region55: #{tpu_custom_call.1} parent=39 // pred_region
          %s4002 = smul.u32 13, %s22
          %s4003 = ssub.s32 25, %s4002
          %p4004 = scmp.lt.s32.totalorder %s4003, 13
          %s4005 = scalar_select %p4004, %s4003, 13
          %s4006 = smul.u32 128, %s4005
          %p4007 = scmp.ne.s32.totalorder 0, %s4006
          %s4008 = smul.addr %s4002, 8
          %s4009 = scalar_lea.vmem %s5, %s4008
          // Predicated region
          $region57: #{tpu_custom_call.1} parent=55 // pred_check
            %p4010 = pneg %p4007
          $region58: #{tpu_custom_call.1} parent=55 // pred_check_branch
            %4012 = sbr.rel (%p4010) target = $region60
          $region59: #{tpu_custom_call.1} parent=55 // pred_region
            // Predicated region
            $region61: #{tpu_custom_call.1} parent=59 // pred_check
              _
            $region62: #{tpu_custom_call.1} parent=59 // pred_check_branch
              %4014 = sbr.rel (0) target = $region64
            $region63: #{tpu_custom_call.1} parent=59 // pred_region
              // Predicated region
              $region83: #{tpu_custom_call.1} parent=63 // pred_check
                _
              $region84: #{tpu_custom_call.1} parent=63 // pred_check_branch
                %4089 = sbr.rel (0) target = $region86
              $region85: #{tpu_custom_call.1} parent=63 // pred_region
                %s4090 = sdiv.u32.pop %s4005, 13
                %s4091 = srem.u32.pop %s4005, 13
                // While loop
                $region87: #{tpu_custom_call.1} parent=85 // loop_pre_header
                  _
                $region88: #{tpu_custom_call.1} parent=85 // loop_header
                  %s4093 = sphi 0, %s4095
                  %p4094 = scmp.ge.s32.totalorder %s4093, %s4090
                  %s4098 = sphi 0, %s4129
                  %s4099 = sphi %s3998, %s4132
                  %s4100 = sphi %s4009, %s4133
                $region89: #{tpu_custom_call.1} parent=85 // loop_header_branch
                  %4097 = sbr.rel (%p4094) target = $region93
                $region90: #{tpu_custom_call.1} parent=85 // loop_body
                  %v4101 = vld [vmem:[%s4099] sm:$0xff]
                  %4102 = vst [vmem:[%s4100] sm:$0xff] %v4101
                  %v4103 = vld [vmem:[%s4099 + $0x8] sm:$0xff]
                  %4104 = vst [vmem:[%s4100 + $0x8] sm:$0xff] %v4103
                  %v4105 = vld [vmem:[%s4099 + $0x10] sm:$0xff]
                  %4106 = vst [vmem:[%s4100 + $0x10] sm:$0xff] %v4105
                  %v4107 = vld [vmem:[%s4099 + $0x18] sm:$0xff]
                  %4108 = vst [vmem:[%s4100 + $0x18] sm:$0xff] %v4107
                  %v4109 = vld [vmem:[%s4099 + $0x20] sm:$0xff]
                  %4110 = vst [vmem:[%s4100 + $0x20] sm:$0xff] %v4109
                  %v4111 = vld [vmem:[%s4099 + $0x28] sm:$0xff]
                  %4112 = vst [vmem:[%s4100 + $0x28] sm:$0xff] %v4111
                  %v4113 = vld [vmem:[%s4099 + $0x30] sm:$0xff]
                  %4114 = vst [vmem:[%s4100 + $0x30] sm:$0xff] %v4113
                  %v4115 = vld [vmem:[%s4099 + $0x38] sm:$0xff]
                  %4116 = vst [vmem:[%s4100 + $0x38] sm:$0xff] %v4115
                  %v4117 = vld [vmem:[%s4099 + $0x40] sm:$0xff]
                  %4118 = vst [vmem:[%s4100 + $0x40] sm:$0xff] %v4117
                  %v4119 = vld [vmem:[%s4099 + $0x48] sm:$0xff]
                  %4120 = vst [vmem:[%s4100 + $0x48] sm:$0xff] %v4119
                  %v4121 = vld [vmem:[%s4099 + $0x50] sm:$0xff]
                  %4122 = vst [vmem:[%s4100 + $0x50] sm:$0xff] %v4121
                  %v4123 = vld [vmem:[%s4099 + $0x58] sm:$0xff]
                  %4124 = vst [vmem:[%s4100 + $0x58] sm:$0xff] %v4123
                  %v4125 = vld [vmem:[%s4099 + $0x60] sm:$0xff]
                  %4126 = vst [vmem:[%s4100 + $0x60] sm:$0xff] %v4125
                  %s4127 = sadd.s32 1, %s4098
                  %p4128 = scmp.ge.s32.totalorder %s4127, %s4090
                  %s4129 = scalar_select %p4128, 0, %s4127
                  %s4130 = smul.u32 %s4129, 104
                  %s4131 = smul.u32 %s4129, 104
                  %s4132 = scalar_lea.vmem %s3998, %s4130 [#allocation8]
                  %s4133 = scalar_lea.vmem %s4009, %s4131
                $region91: #{tpu_custom_call.1} parent=85 // loop_footer
                  %s4095 = sadd.s32 %s4093, 1
                $region92: #{tpu_custom_call.1} parent=85 // loop_footer_branch
                  %4092 = sbr.rel target = $region88
                $region93: #{tpu_custom_call.1} parent=85 // loop_exit
                  _
                %s4134 = sdiv.u32.pop %s4005, 13
                %s4135 = srem.u32.pop %s4005, 13
                %s4136 = smul.u32 %s4134, 13
                %s4137 = smul.u32 8, %s4136
                %s4138 = scalar_lea.vmem %s3998, %s4137 [#allocation8]
                %s4139 = smul.u32 8, %s4136
                %s4140 = scalar_lea.vmem %s4009, %s4139
                // While loop
                $region94: #{tpu_custom_call.1} parent=85 // loop_pre_header
                  _
                $region95: #{tpu_custom_call.1} parent=85 // loop_header
                  %s4142 = sphi 0, %s4144
                  %p4143 = scmp.ge.s32.totalorder %s4142, %s4135
                  %s4147 = sphi 0, %s4154
                  %s4148 = sphi %s4138, %s4157
                  %s4149 = sphi %s4140, %s4158
                $region96: #{tpu_custom_call.1} parent=85 // loop_header_branch
                  %4146 = sbr.rel (%p4143) target = $region100
                $region97: #{tpu_custom_call.1} parent=85 // loop_body
                  %v4150 = vld [vmem:[%s4148] sm:$0xff]
                  %4151 = vst [vmem:[%s4149] sm:$0xff] %v4150
                  %s4152 = sadd.s32 1, %s4147
                  %p4153 = scmp.ge.s32.totalorder %s4152, %s4135
                  %s4154 = scalar_select %p4153, 0, %s4152
                  %s4155 = smul.u32 %s4154, 8
                  %s4156 = smul.u32 %s4154, 8
                  %s4157 = scalar_lea.vmem %s4138, %s4155 [#allocation8]
                  %s4158 = scalar_lea.vmem %s4140, %s4156
                $region98: #{tpu_custom_call.1} parent=85 // loop_footer
                  %s4144 = sadd.s32 %s4142, 1
                $region99: #{tpu_custom_call.1} parent=85 // loop_footer_branch
                  %4141 = sbr.rel target = $region95
                $region100: #{tpu_custom_call.1} parent=85 // loop_exit
                  _
              $region86: #{tpu_custom_call.1} parent=63 // pred_fallthru
                _
              // Predicated region
              $region101: #{tpu_custom_call.1} parent=63 // pred_check
                _
              $region102: #{tpu_custom_call.1} parent=63 // pred_check_branch
                %4160 = sbr.rel target = $region104
              $region103: #{tpu_custom_call.1} parent=63 // pred_region
                _
              $region104: #{tpu_custom_call.1} parent=63 // pred_fallthru
                _
            $region64: #{tpu_custom_call.1} parent=59 // pred_fallthru
              _
            // Predicated region
            $region65: #{tpu_custom_call.1} parent=59 // pred_check
              _
            $region66: #{tpu_custom_call.1} parent=59 // pred_check_branch
              %4016 = sbr.rel target = $region68
            $region67: #{tpu_custom_call.1} parent=59 // pred_region
              %s4018 = ssub.s32 256, 1
              %s4019 = sdiv.u32.pop %s4005, 13
              %s4020 = srem.u32.pop %s4005, 13
              // While loop
              $region69: #{tpu_custom_call.1} parent=67 // loop_pre_header
                _
              $region70: #{tpu_custom_call.1} parent=67 // loop_header
                %s4022 = sphi 0, %s4024
                %p4023 = scmp.ge.s32.totalorder %s4022, %s4019
                %s4027 = sphi 0, %s4058
                %s4028 = sphi %s3998, %s4061
                %s4029 = sphi %s4009, %s4062
              $region71: #{tpu_custom_call.1} parent=67 // loop_header_branch
                %4026 = sbr.rel (%p4023) target = $region75
              $region72: #{tpu_custom_call.1} parent=67 // loop_body
                %v4030 = vld [vmem:[%s4028] sm:%s4018]
                %4031 = vst [vmem:[%s4029] sm:%s4018] %v4030
                %v4032 = vld [vmem:[%s4028 + $0x8] sm:%s4018]
                %4033 = vst [vmem:[%s4029 + $0x8] sm:%s4018] %v4032
                %v4034 = vld [vmem:[%s4028 + $0x10] sm:%s4018]
                %4035 = vst [vmem:[%s4029 + $0x10] sm:%s4018] %v4034
                %v4036 = vld [vmem:[%s4028 + $0x18] sm:%s4018]
                %4037 = vst [vmem:[%s4029 + $0x18] sm:%s4018] %v4036
                %v4038 = vld [vmem:[%s4028 + $0x20] sm:%s4018]
                %4039 = vst [vmem:[%s4029 + $0x20] sm:%s4018] %v4038
                %v4040 = vld [vmem:[%s4028 + $0x28] sm:%s4018]
                %4041 = vst [vmem:[%s4029 + $0x28] sm:%s4018] %v4040
                %v4042 = vld [vmem:[%s4028 + $0x30] sm:%s4018]
                %4043 = vst [vmem:[%s4029 + $0x30] sm:%s4018] %v4042
                %v4044 = vld [vmem:[%s4028 + $0x38] sm:%s4018]
                %4045 = vst [vmem:[%s4029 + $0x38] sm:%s4018] %v4044
                %v4046 = vld [vmem:[%s4028 + $0x40] sm:%s4018]
                %4047 = vst [vmem:[%s4029 + $0x40] sm:%s4018] %v4046
                %v4048 = vld [vmem:[%s4028 + $0x48] sm:%s4018]
                %4049 = vst [vmem:[%s4029 + $0x48] sm:%s4018] %v4048
                %v4050 = vld [vmem:[%s4028 + $0x50] sm:%s4018]
                %4051 = vst [vmem:[%s4029 + $0x50] sm:%s4018] %v4050
                %v4052 = vld [vmem:[%s4028 + $0x58] sm:%s4018]
                %4053 = vst [vmem:[%s4029 + $0x58] sm:%s4018] %v4052
                %v4054 = vld [vmem:[%s4028 + $0x60] sm:%s4018]
                %4055 = vst [vmem:[%s4029 + $0x60] sm:%s4018] %v4054
                %s4056 = sadd.s32 1, %s4027
                %p4057 = scmp.ge.s32.totalorder %s4056, %s4019
                %s4058 = scalar_select %p4057, 0, %s4056
                %s4059 = smul.u32 %s4058, 104
                %s4060 = smul.u32 %s4058, 104
                %s4061 = scalar_lea.vmem %s3998, %s4059 [#allocation8]
                %s4062 = scalar_lea.vmem %s4009, %s4060
              $region73: #{tpu_custom_call.1} parent=67 // loop_footer
                %s4024 = sadd.s32 %s4022, 1
              $region74: #{tpu_custom_call.1} parent=67 // loop_footer_branch
                %4021 = sbr.rel target = $region70
              $region75: #{tpu_custom_call.1} parent=67 // loop_exit
                _
              %s4063 = sdiv.u32.pop %s4005, 13
              %s4064 = srem.u32.pop %s4005, 13
              %s4065 = smul.u32 %s4063, 13
              %s4066 = smul.u32 8, %s4065
              %s4067 = scalar_lea.vmem %s3998, %s4066 [#allocation8]
              %s4068 = smul.u32 8, %s4065
              %s4069 = scalar_lea.vmem %s4009, %s4068
              // While loop
              $region76: #{tpu_custom_call.1} parent=67 // loop_pre_header
                _
              $region77: #{tpu_custom_call.1} parent=67 // loop_header
                %s4071 = sphi 0, %s4073
                %p4072 = scmp.ge.s32.totalorder %s4071, %s4064
                %s4076 = sphi 0, %s4083
                %s4077 = sphi %s4067, %s4086
                %s4078 = sphi %s4069, %s4087
              $region78: #{tpu_custom_call.1} parent=67 // loop_header_branch
                %4075 = sbr.rel (%p4072) target = $region82
              $region79: #{tpu_custom_call.1} parent=67 // loop_body
                %v4079 = vld [vmem:[%s4077] sm:%s4018]
                %4080 = vst [vmem:[%s4078] sm:%s4018] %v4079
                %s4081 = sadd.s32 1, %s4076
                %p4082 = scmp.ge.s32.totalorder %s4081, %s4064
                %s4083 = scalar_select %p4082, 0, %s4081
                %s4084 = smul.u32 %s4083, 8
                %s4085 = smul.u32 %s4083, 8
                %s4086 = scalar_lea.vmem %s4067, %s4084 [#allocation8]
                %s4087 = scalar_lea.vmem %s4069, %s4085
              $region80: #{tpu_custom_call.1} parent=67 // loop_footer
                %s4073 = sadd.s32 %s4071, 1
              $region81: #{tpu_custom_call.1} parent=67 // loop_footer_branch
                %4070 = sbr.rel target = $region77
              $region82: #{tpu_custom_call.1} parent=67 // loop_exit
                _
            $region68: #{tpu_custom_call.1} parent=59 // pred_fallthru
              _
          $region60: #{tpu_custom_call.1} parent=55 // pred_fallthru
            _
          %4161 = vnop
        $region56: #{tpu_custom_call.1} parent=39 // pred_fallthru
          _
      $region40: #{tpu_custom_call.1} parent=5 // pred_fallthru
        _
      %p4162 = scmp.le.s32.totalorder 2, %s17
      // Predicated region
      $region105: #{tpu_custom_call.1} parent=5 // pred_check
        %p4163 = pneg %p4162
      $region106: #{tpu_custom_call.1} parent=5 // pred_check_branch
        %4165 = sbr.rel (%p4163) target = $region108
      $region107: #{tpu_custom_call.1} parent=5 // pred_region
        %s4166 = ssub.s32 %s17, 2
        // Predicated region
        $region109: #{tpu_custom_call.1} parent=107 // pred_check
          %p4167 = pneg %p156
        $region110: #{tpu_custom_call.1} parent=107 // pred_check_branch
          %4169 = sbr.rel (%p4167) target = $region112
        $region111: #{tpu_custom_call.1} parent=107 // pred_region
          %s4170 = sand.u32 %s141, 1
          %s4171 = sand.u32 %s141, 1
          %s4172 = smul.addr %s4171, 104
          %s4173 = scalar_lea.vmem [#allocation8], %s4172
        $region112: #{tpu_custom_call.1} parent=107 // pred_fallthru
          _
      $region108: #{tpu_custom_call.1} parent=5 // pred_fallthru
        _
    $region6: #{tpu_custom_call.1} parent=1 // loop_footer
      %s21 = sadd.s32 1, %s17
    $region7: #{tpu_custom_call.1} parent=1 // loop_footer_branch
      %16 = sbr.rel target = $region3
    $region8: #{tpu_custom_call.1} parent=1 // loop_exit
      _
    %4174 = vsyncpa [#allocation4], 1
    %s4175 = scalar_lea.sflag [#allocation4], 1
    %4176 = vsyncpa %s4175, 1
    %4177 = vsyncpa [#allocation6], 1

</llo_original>
